<compile_context>
chip_gen: v6e
topology: v6e:2x2x1
jax: 0.10.0
libtpu: 0.0.40
codegen_flags: <defaults>
</compile_context>

<pallas_src>
import numpy as np
import jax
import jax.numpy as jnp
from jax.experimental import pallas as pl
from jax.experimental.pallas import tpu as pltpu

C0 = 8            # base channel count "C" of the PyTorch module
EPS = 1e-5        # BatchNorm2d default eps

# 3x3 tap order: dy outer in (-1,0,1), dx inner in (-1,0,1)  (tap index t = (dy+1)*3 + (dx+1))
_TAPS = tuple((dy, dx) for dy in (-1, 0, 1) for dx in (-1, 0, 1))

# ConvTranspose2d(4,4,s=2,p=1): output row oy = 2*m + a receives contributions from input
# rows m + dy with kernel row ky, for (dy, ky) pairs below (same tables for columns).
_PH = {0: ((-1, 3), (0, 1)),
       1: ((0, 2), (1, 0))}


# ------------------- in-kernel helpers (operate on traced (C, M) values) -------------------

def _shift_lanes(x, off):
    """y[:, i] = x[:, i + off] with zero fill at the array ends (off is a static int)."""
    if off == 0:
        return x
    c, m = x.shape
    if off > 0:
        pad = jnp.zeros((c, off), x.dtype)
        return jnp.concatenate([x[:, off:], pad], axis=1)
    pad = jnp.zeros((c, -off), x.dtype)
    return jnp.concatenate([pad, x[:, :off]], axis=1)


def _im2col9(x, masks, row_w):
    """9-tap im2col in the (C, M) layout: lane shifts + edge masks, stacked on the sublane
    axis -> (9*Cin, M), cast once to bf16 for the MXU."""
    taps = []
    for t, (dy, dx) in enumerate(_TAPS):
        off = dy * row_w + dx
        tap = x if off == 0 else _shift_lanes(x, off) * masks[t]
        taps.append(tap)
    return jnp.concatenate(taps, axis=0).astype(jnp.bfloat16)


def _conv_bn(x, masks, row_w, w, b, *, relu, sigmoid=False):
    """conv3x3('same') + bias (+ReLU) + training-mode BatchNorm (+optional sigmoid)."""
    patch = _im2col9(x, masks, row_w)                                   # (9*Cin, M) bf16
    y = jnp.dot(w, patch, preferred_element_type=jnp.float32) + b       # (Cout, M)  f32
    if relu:
        y = jnp.maximum(y, 0.0)
    inv_m = 1.0 / y.shape[1]
    mu = jnp.sum(y, axis=1, keepdims=True) * inv_m                      # (Cout, 1)
    msq = jnp.sum(y * y, axis=1, keepdims=True) * inv_m                 # fused E[y^2] pass
    var = jnp.maximum(msq - mu * mu, 0.0)                               # biased batch var
    y = (y - mu) * jax.lax.rsqrt(var + EPS)                             # gamma=1, beta=0
    return jax.nn.sigmoid(y) if sigmoid else y


def _pool(x, row_w, sel):
    """MaxPool2d(2): two shift+max ops, then one 0/1-selection matmul that compacts the
    (even h, even w) positions into the half-resolution flat layout."""
    m = jnp.maximum(x, _shift_lanes(x, 1))
    m = jnp.maximum(m, _shift_lanes(m, row_w))
    return jnp.dot(m.astype(jnp.bfloat16), sel, preferred_element_type=jnp.float32)


def _deconv(x, masks, row_w, w, b, place_ref):
    """ConvTranspose2d(4,4,stride=2,pad=1): one combined matmul over the shared 9-tap patch
    produces all 4 stride phases; 4 placement matmuls interleave them to 2x resolution."""
    cout = b.shape[0]
    patch = _im2col9(x, masks, row_w)                                   # (9*Cin, M_lo) bf16
    y4 = jnp.dot(w, patch, preferred_element_type=jnp.float32)          # (4*Cout, M_lo) f32
    out = None
    for p in range(4):
        yp = y4[p * cout:(p + 1) * cout].astype(jnp.bfloat16)           # (Cout, M_lo)
        op = jnp.dot(yp, place_ref[p], preferred_element_type=jnp.float32)  # (Cout, M_hi)
        out = op if out is None else out + op
    return out + b


# ------------------------------------ fused kernel ------------------------------------

def _make_kernel(W):
    w_full, w_half, w_quar = W, W // 2, W // 4

    def kernel(x_ref, mkf_ref, mkh_ref, mkq_ref, s1_ref, s2_ref, p1_ref, p2_ref,
               w1, b1, w2, b2, w3, b3, w4, b4, w5, b5, w6, b6,
               u1, ub1, u2, ub2, o_ref):
        mkf = mkf_ref[...]; mkh = mkh_ref[...]; mkq = mkq_ref[...]
        x = x_ref[...]                                                       # (1,  M1)
        x1 = _conv_bn(x,  mkf, w_full, w1[...], b1[...], relu=True)          # (C,  M1)
        x2 = _pool(x1, w_full, s1_ref[...])                                  # (C,  M2)
        x3 = _conv_bn(x2, mkh, w_half, w2[...], b2[...], relu=True)          # (2C, M2)
        x4 = _pool(x3, w_half, s2_ref[...])                                  # (2C, M3)
        x5 = _conv_bn(x4, mkq, w_quar, w3[...], b3[...], relu=True)          # (4C, M3)
        x6 = _deconv(x5, mkq, w_quar, u1[...], ub1[...], p1_ref)             # (2C, M2)
        x7 = jnp.concatenate([x6, x3], axis=0)                               # (4C, M2)
        x8 = _conv_bn(x7, mkh, w_half, w4[...], b4[...], relu=True)          # (2C, M2)
        x9 = _deconv(x8, mkh, w_half, u2[...], ub2[...], p2_ref)             # (C,  M1)
        x10 = jnp.concatenate([x9, x1], axis=0)                              # (2C, M1)
        x11 = _conv_bn(x10, mkf, w_full, w5[...], b5[...], relu=True)        # (C,  M1)
        x12 = _conv_bn(x11, mkf, w_full, w6[...], b6[...],
                       relu=False, sigmoid=True)                             # (1,  M1)
        o_ref[...] = x12                                                     # lane-dense store

    return kernel


# ----------------------------- host-side structural constants -----------------------------

def _edge_masks(N, H, W):
    """(9, 1, N*H*W) f32: 1 where the (dy,dx)-shifted tap stays inside the image."""
    M = N * H * W
    h = (np.arange(M) // W) % H
    w = np.arange(M) % W
    m = np.zeros((9, 1, M), np.float32)
    for t, (dy, dx) in enumerate(_TAPS):
        m[t, 0] = ((h + dy >= 0) & (h + dy < H) & (w + dx >= 0) & (w + dx < W))
    return jnp.asarray(m)


def _pool_select(N, H, W):
    """0/1 selection matrix (N*H*W, N*(H/2)*(W/2)) that compacts the 2x2-max results."""
    Ho, Wo = H // 2, W // 2
    s = np.zeros((N * H * W, N * Ho * Wo), np.float32)
    dst = np.arange(N * Ho * Wo)
    n = dst // (Ho * Wo)
    ho = (dst // Wo) % Ho
    wo = dst % Wo
    src = n * H * W + (2 * ho) * W + 2 * wo
    s[src, dst] = 1.0
    return jnp.asarray(s, jnp.bfloat16)


def _deconv_place(N, H, W):
    """(4, N*H*W, N*2H*2W) 0/1 phase-placement matrices for the stride-2 deconv interleave."""
    Hh, Wh = 2 * H, 2 * W
    pmat = np.zeros((4, N * H * W, N * Hh * Wh), np.float32)
    src = np.arange(N * H * W)
    n = src // (H * W)
    m = (src // W) % H
    k = src % W
    for a in range(2):
        for b in range(2):
            dst = n * Hh * Wh + (2 * m + a) * Wh + (2 * k + b)
            pmat[2 * a + b, src, dst] = 1.0
    return jnp.asarray(pmat, jnp.bfloat16)


# ---------------------------------- host-side wrapper ----------------------------------

_PARAM_ORDER = ("conv1_w", "conv1_b", "conv2_w", "conv2_b", "conv3_w", "conv3_b",
                "conv4_w", "conv4_b", "conv5_w", "conv5_b", "conv6_w", "conv6_b",
                "up1_w", "up1_b", "up2_w", "up2_b")


def unet_forward(params, x_nchw):
    x_nchw = x_nchw.astype(jnp.float32)
    N, cin, H, W = x_nchw.shape
    assert cin == 1 and H % 4 == 0 and W % 4 == 0
    M1 = N * H * W
    x = jnp.transpose(x_nchw, (1, 0, 2, 3)).reshape(cin, M1)            # (Cin, N*H*W)

    consts = (
        _edge_masks(N, H, W), _edge_masks(N, H // 2, W // 2), _edge_masks(N, H // 4, W // 4),
        _pool_select(N, H, W), _pool_select(N, H // 2, W // 2),
        _deconv_place(N, H // 4, W // 4), _deconv_place(N, H // 2, W // 2),
    )
    weights = tuple(params[k] for k in _PARAM_ORDER)
    args = (x,) + consts + weights

    vmem = pl.BlockSpec(memory_space=pltpu.MemorySpace.VMEM)            # everything resident
    out = pl.pallas_call(
        _make_kernel(W),
        out_shape=jax.ShapeDtypeStruct((1, M1), jnp.float32),           # lane-dense output
        in_specs=[vmem] * len(args),
        out_specs=vmem,
    )(*args)
    # TODO(synk): on v7x the second TensorCore stays idle; with a large tile batch a
    # 'parallel' grid axis (plus a cross-core BN reduction) would engage it — not worth it
    # at N=2 since BatchNorm couples the whole batch.
    return out.reshape(N, H, W)[:, None, :, :]                          # -> NCHW


# ----------------------------------- parameter init -----------------------------------

def orthogonal_init(key, shape):
    """Matches torch.nn.init.orthogonal_: flatten to (rows, prod(rest)), QR, sign fix."""
    rows = shape[0]
    cols = int(np.prod(shape[1:]))
    transpose = rows < cols
    a = jax.random.normal(key, (cols, rows) if transpose else (rows, cols),
                          dtype=jnp.float32)
    q, r = jnp.linalg.qr(a)
    d = jnp.diagonal(r)
    q = q * jnp.where(d >= 0, 1.0, -1.0)
    if transpose:
        q = q.T
    return q.reshape(shape)


def _prep_conv_w(wt):
    """torch Conv2d weight (Cout, Cin, 3, 3) -> (Cout, 9*Cin) bf16, columns (ky, kx, ci)."""
    cout, cin = wt.shape[0], wt.shape[1]
    return jnp.transpose(wt, (0, 2, 3, 1)).reshape(cout, 9 * cin).astype(jnp.bfloat16)


def _prep_deconv_w(wt):
    """torch ConvTranspose2d weight (Cin, Cout, 4, 4) -> combined phase weight
    (4*Cout, 9*Cin) bf16 over the shared 9-tap patch (zeros at taps a phase does not use)."""
    wt = np.asarray(wt)
    cin, cout = wt.shape[0], wt.shape[1]
    wd = np.zeros((4 * cout, 9 * cin), np.float32)
    for a in range(2):
        for b in range(2):
            p = 2 * a + b
            for dy, ky in _PH[a]:
                for dx, kx in _PH[b]:
                    t = (dy + 1) * 3 + (dx + 1)
                    wd[p * cout:(p + 1) * cout, t * cin:(t + 1) * cin] = wt[:, :, ky, kx].T
    return jnp.asarray(wd, jnp.bfloat16)


def init_params(key):
    C = C0
    keys = jax.random.split(key, 8)
    p = {}
    conv_dims = [(1, C), (C, 2 * C), (2 * C, 4 * C), (4 * C, 2 * C), (2 * C, C), (C, 1)]
    for i, (cin, cout) in enumerate(conv_dims):
        wt = orthogonal_init(keys[i], (cout, cin, 3, 3))               # torch Conv2d layout
        p[f"conv{i + 1}_w"] = _prep_conv_w(wt)
        p[f"conv{i + 1}_b"] = jnp.zeros((cout, 1), jnp.float32)
    p["up1_w"] = _prep_deconv_w(orthogonal_init(keys[6], (4 * C, 2 * C, 4, 4)))
    p["up1_b"] = jnp.zeros((2 * C, 1), jnp.float32)
    p["up2_w"] = _prep_deconv_w(orthogonal_init(keys[7], (2 * C, C, 4, 4)))
    p["up2_b"] = jnp.zeros((C, 1), jnp.float32)
    return p


if __name__ == "__main__":
    key = jax.random.PRNGKey(0)
    pkey, xkey = jax.random.split(key)
    params = init_params(pkey)
    x = jax.random.normal(xkey, (2, 1, 16, 16), dtype=jnp.float32)     # NCHW, like PyTorch
    out = jax.block_until_ready(jax.jit(unet_forward)(params, x))
    assert out.shape == (2, 1, 16, 16)
    assert bool(jnp.all(jnp.isfinite(out)))
    assert bool(jnp.all((out >= 0.0) & (out <= 1.0)))                  # sigmoid output range
    print("KERNEL_OK")
</pallas_src>

<mosaic_0001>
module attributes {stable_mosaic.version = 11 : i64} {
  func.func @kernel(%arg0: memref<1x512xf32, #tpu.memory_space<vmem>>, %arg1: memref<9x1x512xf32, #tpu.memory_space<vmem>>, %arg2: memref<9x1x128xf32, #tpu.memory_space<vmem>>, %arg3: memref<9x1x32xf32, #tpu.memory_space<vmem>>, %arg4: memref<512x128xbf16, #tpu.memory_space<vmem>>, %arg5: memref<128x32xbf16, #tpu.memory_space<vmem>>, %arg6: memref<4x32x128xbf16, #tpu.memory_space<vmem>>, %arg7: memref<4x128x512xbf16, #tpu.memory_space<vmem>>, %arg8: memref<8x9xbf16, #tpu.memory_space<vmem>>, %arg9: memref<8x1xf32, #tpu.memory_space<vmem>>, %arg10: memref<16x72xbf16, #tpu.memory_space<vmem>>, %arg11: memref<16x1xf32, #tpu.memory_space<vmem>>, %arg12: memref<32x144xbf16, #tpu.memory_space<vmem>>, %arg13: memref<32x1xf32, #tpu.memory_space<vmem>>, %arg14: memref<16x288xbf16, #tpu.memory_space<vmem>>, %arg15: memref<16x1xf32, #tpu.memory_space<vmem>>, %arg16: memref<8x144xbf16, #tpu.memory_space<vmem>>, %arg17: memref<8x1xf32, #tpu.memory_space<vmem>>, %arg18: memref<1x72xbf16, #tpu.memory_space<vmem>>, %arg19: memref<1x1xf32, #tpu.memory_space<vmem>>, %arg20: memref<64x288xbf16, #tpu.memory_space<vmem>>, %arg21: memref<16x1xf32, #tpu.memory_space<vmem>>, %arg22: memref<32x144xbf16, #tpu.memory_space<vmem>>, %arg23: memref<8x1xf32, #tpu.memory_space<vmem>>, %arg24: memref<1x512xf32, #tpu.memory_space<vmem>>) attributes {dimension_semantics = [], scalar_prefetch = 0 : i64, scratch_operands = 0 : i64, tpu.core_type = #tpu.core_type<tc>} {
    %c0 = arith.constant 0 : index
    %c0_0 = arith.constant 0 : index
    %c0_1 = arith.constant 0 : index
    %0 = vector.load %arg1[%c0, %c0_0, %c0_1] : memref<9x1x512xf32, #tpu.memory_space<vmem>>, vector<9x1x512xf32>
    %c0_2 = arith.constant 0 : index
    %c0_3 = arith.constant 0 : index
    %c0_4 = arith.constant 0 : index
    %1 = vector.load %arg2[%c0_2, %c0_3, %c0_4] : memref<9x1x128xf32, #tpu.memory_space<vmem>>, vector<9x1x128xf32>
    %c0_5 = arith.constant 0 : index
    %c0_6 = arith.constant 0 : index
    %c0_7 = arith.constant 0 : index
    %2 = vector.load %arg3[%c0_5, %c0_6, %c0_7] : memref<9x1x32xf32, #tpu.memory_space<vmem>>, vector<9x1x32xf32>
    %c0_8 = arith.constant 0 : index
    %c0_9 = arith.constant 0 : index
    %3 = vector.load %arg0[%c0_8, %c0_9] : memref<1x512xf32, #tpu.memory_space<vmem>>, vector<1x512xf32>
    %c0_10 = arith.constant 0 : index
    %c0_11 = arith.constant 0 : index
    %4 = vector.load %arg8[%c0_10, %c0_11] : memref<8x9xbf16, #tpu.memory_space<vmem>>, vector<8x9xbf16>
    %c0_12 = arith.constant 0 : index
    %c0_13 = arith.constant 0 : index
    %5 = vector.load %arg9[%c0_12, %c0_13] : memref<8x1xf32, #tpu.memory_space<vmem>>, vector<8x1xf32>
    %cst = arith.constant 0.000000e+00 : f32
    %6 = vector.broadcast %cst : f32 to vector<1x17xf32>
    %7 = vector.extract_strided_slice %3 {offsets = [0, 0], sizes = [1, 495], strides = [1, 1]} : vector<1x512xf32> to vector<1x495xf32>
    %8 = tpu.concatenate %6, %7 in 1 : vector<1x17xf32>, vector<1x495xf32> -> vector<1x512xf32>
    %9 = vector.extract_strided_slice %0 {offsets = [0, 0, 0], sizes = [1, 1, 512], strides = [1, 1, 1]} : vector<9x1x512xf32> to vector<1x1x512xf32>
    %10 = vector.shape_cast %9 : vector<1x1x512xf32> to vector<1x512xf32>
    %11 = arith.mulf %8, %10 : vector<1x512xf32>
    %cst_14 = arith.constant 0.000000e+00 : f32
    %12 = vector.broadcast %cst_14 : f32 to vector<1x16xf32>
    %13 = vector.extract_strided_slice %3 {offsets = [0, 0], sizes = [1, 496], strides = [1, 1]} : vector<1x512xf32> to vector<1x496xf32>
    %14 = tpu.concatenate %12, %13 in 1 : vector<1x16xf32>, vector<1x496xf32> -> vector<1x512xf32>
    %15 = vector.extract_strided_slice %0 {offsets = [1, 0, 0], sizes = [1, 1, 512], strides = [1, 1, 1]} : vector<9x1x512xf32> to vector<1x1x512xf32>
    %16 = vector.shape_cast %15 : vector<1x1x512xf32> to vector<1x512xf32>
    %17 = arith.mulf %14, %16 : vector<1x512xf32>
    %cst_15 = arith.constant 0.000000e+00 : f32
    %18 = vector.broadcast %cst_15 : f32 to vector<1x15xf32>
    %19 = vector.extract_strided_slice %3 {offsets = [0, 0], sizes = [1, 497], strides = [1, 1]} : vector<1x512xf32> to vector<1x497xf32>
    %20 = tpu.concatenate %18, %19 in 1 : vector<1x15xf32>, vector<1x497xf32> -> vector<1x512xf32>
    %21 = vector.extract_strided_slice %0 {offsets = [2, 0, 0], sizes = [1, 1, 512], strides = [1, 1, 1]} : vector<9x1x512xf32> to vector<1x1x512xf32>
    %22 = vector.shape_cast %21 : vector<1x1x512xf32> to vector<1x512xf32>
    %23 = arith.mulf %20, %22 : vector<1x512xf32>
    %cst_16 = arith.constant 0.000000e+00 : f32
    %24 = vector.broadcast %cst_16 : f32 to vector<1x1xf32>
    %25 = vector.extract_strided_slice %3 {offsets = [0, 0], sizes = [1, 511], strides = [1, 1]} : vector<1x512xf32> to vector<1x511xf32>
    %26 = tpu.concatenate %24, %25 in 1 : vector<1x1xf32>, vector<1x511xf32> -> vector<1x512xf32>
    %27 = vector.extract_strided_slice %0 {offsets = [3, 0, 0], sizes = [1, 1, 512], strides = [1, 1, 1]} : vector<9x1x512xf32> to vector<1x1x512xf32>
    %28 = vector.shape_cast %27 : vector<1x1x512xf32> to vector<1x512xf32>
    %29 = arith.mulf %26, %28 : vector<1x512xf32>
    %cst_17 = arith.constant 0.000000e+00 : f32
    %30 = vector.broadcast %cst_17 : f32 to vector<1x1xf32>
    %31 = vector.extract_strided_slice %3 {offsets = [0, 1], sizes = [1, 511], strides = [1, 1]} : vector<1x512xf32> to vector<1x511xf32>
    %32 = tpu.concatenate %31, %30 in 1 : vector<1x511xf32>, vector<1x1xf32> -> vector<1x512xf32>
    %33 = vector.extract_strided_slice %0 {offsets = [5, 0, 0], sizes = [1, 1, 512], strides = [1, 1, 1]} : vector<9x1x512xf32> to vector<1x1x512xf32>
    %34 = vector.shape_cast %33 : vector<1x1x512xf32> to vector<1x512xf32>
    %35 = arith.mulf %32, %34 : vector<1x512xf32>
    %cst_18 = arith.constant 0.000000e+00 : f32
    %36 = vector.broadcast %cst_18 : f32 to vector<1x15xf32>
    %37 = vector.extract_strided_slice %3 {offsets = [0, 15], sizes = [1, 497], strides = [1, 1]} : vector<1x512xf32> to vector<1x497xf32>
    %38 = tpu.concatenate %37, %36 in 1 : vector<1x497xf32>, vector<1x15xf32> -> vector<1x512xf32>
    %39 = vector.extract_strided_slice %0 {offsets = [6, 0, 0], sizes = [1, 1, 512], strides = [1, 1, 1]} : vector<9x1x512xf32> to vector<1x1x512xf32>
    %40 = vector.shape_cast %39 : vector<1x1x512xf32> to vector<1x512xf32>
    %41 = arith.mulf %38, %40 : vector<1x512xf32>
    %cst_19 = arith.constant 0.000000e+00 : f32
    %42 = vector.broadcast %cst_19 : f32 to vector<1x16xf32>
    %43 = vector.extract_strided_slice %3 {offsets = [0, 16], sizes = [1, 496], strides = [1, 1]} : vector<1x512xf32> to vector<1x496xf32>
    %44 = tpu.concatenate %43, %42 in 1 : vector<1x496xf32>, vector<1x16xf32> -> vector<1x512xf32>
    %45 = vector.extract_strided_slice %0 {offsets = [7, 0, 0], sizes = [1, 1, 512], strides = [1, 1, 1]} : vector<9x1x512xf32> to vector<1x1x512xf32>
    %46 = vector.shape_cast %45 : vector<1x1x512xf32> to vector<1x512xf32>
    %47 = arith.mulf %44, %46 : vector<1x512xf32>
    %cst_20 = arith.constant 0.000000e+00 : f32
    %48 = vector.broadcast %cst_20 : f32 to vector<1x17xf32>
    %49 = vector.extract_strided_slice %3 {offsets = [0, 17], sizes = [1, 495], strides = [1, 1]} : vector<1x512xf32> to vector<1x495xf32>
    %50 = tpu.concatenate %49, %48 in 1 : vector<1x495xf32>, vector<1x17xf32> -> vector<1x512xf32>
    %51 = vector.extract_strided_slice %0 {offsets = [8, 0, 0], sizes = [1, 1, 512], strides = [1, 1, 1]} : vector<9x1x512xf32> to vector<1x1x512xf32>
    %52 = vector.shape_cast %51 : vector<1x1x512xf32> to vector<1x512xf32>
    %53 = arith.mulf %50, %52 : vector<1x512xf32>
    %54 = tpu.concatenate %11, %17, %23, %29, %3, %35, %41, %47, %53 in 0 : vector<1x512xf32>, vector<1x512xf32>, vector<1x512xf32>, vector<1x512xf32>, vector<1x512xf32>, vector<1x512xf32>, vector<1x512xf32>, vector<1x512xf32>, vector<1x512xf32> -> vector<9x512xf32>
    %55 = arith.truncf %54 : vector<9x512xf32> to vector<9x512xbf16>
    %cst_21 = arith.constant dense<0.000000e+00> : vector<8x512xf32>
    %56 = tpu.matmul %4, %55, %cst_21 {dimension_numbers = #tpu.dot_dimension_numbers<[1], [0], [0], [1], [0, 0, 1, 1], [], []>} : vector<8x9xbf16>, vector<9x512xbf16>, vector<8x512xf32> -> vector<8x512xf32>
    %57 = vector.broadcast %5 : vector<8x1xf32> to vector<8x512xf32>
    %58 = arith.addf %56, %57 : vector<8x512xf32>
    %cst_22 = arith.constant 0.000000e+00 : f32
    %59 = vector.broadcast %cst_22 : f32 to vector<8x512xf32>
    %60 = arith.maximumf %58, %59 : vector<8x512xf32>
    %cst_23 = arith.constant dense<0.000000e+00> : vector<8xf32>
    %61 = vector.multi_reduction <add>, %60, %cst_23 [1] : vector<8x512xf32> to vector<8xf32>
    %62 = vector.shape_cast %61 : vector<8xf32> to vector<8x1xf32>
    %cst_24 = arith.constant 0.001953125 : f32
    %63 = vector.broadcast %cst_24 : f32 to vector<8x1xf32>
    %64 = arith.mulf %62, %63 : vector<8x1xf32>
    %65 = arith.mulf %60, %60 : vector<8x512xf32>
    %cst_25 = arith.constant dense<0.000000e+00> : vector<8xf32>
    %66 = vector.multi_reduction <add>, %65, %cst_25 [1] : vector<8x512xf32> to vector<8xf32>
    %67 = vector.shape_cast %66 : vector<8xf32> to vector<8x1xf32>
    %cst_26 = arith.constant 0.001953125 : f32
    %68 = vector.broadcast %cst_26 : f32 to vector<8x1xf32>
    %69 = arith.mulf %67, %68 : vector<8x1xf32>
    %70 = arith.mulf %64, %64 : vector<8x1xf32>
    %71 = arith.subf %69, %70 : vector<8x1xf32>
    %cst_27 = arith.constant 0.000000e+00 : f32
    %72 = vector.broadcast %cst_27 : f32 to vector<8x1xf32>
    %73 = arith.maximumf %71, %72 : vector<8x1xf32>
    %74 = vector.broadcast %64 : vector<8x1xf32> to vector<8x512xf32>
    %75 = arith.subf %60, %74 : vector<8x512xf32>
    %cst_28 = arith.constant 9.99999974E-6 : f32
    %76 = vector.broadcast %cst_28 : f32 to vector<8x1xf32>
    %77 = arith.addf %73, %76 : vector<8x1xf32>
    %78 = math.rsqrt %77 : vector<8x1xf32>
    %79 = vector.broadcast %78 : vector<8x1xf32> to vector<8x512xf32>
    %80 = arith.mulf %75, %79 : vector<8x512xf32>
    %c0_29 = arith.constant 0 : index
    %c0_30 = arith.constant 0 : index
    %81 = vector.load %arg4[%c0_29, %c0_30] : memref<512x128xbf16, #tpu.memory_space<vmem>>, vector<512x128xbf16>
    %cst_31 = arith.constant 0.000000e+00 : f32
    %82 = vector.broadcast %cst_31 : f32 to vector<8x1xf32>
    %83 = vector.extract_strided_slice %80 {offsets = [0, 1], sizes = [8, 511], strides = [1, 1]} : vector<8x512xf32> to vector<8x511xf32>
    %84 = tpu.concatenate %83, %82 in 1 : vector<8x511xf32>, vector<8x1xf32> -> vector<8x512xf32>
    %85 = arith.maximumf %80, %84 : vector<8x512xf32>
    %cst_32 = arith.constant 0.000000e+00 : f32
    %86 = vector.broadcast %cst_32 : f32 to vector<8x16xf32>
    %87 = vector.extract_strided_slice %85 {offsets = [0, 16], sizes = [8, 496], strides = [1, 1]} : vector<8x512xf32> to vector<8x496xf32>
    %88 = tpu.concatenate %87, %86 in 1 : vector<8x496xf32>, vector<8x16xf32> -> vector<8x512xf32>
    %89 = arith.maximumf %85, %88 : vector<8x512xf32>
    %90 = arith.truncf %89 : vector<8x512xf32> to vector<8x512xbf16>
    %cst_33 = arith.constant dense<0.000000e+00> : vector<8x128xf32>
    %91 = tpu.matmul %90, %81, %cst_33 {dimension_numbers = #tpu.dot_dimension_numbers<[1], [0], [0], [1], [0, 0, 1, 1], [], []>} : vector<8x512xbf16>, vector<512x128xbf16>, vector<8x128xf32> -> vector<8x128xf32>
    %c0_34 = arith.constant 0 : index
    %c0_35 = arith.constant 0 : index
    %92 = vector.load %arg10[%c0_34, %c0_35] : memref<16x72xbf16, #tpu.memory_space<vmem>>, vector<16x72xbf16>
    %c0_36 = arith.constant 0 : index
    %c0_37 = arith.constant 0 : index
    %93 = vector.load %arg11[%c0_36, %c0_37] : memref<16x1xf32, #tpu.memory_space<vmem>>, vector<16x1xf32>
    %cst_38 = arith.constant 0.000000e+00 : f32
    %94 = vector.broadcast %cst_38 : f32 to vector<8x9xf32>
    %95 = vector.extract_strided_slice %91 {offsets = [0, 0], sizes = [8, 119], strides = [1, 1]} : vector<8x128xf32> to vector<8x119xf32>
    %96 = tpu.concatenate %94, %95 in 1 : vector<8x9xf32>, vector<8x119xf32> -> vector<8x128xf32>
    %97 = vector.extract_strided_slice %1 {offsets = [0, 0, 0], sizes = [1, 1, 128], strides = [1, 1, 1]} : vector<9x1x128xf32> to vector<1x1x128xf32>
    %98 = vector.shape_cast %97 : vector<1x1x128xf32> to vector<1x128xf32>
    %99 = vector.broadcast %98 : vector<1x128xf32> to vector<8x128xf32>
    %100 = arith.mulf %96, %99 : vector<8x128xf32>
    %cst_39 = arith.constant 0.000000e+00 : f32
    %101 = vector.broadcast %cst_39 : f32 to vector<8x8xf32>
    %102 = vector.extract_strided_slice %91 {offsets = [0, 0], sizes = [8, 120], strides = [1, 1]} : vector<8x128xf32> to vector<8x120xf32>
    %103 = tpu.concatenate %101, %102 in 1 : vector<8x8xf32>, vector<8x120xf32> -> vector<8x128xf32>
    %104 = vector.extract_strided_slice %1 {offsets = [1, 0, 0], sizes = [1, 1, 128], strides = [1, 1, 1]} : vector<9x1x128xf32> to vector<1x1x128xf32>
    %105 = vector.shape_cast %104 : vector<1x1x128xf32> to vector<1x128xf32>
    %106 = vector.broadcast %105 : vector<1x128xf32> to vector<8x128xf32>
    %107 = arith.mulf %103, %106 : vector<8x128xf32>
    %cst_40 = arith.constant 0.000000e+00 : f32
    %108 = vector.broadcast %cst_40 : f32 to vector<8x7xf32>
    %109 = vector.extract_strided_slice %91 {offsets = [0, 0], sizes = [8, 121], strides = [1, 1]} : vector<8x128xf32> to vector<8x121xf32>
    %110 = tpu.concatenate %108, %109 in 1 : vector<8x7xf32>, vector<8x121xf32> -> vector<8x128xf32>
    %111 = vector.extract_strided_slice %1 {offsets = [2, 0, 0], sizes = [1, 1, 128], strides = [1, 1, 1]} : vector<9x1x128xf32> to vector<1x1x128xf32>
    %112 = vector.shape_cast %111 : vector<1x1x128xf32> to vector<1x128xf32>
    %113 = vector.broadcast %112 : vector<1x128xf32> to vector<8x128xf32>
    %114 = arith.mulf %110, %113 : vector<8x128xf32>
    %cst_41 = arith.constant 0.000000e+00 : f32
    %115 = vector.broadcast %cst_41 : f32 to vector<8x1xf32>
    %116 = vector.extract_strided_slice %91 {offsets = [0, 0], sizes = [8, 127], strides = [1, 1]} : vector<8x128xf32> to vector<8x127xf32>
    %117 = tpu.concatenate %115, %116 in 1 : vector<8x1xf32>, vector<8x127xf32> -> vector<8x128xf32>
    %118 = vector.extract_strided_slice %1 {offsets = [3, 0, 0], sizes = [1, 1, 128], strides = [1, 1, 1]} : vector<9x1x128xf32> to vector<1x1x128xf32>
    %119 = vector.shape_cast %118 : vector<1x1x128xf32> to vector<1x128xf32>
    %120 = vector.broadcast %119 : vector<1x128xf32> to vector<8x128xf32>
    %121 = arith.mulf %117, %120 : vector<8x128xf32>
    %cst_42 = arith.constant 0.000000e+00 : f32
    %122 = vector.broadcast %cst_42 : f32 to vector<8x1xf32>
    %123 = vector.extract_strided_slice %91 {offsets = [0, 1], sizes = [8, 127], strides = [1, 1]} : vector<8x128xf32> to vector<8x127xf32>
    %124 = tpu.concatenate %123, %122 in 1 : vector<8x127xf32>, vector<8x1xf32> -> vector<8x128xf32>
    %125 = vector.extract_strided_slice %1 {offsets = [5, 0, 0], sizes = [1, 1, 128], strides = [1, 1, 1]} : vector<9x1x128xf32> to vector<1x1x128xf32>
    %126 = vector.shape_cast %125 : vector<1x1x128xf32> to vector<1x128xf32>
    %127 = vector.broadcast %126 : vector<1x128xf32> to vector<8x128xf32>
    %128 = arith.mulf %124, %127 : vector<8x128xf32>
    %cst_43 = arith.constant 0.000000e+00 : f32
    %129 = vector.broadcast %cst_43 : f32 to vector<8x7xf32>
    %130 = vector.extract_strided_slice %91 {offsets = [0, 7], sizes = [8, 121], strides = [1, 1]} : vector<8x128xf32> to vector<8x121xf32>
    %131 = tpu.concatenate %130, %129 in 1 : vector<8x121xf32>, vector<8x7xf32> -> vector<8x128xf32>
    %132 = vector.extract_strided_slice %1 {offsets = [6, 0, 0], sizes = [1, 1, 128], strides = [1, 1, 1]} : vector<9x1x128xf32> to vector<1x1x128xf32>
    %133 = vector.shape_cast %132 : vector<1x1x128xf32> to vector<1x128xf32>
    %134 = vector.broadcast %133 : vector<1x128xf32> to vector<8x128xf32>
    %135 = arith.mulf %131, %134 : vector<8x128xf32>
    %cst_44 = arith.constant 0.000000e+00 : f32
    %136 = vector.broadcast %cst_44 : f32 to vector<8x8xf32>
    %137 = vector.extract_strided_slice %91 {offsets = [0, 8], sizes = [8, 120], strides = [1, 1]} : vector<8x128xf32> to vector<8x120xf32>
    %138 = tpu.concatenate %137, %136 in 1 : vector<8x120xf32>, vector<8x8xf32> -> vector<8x128xf32>
    %139 = vector.extract_strided_slice %1 {offsets = [7, 0, 0], sizes = [1, 1, 128], strides = [1, 1, 1]} : vector<9x1x128xf32> to vector<1x1x128xf32>
    %140 = vector.shape_cast %139 : vector<1x1x128xf32> to vector<1x128xf32>
    %141 = vector.broadcast %140 : vector<1x128xf32> to vector<8x128xf32>
    %142 = arith.mulf %138, %141 : vector<8x128xf32>
    %cst_45 = arith.constant 0.000000e+00 : f32
    %143 = vector.broadcast %cst_45 : f32 to vector<8x9xf32>
    %144 = vector.extract_strided_slice %91 {offsets = [0, 9], sizes = [8, 119], strides = [1, 1]} : vector<8x128xf32> to vector<8x119xf32>
    %145 = tpu.concatenate %144, %143 in 1 : vector<8x119xf32>, vector<8x9xf32> -> vector<8x128xf32>
    %146 = vector.extract_strided_slice %1 {offsets = [8, 0, 0], sizes = [1, 1, 128], strides = [1, 1, 1]} : vector<9x1x128xf32> to vector<1x1x128xf32>
    %147 = vector.shape_cast %146 : vector<1x1x128xf32> to vector<1x128xf32>
    %148 = vector.broadcast %147 : vector<1x128xf32> to vector<8x128xf32>
    %149 = arith.mulf %145, %148 : vector<8x128xf32>
    %150 = tpu.concatenate %100, %107, %114, %121, %91, %128, %135, %142, %149 in 0 : vector<8x128xf32>, vector<8x128xf32>, vector<8x128xf32>, vector<8x128xf32>, vector<8x128xf32>, vector<8x128xf32>, vector<8x128xf32>, vector<8x128xf32>, vector<8x128xf32> -> vector<72x128xf32>
    %151 = arith.truncf %150 : vector<72x128xf32> to vector<72x128xbf16>
    %cst_46 = arith.constant dense<0.000000e+00> : vector<16x128xf32>
    %152 = tpu.matmul %92, %151, %cst_46 {dimension_numbers = #tpu.dot_dimension_numbers<[1], [0], [0], [1], [0, 0, 1, 1], [], []>} : vector<16x72xbf16>, vector<72x128xbf16>, vector<16x128xf32> -> vector<16x128xf32>
    %153 = vector.broadcast %93 : vector<16x1xf32> to vector<16x128xf32>
    %154 = arith.addf %152, %153 : vector<16x128xf32>
    %cst_47 = arith.constant 0.000000e+00 : f32
    %155 = vector.broadcast %cst_47 : f32 to vector<16x128xf32>
    %156 = arith.maximumf %154, %155 : vector<16x128xf32>
    %cst_48 = arith.constant dense<0.000000e+00> : vector<16xf32>
    %157 = vector.multi_reduction <add>, %156, %cst_48 [1] : vector<16x128xf32> to vector<16xf32>
    %158 = vector.shape_cast %157 : vector<16xf32> to vector<16x1xf32>
    %cst_49 = arith.constant 7.812500e-03 : f32
    %159 = vector.broadcast %cst_49 : f32 to vector<16x1xf32>
    %160 = arith.mulf %158, %159 : vector<16x1xf32>
    %161 = arith.mulf %156, %156 : vector<16x128xf32>
    %cst_50 = arith.constant dense<0.000000e+00> : vector<16xf32>
    %162 = vector.multi_reduction <add>, %161, %cst_50 [1] : vector<16x128xf32> to vector<16xf32>
    %163 = vector.shape_cast %162 : vector<16xf32> to vector<16x1xf32>
    %cst_51 = arith.constant 7.812500e-03 : f32
    %164 = vector.broadcast %cst_51 : f32 to vector<16x1xf32>
    %165 = arith.mulf %163, %164 : vector<16x1xf32>
    %166 = arith.mulf %160, %160 : vector<16x1xf32>
    %167 = arith.subf %165, %166 : vector<16x1xf32>
    %cst_52 = arith.constant 0.000000e+00 : f32
    %168 = vector.broadcast %cst_52 : f32 to vector<16x1xf32>
    %169 = arith.maximumf %167, %168 : vector<16x1xf32>
    %170 = vector.broadcast %160 : vector<16x1xf32> to vector<16x128xf32>
    %171 = arith.subf %156, %170 : vector<16x128xf32>
    %cst_53 = arith.constant 9.99999974E-6 : f32
    %172 = vector.broadcast %cst_53 : f32 to vector<16x1xf32>
    %173 = arith.addf %169, %172 : vector<16x1xf32>
    %174 = math.rsqrt %173 : vector<16x1xf32>
    %175 = vector.broadcast %174 : vector<16x1xf32> to vector<16x128xf32>
    %176 = arith.mulf %171, %175 : vector<16x128xf32>
    %c0_54 = arith.constant 0 : index
    %c0_55 = arith.constant 0 : index
    %177 = vector.load %arg5[%c0_54, %c0_55] : memref<128x32xbf16, #tpu.memory_space<vmem>>, vector<128x32xbf16>
    %cst_56 = arith.constant 0.000000e+00 : f32
    %178 = vector.broadcast %cst_56 : f32 to vector<16x1xf32>
    %179 = vector.extract_strided_slice %176 {offsets = [0, 1], sizes = [16, 127], strides = [1, 1]} : vector<16x128xf32> to vector<16x127xf32>
    %180 = tpu.concatenate %179, %178 in 1 : vector<16x127xf32>, vector<16x1xf32> -> vector<16x128xf32>
    %181 = arith.maximumf %176, %180 : vector<16x128xf32>
    %cst_57 = arith.constant 0.000000e+00 : f32
    %182 = vector.broadcast %cst_57 : f32 to vector<16x8xf32>
    %183 = vector.extract_strided_slice %181 {offsets = [0, 8], sizes = [16, 120], strides = [1, 1]} : vector<16x128xf32> to vector<16x120xf32>
    %184 = tpu.concatenate %183, %182 in 1 : vector<16x120xf32>, vector<16x8xf32> -> vector<16x128xf32>
    %185 = arith.maximumf %181, %184 : vector<16x128xf32>
    %186 = arith.truncf %185 : vector<16x128xf32> to vector<16x128xbf16>
    %cst_58 = arith.constant dense<0.000000e+00> : vector<16x32xf32>
    %187 = tpu.matmul %186, %177, %cst_58 {dimension_numbers = #tpu.dot_dimension_numbers<[1], [0], [0], [1], [0, 0, 1, 1], [], []>} : vector<16x128xbf16>, vector<128x32xbf16>, vector<16x32xf32> -> vector<16x32xf32>
    %c0_59 = arith.constant 0 : index
    %c0_60 = arith.constant 0 : index
    %188 = vector.load %arg12[%c0_59, %c0_60] : memref<32x144xbf16, #tpu.memory_space<vmem>>, vector<32x144xbf16>
    %c0_61 = arith.constant 0 : index
    %c0_62 = arith.constant 0 : index
    %189 = vector.load %arg13[%c0_61, %c0_62] : memref<32x1xf32, #tpu.memory_space<vmem>>, vector<32x1xf32>
    %cst_63 = arith.constant 0.000000e+00 : f32
    %190 = vector.broadcast %cst_63 : f32 to vector<16x5xf32>
    %191 = vector.extract_strided_slice %187 {offsets = [0, 0], sizes = [16, 27], strides = [1, 1]} : vector<16x32xf32> to vector<16x27xf32>
    %192 = tpu.concatenate %190, %191 in 1 : vector<16x5xf32>, vector<16x27xf32> -> vector<16x32xf32>
    %193 = vector.extract_strided_slice %2 {offsets = [0, 0, 0], sizes = [1, 1, 32], strides = [1, 1, 1]} : vector<9x1x32xf32> to vector<1x1x32xf32>
    %194 = vector.shape_cast %193 : vector<1x1x32xf32> to vector<1x32xf32>
    %195 = vector.broadcast %194 : vector<1x32xf32> to vector<16x32xf32>
    %196 = arith.mulf %192, %195 : vector<16x32xf32>
    %cst_64 = arith.constant 0.000000e+00 : f32
    %197 = vector.broadcast %cst_64 : f32 to vector<16x4xf32>
    %198 = vector.extract_strided_slice %187 {offsets = [0, 0], sizes = [16, 28], strides = [1, 1]} : vector<16x32xf32> to vector<16x28xf32>
    %199 = tpu.concatenate %197, %198 in 1 : vector<16x4xf32>, vector<16x28xf32> -> vector<16x32xf32>
    %200 = vector.extract_strided_slice %2 {offsets = [1, 0, 0], sizes = [1, 1, 32], strides = [1, 1, 1]} : vector<9x1x32xf32> to vector<1x1x32xf32>
    %201 = vector.shape_cast %200 : vector<1x1x32xf32> to vector<1x32xf32>
    %202 = vector.broadcast %201 : vector<1x32xf32> to vector<16x32xf32>
    %203 = arith.mulf %199, %202 : vector<16x32xf32>
    %cst_65 = arith.constant 0.000000e+00 : f32
    %204 = vector.broadcast %cst_65 : f32 to vector<16x3xf32>
    %205 = vector.extract_strided_slice %187 {offsets = [0, 0], sizes = [16, 29], strides = [1, 1]} : vector<16x32xf32> to vector<16x29xf32>
    %206 = tpu.concatenate %204, %205 in 1 : vector<16x3xf32>, vector<16x29xf32> -> vector<16x32xf32>
    %207 = vector.extract_strided_slice %2 {offsets = [2, 0, 0], sizes = [1, 1, 32], strides = [1, 1, 1]} : vector<9x1x32xf32> to vector<1x1x32xf32>
    %208 = vector.shape_cast %207 : vector<1x1x32xf32> to vector<1x32xf32>
    %209 = vector.broadcast %208 : vector<1x32xf32> to vector<16x32xf32>
    %210 = arith.mulf %206, %209 : vector<16x32xf32>
    %cst_66 = arith.constant 0.000000e+00 : f32
    %211 = vector.broadcast %cst_66 : f32 to vector<16x1xf32>
    %212 = vector.extract_strided_slice %187 {offsets = [0, 0], sizes = [16, 31], strides = [1, 1]} : vector<16x32xf32> to vector<16x31xf32>
    %213 = tpu.concatenate %211, %212 in 1 : vector<16x1xf32>, vector<16x31xf32> -> vector<16x32xf32>
    %214 = vector.extract_strided_slice %2 {offsets = [3, 0, 0], sizes = [1, 1, 32], strides = [1, 1, 1]} : vector<9x1x32xf32> to vector<1x1x32xf32>
    %215 = vector.shape_cast %214 : vector<1x1x32xf32> to vector<1x32xf32>
    %216 = vector.broadcast %215 : vector<1x32xf32> to vector<16x32xf32>
    %217 = arith.mulf %213, %216 : vector<16x32xf32>
    %cst_67 = arith.constant 0.000000e+00 : f32
    %218 = vector.broadcast %cst_67 : f32 to vector<16x1xf32>
    %219 = vector.extract_strided_slice %187 {offsets = [0, 1], sizes = [16, 31], strides = [1, 1]} : vector<16x32xf32> to vector<16x31xf32>
    %220 = tpu.concatenate %219, %218 in 1 : vector<16x31xf32>, vector<16x1xf32> -> vector<16x32xf32>
    %221 = vector.extract_strided_slice %2 {offsets = [5, 0, 0], sizes = [1, 1, 32], strides = [1, 1, 1]} : vector<9x1x32xf32> to vector<1x1x32xf32>
    %222 = vector.shape_cast %221 : vector<1x1x32xf32> to vector<1x32xf32>
    %223 = vector.broadcast %222 : vector<1x32xf32> to vector<16x32xf32>
    %224 = arith.mulf %220, %223 : vector<16x32xf32>
    %cst_68 = arith.constant 0.000000e+00 : f32
    %225 = vector.broadcast %cst_68 : f32 to vector<16x3xf32>
    %226 = vector.extract_strided_slice %187 {offsets = [0, 3], sizes = [16, 29], strides = [1, 1]} : vector<16x32xf32> to vector<16x29xf32>
    %227 = tpu.concatenate %226, %225 in 1 : vector<16x29xf32>, vector<16x3xf32> -> vector<16x32xf32>
    %228 = vector.extract_strided_slice %2 {offsets = [6, 0, 0], sizes = [1, 1, 32], strides = [1, 1, 1]} : vector<9x1x32xf32> to vector<1x1x32xf32>
    %229 = vector.shape_cast %228 : vector<1x1x32xf32> to vector<1x32xf32>
    %230 = vector.broadcast %229 : vector<1x32xf32> to vector<16x32xf32>
    %231 = arith.mulf %227, %230 : vector<16x32xf32>
    %cst_69 = arith.constant 0.000000e+00 : f32
    %232 = vector.broadcast %cst_69 : f32 to vector<16x4xf32>
    %233 = vector.extract_strided_slice %187 {offsets = [0, 4], sizes = [16, 28], strides = [1, 1]} : vector<16x32xf32> to vector<16x28xf32>
    %234 = tpu.concatenate %233, %232 in 1 : vector<16x28xf32>, vector<16x4xf32> -> vector<16x32xf32>
    %235 = vector.extract_strided_slice %2 {offsets = [7, 0, 0], sizes = [1, 1, 32], strides = [1, 1, 1]} : vector<9x1x32xf32> to vector<1x1x32xf32>
    %236 = vector.shape_cast %235 : vector<1x1x32xf32> to vector<1x32xf32>
    %237 = vector.broadcast %236 : vector<1x32xf32> to vector<16x32xf32>
    %238 = arith.mulf %234, %237 : vector<16x32xf32>
    %cst_70 = arith.constant 0.000000e+00 : f32
    %239 = vector.broadcast %cst_70 : f32 to vector<16x5xf32>
    %240 = vector.extract_strided_slice %187 {offsets = [0, 5], sizes = [16, 27], strides = [1, 1]} : vector<16x32xf32> to vector<16x27xf32>
    %241 = tpu.concatenate %240, %239 in 1 : vector<16x27xf32>, vector<16x5xf32> -> vector<16x32xf32>
    %242 = vector.extract_strided_slice %2 {offsets = [8, 0, 0], sizes = [1, 1, 32], strides = [1, 1, 1]} : vector<9x1x32xf32> to vector<1x1x32xf32>
    %243 = vector.shape_cast %242 : vector<1x1x32xf32> to vector<1x32xf32>
    %244 = vector.broadcast %243 : vector<1x32xf32> to vector<16x32xf32>
    %245 = arith.mulf %241, %244 : vector<16x32xf32>
    %246 = tpu.concatenate %196, %203, %210, %217, %187, %224, %231, %238, %245 in 0 : vector<16x32xf32>, vector<16x32xf32>, vector<16x32xf32>, vector<16x32xf32>, vector<16x32xf32>, vector<16x32xf32>, vector<16x32xf32>, vector<16x32xf32>, vector<16x32xf32> -> vector<144x32xf32>
    %247 = arith.truncf %246 : vector<144x32xf32> to vector<144x32xbf16>
    %cst_71 = arith.constant dense<0.000000e+00> : vector<32x32xf32>
    %248 = tpu.matmul %188, %247, %cst_71 {dimension_numbers = #tpu.dot_dimension_numbers<[1], [0], [0], [1], [0, 0, 1, 1], [], []>} : vector<32x144xbf16>, vector<144x32xbf16>, vector<32x32xf32> -> vector<32x32xf32>
    %249 = vector.broadcast %189 : vector<32x1xf32> to vector<32x32xf32>
    %250 = arith.addf %248, %249 : vector<32x32xf32>
    %cst_72 = arith.constant 0.000000e+00 : f32
    %251 = vector.broadcast %cst_72 : f32 to vector<32x32xf32>
    %252 = arith.maximumf %250, %251 : vector<32x32xf32>
    %cst_73 = arith.constant dense<0.000000e+00> : vector<32xf32>
    %253 = vector.multi_reduction <add>, %252, %cst_73 [1] : vector<32x32xf32> to vector<32xf32>
    %254 = vector.shape_cast %253 : vector<32xf32> to vector<32x1xf32>
    %cst_74 = arith.constant 3.125000e-02 : f32
    %255 = vector.broadcast %cst_74 : f32 to vector<32x1xf32>
    %256 = arith.mulf %254, %255 : vector<32x1xf32>
    %257 = arith.mulf %252, %252 : vector<32x32xf32>
    %cst_75 = arith.constant dense<0.000000e+00> : vector<32xf32>
    %258 = vector.multi_reduction <add>, %257, %cst_75 [1] : vector<32x32xf32> to vector<32xf32>
    %259 = vector.shape_cast %258 : vector<32xf32> to vector<32x1xf32>
    %cst_76 = arith.constant 3.125000e-02 : f32
    %260 = vector.broadcast %cst_76 : f32 to vector<32x1xf32>
    %261 = arith.mulf %259, %260 : vector<32x1xf32>
    %262 = arith.mulf %256, %256 : vector<32x1xf32>
    %263 = arith.subf %261, %262 : vector<32x1xf32>
    %cst_77 = arith.constant 0.000000e+00 : f32
    %264 = vector.broadcast %cst_77 : f32 to vector<32x1xf32>
    %265 = arith.maximumf %263, %264 : vector<32x1xf32>
    %266 = vector.broadcast %256 : vector<32x1xf32> to vector<32x32xf32>
    %267 = arith.subf %252, %266 : vector<32x32xf32>
    %cst_78 = arith.constant 9.99999974E-6 : f32
    %268 = vector.broadcast %cst_78 : f32 to vector<32x1xf32>
    %269 = arith.addf %265, %268 : vector<32x1xf32>
    %270 = math.rsqrt %269 : vector<32x1xf32>
    %271 = vector.broadcast %270 : vector<32x1xf32> to vector<32x32xf32>
    %272 = arith.mulf %267, %271 : vector<32x32xf32>
    %c0_79 = arith.constant 0 : index
    %c0_80 = arith.constant 0 : index
    %273 = vector.load %arg20[%c0_79, %c0_80] : memref<64x288xbf16, #tpu.memory_space<vmem>>, vector<64x288xbf16>
    %c0_81 = arith.constant 0 : index
    %c0_82 = arith.constant 0 : index
    %274 = vector.load %arg21[%c0_81, %c0_82] : memref<16x1xf32, #tpu.memory_space<vmem>>, vector<16x1xf32>
    %cst_83 = arith.constant 0.000000e+00 : f32
    %275 = vector.broadcast %cst_83 : f32 to vector<32x5xf32>
    %276 = vector.extract_strided_slice %272 {offsets = [0, 0], sizes = [32, 27], strides = [1, 1]} : vector<32x32xf32> to vector<32x27xf32>
    %277 = tpu.concatenate %275, %276 in 1 : vector<32x5xf32>, vector<32x27xf32> -> vector<32x32xf32>
    %278 = vector.extract_strided_slice %2 {offsets = [0, 0, 0], sizes = [1, 1, 32], strides = [1, 1, 1]} : vector<9x1x32xf32> to vector<1x1x32xf32>
    %279 = vector.shape_cast %278 : vector<1x1x32xf32> to vector<1x32xf32>
    %280 = vector.broadcast %279 : vector<1x32xf32> to vector<32x32xf32>
    %281 = arith.mulf %277, %280 : vector<32x32xf32>
    %cst_84 = arith.constant 0.000000e+00 : f32
    %282 = vector.broadcast %cst_84 : f32 to vector<32x4xf32>
    %283 = vector.extract_strided_slice %272 {offsets = [0, 0], sizes = [32, 28], strides = [1, 1]} : vector<32x32xf32> to vector<32x28xf32>
    %284 = tpu.concatenate %282, %283 in 1 : vector<32x4xf32>, vector<32x28xf32> -> vector<32x32xf32>
    %285 = vector.extract_strided_slice %2 {offsets = [1, 0, 0], sizes = [1, 1, 32], strides = [1, 1, 1]} : vector<9x1x32xf32> to vector<1x1x32xf32>
    %286 = vector.shape_cast %285 : vector<1x1x32xf32> to vector<1x32xf32>
    %287 = vector.broadcast %286 : vector<1x32xf32> to vector<32x32xf32>
    %288 = arith.mulf %284, %287 : vector<32x32xf32>
    %cst_85 = arith.constant 0.000000e+00 : f32
    %289 = vector.broadcast %cst_85 : f32 to vector<32x3xf32>
    %290 = vector.extract_strided_slice %272 {offsets = [0, 0], sizes = [32, 29], strides = [1, 1]} : vector<32x32xf32> to vector<32x29xf32>
    %291 = tpu.concatenate %289, %290 in 1 : vector<32x3xf32>, vector<32x29xf32> -> vector<32x32xf32>
    %292 = vector.extract_strided_slice %2 {offsets = [2, 0, 0], sizes = [1, 1, 32], strides = [1, 1, 1]} : vector<9x1x32xf32> to vector<1x1x32xf32>
    %293 = vector.shape_cast %292 : vector<1x1x32xf32> to vector<1x32xf32>
    %294 = vector.broadcast %293 : vector<1x32xf32> to vector<32x32xf32>
    %295 = arith.mulf %291, %294 : vector<32x32xf32>
    %cst_86 = arith.constant 0.000000e+00 : f32
    %296 = vector.broadcast %cst_86 : f32 to vector<32x1xf32>
    %297 = vector.extract_strided_slice %272 {offsets = [0, 0], sizes = [32, 31], strides = [1, 1]} : vector<32x32xf32> to vector<32x31xf32>
    %298 = tpu.concatenate %296, %297 in 1 : vector<32x1xf32>, vector<32x31xf32> -> vector<32x32xf32>
    %299 = vector.extract_strided_slice %2 {offsets = [3, 0, 0], sizes = [1, 1, 32], strides = [1, 1, 1]} : vector<9x1x32xf32> to vector<1x1x32xf32>
    %300 = vector.shape_cast %299 : vector<1x1x32xf32> to vector<1x32xf32>
    %301 = vector.broadcast %300 : vector<1x32xf32> to vector<32x32xf32>
    %302 = arith.mulf %298, %301 : vector<32x32xf32>
    %cst_87 = arith.constant 0.000000e+00 : f32
    %303 = vector.broadcast %cst_87 : f32 to vector<32x1xf32>
    %304 = vector.extract_strided_slice %272 {offsets = [0, 1], sizes = [32, 31], strides = [1, 1]} : vector<32x32xf32> to vector<32x31xf32>
    %305 = tpu.concatenate %304, %303 in 1 : vector<32x31xf32>, vector<32x1xf32> -> vector<32x32xf32>
    %306 = vector.extract_strided_slice %2 {offsets = [5, 0, 0], sizes = [1, 1, 32], strides = [1, 1, 1]} : vector<9x1x32xf32> to vector<1x1x32xf32>
    %307 = vector.shape_cast %306 : vector<1x1x32xf32> to vector<1x32xf32>
    %308 = vector.broadcast %307 : vector<1x32xf32> to vector<32x32xf32>
    %309 = arith.mulf %305, %308 : vector<32x32xf32>
    %cst_88 = arith.constant 0.000000e+00 : f32
    %310 = vector.broadcast %cst_88 : f32 to vector<32x3xf32>
    %311 = vector.extract_strided_slice %272 {offsets = [0, 3], sizes = [32, 29], strides = [1, 1]} : vector<32x32xf32> to vector<32x29xf32>
    %312 = tpu.concatenate %311, %310 in 1 : vector<32x29xf32>, vector<32x3xf32> -> vector<32x32xf32>
    %313 = vector.extract_strided_slice %2 {offsets = [6, 0, 0], sizes = [1, 1, 32], strides = [1, 1, 1]} : vector<9x1x32xf32> to vector<1x1x32xf32>
    %314 = vector.shape_cast %313 : vector<1x1x32xf32> to vector<1x32xf32>
    %315 = vector.broadcast %314 : vector<1x32xf32> to vector<32x32xf32>
    %316 = arith.mulf %312, %315 : vector<32x32xf32>
    %cst_89 = arith.constant 0.000000e+00 : f32
    %317 = vector.broadcast %cst_89 : f32 to vector<32x4xf32>
    %318 = vector.extract_strided_slice %272 {offsets = [0, 4], sizes = [32, 28], strides = [1, 1]} : vector<32x32xf32> to vector<32x28xf32>
    %319 = tpu.concatenate %318, %317 in 1 : vector<32x28xf32>, vector<32x4xf32> -> vector<32x32xf32>
    %320 = vector.extract_strided_slice %2 {offsets = [7, 0, 0], sizes = [1, 1, 32], strides = [1, 1, 1]} : vector<9x1x32xf32> to vector<1x1x32xf32>
    %321 = vector.shape_cast %320 : vector<1x1x32xf32> to vector<1x32xf32>
    %322 = vector.broadcast %321 : vector<1x32xf32> to vector<32x32xf32>
    %323 = arith.mulf %319, %322 : vector<32x32xf32>
    %cst_90 = arith.constant 0.000000e+00 : f32
    %324 = vector.broadcast %cst_90 : f32 to vector<32x5xf32>
    %325 = vector.extract_strided_slice %272 {offsets = [0, 5], sizes = [32, 27], strides = [1, 1]} : vector<32x32xf32> to vector<32x27xf32>
    %326 = tpu.concatenate %325, %324 in 1 : vector<32x27xf32>, vector<32x5xf32> -> vector<32x32xf32>
    %327 = vector.extract_strided_slice %2 {offsets = [8, 0, 0], sizes = [1, 1, 32], strides = [1, 1, 1]} : vector<9x1x32xf32> to vector<1x1x32xf32>
    %328 = vector.shape_cast %327 : vector<1x1x32xf32> to vector<1x32xf32>
    %329 = vector.broadcast %328 : vector<1x32xf32> to vector<32x32xf32>
    %330 = arith.mulf %326, %329 : vector<32x32xf32>
    %331 = tpu.concatenate %281, %288, %295, %302, %272, %309, %316, %323, %330 in 0 : vector<32x32xf32>, vector<32x32xf32>, vector<32x32xf32>, vector<32x32xf32>, vector<32x32xf32>, vector<32x32xf32>, vector<32x32xf32>, vector<32x32xf32>, vector<32x32xf32> -> vector<288x32xf32>
    %332 = arith.truncf %331 : vector<288x32xf32> to vector<288x32xbf16>
    %cst_91 = arith.constant dense<0.000000e+00> : vector<64x32xf32>
    %333 = tpu.matmul %273, %332, %cst_91 {dimension_numbers = #tpu.dot_dimension_numbers<[1], [0], [0], [1], [0, 0, 1, 1], [], []>} : vector<64x288xbf16>, vector<288x32xbf16>, vector<64x32xf32> -> vector<64x32xf32>
    %334 = vector.extract_strided_slice %333 {offsets = [0, 0], sizes = [16, 32], strides = [1, 1]} : vector<64x32xf32> to vector<16x32xf32>
    %335 = arith.truncf %334 : vector<16x32xf32> to vector<16x32xbf16>
    %c0_92 = arith.constant 0 : index
    %c0_93 = arith.constant 0 : index
    %c0_94 = arith.constant 0 : index
    %336 = vector.load %arg6[%c0_92, %c0_93, %c0_94] : memref<4x32x128xbf16, #tpu.memory_space<vmem>>, vector<1x32x128xbf16>
    %337 = vector.shape_cast %336 : vector<1x32x128xbf16> to vector<32x128xbf16>
    %cst_95 = arith.constant dense<0.000000e+00> : vector<16x128xf32>
    %338 = tpu.matmul %335, %337, %cst_95 {dimension_numbers = #tpu.dot_dimension_numbers<[1], [0], [0], [1], [0, 0, 1, 1], [], []>} : vector<16x32xbf16>, vector<32x128xbf16>, vector<16x128xf32> -> vector<16x128xf32>
    %339 = vector.extract_strided_slice %333 {offsets = [16, 0], sizes = [16, 32], strides = [1, 1]} : vector<64x32xf32> to vector<16x32xf32>
    %340 = arith.truncf %339 : vector<16x32xf32> to vector<16x32xbf16>
    %c1 = arith.constant 1 : index
    %c0_96 = arith.constant 0 : index
    %c0_97 = arith.constant 0 : index
    %341 = vector.load %arg6[%c1, %c0_96, %c0_97] : memref<4x32x128xbf16, #tpu.memory_space<vmem>>, vector<1x32x128xbf16>
    %342 = vector.shape_cast %341 : vector<1x32x128xbf16> to vector<32x128xbf16>
    %cst_98 = arith.constant dense<0.000000e+00> : vector<16x128xf32>
    %343 = tpu.matmul %340, %342, %cst_98 {dimension_numbers = #tpu.dot_dimension_numbers<[1], [0], [0], [1], [0, 0, 1, 1], [], []>} : vector<16x32xbf16>, vector<32x128xbf16>, vector<16x128xf32> -> vector<16x128xf32>
    %344 = arith.addf %338, %343 : vector<16x128xf32>
    %345 = vector.extract_strided_slice %333 {offsets = [32, 0], sizes = [16, 32], strides = [1, 1]} : vector<64x32xf32> to vector<16x32xf32>
    %346 = arith.truncf %345 : vector<16x32xf32> to vector<16x32xbf16>
    %c2 = arith.constant 2 : index
    %c0_99 = arith.constant 0 : index
    %c0_100 = arith.constant 0 : index
    %347 = vector.load %arg6[%c2, %c0_99, %c0_100] : memref<4x32x128xbf16, #tpu.memory_space<vmem>>, vector<1x32x128xbf16>
    %348 = vector.shape_cast %347 : vector<1x32x128xbf16> to vector<32x128xbf16>
    %cst_101 = arith.constant dense<0.000000e+00> : vector<16x128xf32>
    %349 = tpu.matmul %346, %348, %cst_101 {dimension_numbers = #tpu.dot_dimension_numbers<[1], [0], [0], [1], [0, 0, 1, 1], [], []>} : vector<16x32xbf16>, vector<32x128xbf16>, vector<16x128xf32> -> vector<16x128xf32>
    %350 = arith.addf %344, %349 : vector<16x128xf32>
    %351 = vector.extract_strided_slice %333 {offsets = [48, 0], sizes = [16, 32], strides = [1, 1]} : vector<64x32xf32> to vector<16x32xf32>
    %352 = arith.truncf %351 : vector<16x32xf32> to vector<16x32xbf16>
    %c3 = arith.constant 3 : index
    %c0_102 = arith.constant 0 : index
    %c0_103 = arith.constant 0 : index
    %353 = vector.load %arg6[%c3, %c0_102, %c0_103] : memref<4x32x128xbf16, #tpu.memory_space<vmem>>, vector<1x32x128xbf16>
    %354 = vector.shape_cast %353 : vector<1x32x128xbf16> to vector<32x128xbf16>
    %cst_104 = arith.constant dense<0.000000e+00> : vector<16x128xf32>
    %355 = tpu.matmul %352, %354, %cst_104 {dimension_numbers = #tpu.dot_dimension_numbers<[1], [0], [0], [1], [0, 0, 1, 1], [], []>} : vector<16x32xbf16>, vector<32x128xbf16>, vector<16x128xf32> -> vector<16x128xf32>
    %356 = arith.addf %350, %355 : vector<16x128xf32>
    %357 = vector.broadcast %274 : vector<16x1xf32> to vector<16x128xf32>
    %358 = arith.addf %356, %357 : vector<16x128xf32>
    %359 = tpu.concatenate %358, %176 in 0 : vector<16x128xf32>, vector<16x128xf32> -> vector<32x128xf32>
    %c0_105 = arith.constant 0 : index
    %c0_106 = arith.constant 0 : index
    %360 = vector.load %arg14[%c0_105, %c0_106] : memref<16x288xbf16, #tpu.memory_space<vmem>>, vector<16x288xbf16>
    %c0_107 = arith.constant 0 : index
    %c0_108 = arith.constant 0 : index
    %361 = vector.load %arg15[%c0_107, %c0_108] : memref<16x1xf32, #tpu.memory_space<vmem>>, vector<16x1xf32>
    %cst_109 = arith.constant 0.000000e+00 : f32
    %362 = vector.broadcast %cst_109 : f32 to vector<32x9xf32>
    %363 = vector.extract_strided_slice %359 {offsets = [0, 0], sizes = [32, 119], strides = [1, 1]} : vector<32x128xf32> to vector<32x119xf32>
    %364 = tpu.concatenate %362, %363 in 1 : vector<32x9xf32>, vector<32x119xf32> -> vector<32x128xf32>
    %365 = vector.extract_strided_slice %1 {offsets = [0, 0, 0], sizes = [1, 1, 128], strides = [1, 1, 1]} : vector<9x1x128xf32> to vector<1x1x128xf32>
    %366 = vector.shape_cast %365 : vector<1x1x128xf32> to vector<1x128xf32>
    %367 = vector.broadcast %366 : vector<1x128xf32> to vector<32x128xf32>
    %368 = arith.mulf %364, %367 : vector<32x128xf32>
    %cst_110 = arith.constant 0.000000e+00 : f32
    %369 = vector.broadcast %cst_110 : f32 to vector<32x8xf32>
    %370 = vector.extract_strided_slice %359 {offsets = [0, 0], sizes = [32, 120], strides = [1, 1]} : vector<32x128xf32> to vector<32x120xf32>
    %371 = tpu.concatenate %369, %370 in 1 : vector<32x8xf32>, vector<32x120xf32> -> vector<32x128xf32>
    %372 = vector.extract_strided_slice %1 {offsets = [1, 0, 0], sizes = [1, 1, 128], strides = [1, 1, 1]} : vector<9x1x128xf32> to vector<1x1x128xf32>
    %373 = vector.shape_cast %372 : vector<1x1x128xf32> to vector<1x128xf32>
    %374 = vector.broadcast %373 : vector<1x128xf32> to vector<32x128xf32>
    %375 = arith.mulf %371, %374 : vector<32x128xf32>
    %cst_111 = arith.constant 0.000000e+00 : f32
    %376 = vector.broadcast %cst_111 : f32 to vector<32x7xf32>
    %377 = vector.extract_strided_slice %359 {offsets = [0, 0], sizes = [32, 121], strides = [1, 1]} : vector<32x128xf32> to vector<32x121xf32>
    %378 = tpu.concatenate %376, %377 in 1 : vector<32x7xf32>, vector<32x121xf32> -> vector<32x128xf32>
    %379 = vector.extract_strided_slice %1 {offsets = [2, 0, 0], sizes = [1, 1, 128], strides = [1, 1, 1]} : vector<9x1x128xf32> to vector<1x1x128xf32>
    %380 = vector.shape_cast %379 : vector<1x1x128xf32> to vector<1x128xf32>
    %381 = vector.broadcast %380 : vector<1x128xf32> to vector<32x128xf32>
    %382 = arith.mulf %378, %381 : vector<32x128xf32>
    %cst_112 = arith.constant 0.000000e+00 : f32
    %383 = vector.broadcast %cst_112 : f32 to vector<32x1xf32>
    %384 = vector.extract_strided_slice %359 {offsets = [0, 0], sizes = [32, 127], strides = [1, 1]} : vector<32x128xf32> to vector<32x127xf32>
    %385 = tpu.concatenate %383, %384 in 1 : vector<32x1xf32>, vector<32x127xf32> -> vector<32x128xf32>
    %386 = vector.extract_strided_slice %1 {offsets = [3, 0, 0], sizes = [1, 1, 128], strides = [1, 1, 1]} : vector<9x1x128xf32> to vector<1x1x128xf32>
    %387 = vector.shape_cast %386 : vector<1x1x128xf32> to vector<1x128xf32>
    %388 = vector.broadcast %387 : vector<1x128xf32> to vector<32x128xf32>
    %389 = arith.mulf %385, %388 : vector<32x128xf32>
    %cst_113 = arith.constant 0.000000e+00 : f32
    %390 = vector.broadcast %cst_113 : f32 to vector<32x1xf32>
    %391 = vector.extract_strided_slice %359 {offsets = [0, 1], sizes = [32, 127], strides = [1, 1]} : vector<32x128xf32> to vector<32x127xf32>
    %392 = tpu.concatenate %391, %390 in 1 : vector<32x127xf32>, vector<32x1xf32> -> vector<32x128xf32>
    %393 = vector.extract_strided_slice %1 {offsets = [5, 0, 0], sizes = [1, 1, 128], strides = [1, 1, 1]} : vector<9x1x128xf32> to vector<1x1x128xf32>
    %394 = vector.shape_cast %393 : vector<1x1x128xf32> to vector<1x128xf32>
    %395 = vector.broadcast %394 : vector<1x128xf32> to vector<32x128xf32>
    %396 = arith.mulf %392, %395 : vector<32x128xf32>
    %cst_114 = arith.constant 0.000000e+00 : f32
    %397 = vector.broadcast %cst_114 : f32 to vector<32x7xf32>
    %398 = vector.extract_strided_slice %359 {offsets = [0, 7], sizes = [32, 121], strides = [1, 1]} : vector<32x128xf32> to vector<32x121xf32>
    %399 = tpu.concatenate %398, %397 in 1 : vector<32x121xf32>, vector<32x7xf32> -> vector<32x128xf32>
    %400 = vector.extract_strided_slice %1 {offsets = [6, 0, 0], sizes = [1, 1, 128], strides = [1, 1, 1]} : vector<9x1x128xf32> to vector<1x1x128xf32>
    %401 = vector.shape_cast %400 : vector<1x1x128xf32> to vector<1x128xf32>
    %402 = vector.broadcast %401 : vector<1x128xf32> to vector<32x128xf32>
    %403 = arith.mulf %399, %402 : vector<32x128xf32>
    %cst_115 = arith.constant 0.000000e+00 : f32
    %404 = vector.broadcast %cst_115 : f32 to vector<32x8xf32>
    %405 = vector.extract_strided_slice %359 {offsets = [0, 8], sizes = [32, 120], strides = [1, 1]} : vector<32x128xf32> to vector<32x120xf32>
    %406 = tpu.concatenate %405, %404 in 1 : vector<32x120xf32>, vector<32x8xf32> -> vector<32x128xf32>
    %407 = vector.extract_strided_slice %1 {offsets = [7, 0, 0], sizes = [1, 1, 128], strides = [1, 1, 1]} : vector<9x1x128xf32> to vector<1x1x128xf32>
    %408 = vector.shape_cast %407 : vector<1x1x128xf32> to vector<1x128xf32>
    %409 = vector.broadcast %408 : vector<1x128xf32> to vector<32x128xf32>
    %410 = arith.mulf %406, %409 : vector<32x128xf32>
    %cst_116 = arith.constant 0.000000e+00 : f32
    %411 = vector.broadcast %cst_116 : f32 to vector<32x9xf32>
    %412 = vector.extract_strided_slice %359 {offsets = [0, 9], sizes = [32, 119], strides = [1, 1]} : vector<32x128xf32> to vector<32x119xf32>
    %413 = tpu.concatenate %412, %411 in 1 : vector<32x119xf32>, vector<32x9xf32> -> vector<32x128xf32>
    %414 = vector.extract_strided_slice %1 {offsets = [8, 0, 0], sizes = [1, 1, 128], strides = [1, 1, 1]} : vector<9x1x128xf32> to vector<1x1x128xf32>
    %415 = vector.shape_cast %414 : vector<1x1x128xf32> to vector<1x128xf32>
    %416 = vector.broadcast %415 : vector<1x128xf32> to vector<32x128xf32>
    %417 = arith.mulf %413, %416 : vector<32x128xf32>
    %418 = tpu.concatenate %368, %375, %382, %389, %359, %396, %403, %410, %417 in 0 : vector<32x128xf32>, vector<32x128xf32>, vector<32x128xf32>, vector<32x128xf32>, vector<32x128xf32>, vector<32x128xf32>, vector<32x128xf32>, vector<32x128xf32>, vector<32x128xf32> -> vector<288x128xf32>
    %419 = arith.truncf %418 : vector<288x128xf32> to vector<288x128xbf16>
    %cst_117 = arith.constant dense<0.000000e+00> : vector<16x128xf32>
    %420 = tpu.matmul %360, %419, %cst_117 {dimension_numbers = #tpu.dot_dimension_numbers<[1], [0], [0], [1], [0, 0, 1, 1], [], []>} : vector<16x288xbf16>, vector<288x128xbf16>, vector<16x128xf32> -> vector<16x128xf32>
    %421 = vector.broadcast %361 : vector<16x1xf32> to vector<16x128xf32>
    %422 = arith.addf %420, %421 : vector<16x128xf32>
    %cst_118 = arith.constant 0.000000e+00 : f32
    %423 = vector.broadcast %cst_118 : f32 to vector<16x128xf32>
    %424 = arith.maximumf %422, %423 : vector<16x128xf32>
    %cst_119 = arith.constant dense<0.000000e+00> : vector<16xf32>
    %425 = vector.multi_reduction <add>, %424, %cst_119 [1] : vector<16x128xf32> to vector<16xf32>
    %426 = vector.shape_cast %425 : vector<16xf32> to vector<16x1xf32>
    %cst_120 = arith.constant 7.812500e-03 : f32
    %427 = vector.broadcast %cst_120 : f32 to vector<16x1xf32>
    %428 = arith.mulf %426, %427 : vector<16x1xf32>
    %429 = arith.mulf %424, %424 : vector<16x128xf32>
    %cst_121 = arith.constant dense<0.000000e+00> : vector<16xf32>
    %430 = vector.multi_reduction <add>, %429, %cst_121 [1] : vector<16x128xf32> to vector<16xf32>
    %431 = vector.shape_cast %430 : vector<16xf32> to vector<16x1xf32>
    %cst_122 = arith.constant 7.812500e-03 : f32
    %432 = vector.broadcast %cst_122 : f32 to vector<16x1xf32>
    %433 = arith.mulf %431, %432 : vector<16x1xf32>
    %434 = arith.mulf %428, %428 : vector<16x1xf32>
    %435 = arith.subf %433, %434 : vector<16x1xf32>
    %cst_123 = arith.constant 0.000000e+00 : f32
    %436 = vector.broadcast %cst_123 : f32 to vector<16x1xf32>
    %437 = arith.maximumf %435, %436 : vector<16x1xf32>
    %438 = vector.broadcast %428 : vector<16x1xf32> to vector<16x128xf32>
    %439 = arith.subf %424, %438 : vector<16x128xf32>
    %cst_124 = arith.constant 9.99999974E-6 : f32
    %440 = vector.broadcast %cst_124 : f32 to vector<16x1xf32>
    %441 = arith.addf %437, %440 : vector<16x1xf32>
    %442 = math.rsqrt %441 : vector<16x1xf32>
    %443 = vector.broadcast %442 : vector<16x1xf32> to vector<16x128xf32>
    %444 = arith.mulf %439, %443 : vector<16x128xf32>
    %c0_125 = arith.constant 0 : index
    %c0_126 = arith.constant 0 : index
    %445 = vector.load %arg22[%c0_125, %c0_126] : memref<32x144xbf16, #tpu.memory_space<vmem>>, vector<32x144xbf16>
    %c0_127 = arith.constant 0 : index
    %c0_128 = arith.constant 0 : index
    %446 = vector.load %arg23[%c0_127, %c0_128] : memref<8x1xf32, #tpu.memory_space<vmem>>, vector<8x1xf32>
    %cst_129 = arith.constant 0.000000e+00 : f32
    %447 = vector.broadcast %cst_129 : f32 to vector<16x9xf32>
    %448 = vector.extract_strided_slice %444 {offsets = [0, 0], sizes = [16, 119], strides = [1, 1]} : vector<16x128xf32> to vector<16x119xf32>
    %449 = tpu.concatenate %447, %448 in 1 : vector<16x9xf32>, vector<16x119xf32> -> vector<16x128xf32>
    %450 = vector.extract_strided_slice %1 {offsets = [0, 0, 0], sizes = [1, 1, 128], strides = [1, 1, 1]} : vector<9x1x128xf32> to vector<1x1x128xf32>
    %451 = vector.shape_cast %450 : vector<1x1x128xf32> to vector<1x128xf32>
    %452 = vector.broadcast %451 : vector<1x128xf32> to vector<16x128xf32>
    %453 = arith.mulf %449, %452 : vector<16x128xf32>
    %cst_130 = arith.constant 0.000000e+00 : f32
    %454 = vector.broadcast %cst_130 : f32 to vector<16x8xf32>
    %455 = vector.extract_strided_slice %444 {offsets = [0, 0], sizes = [16, 120], strides = [1, 1]} : vector<16x128xf32> to vector<16x120xf32>
    %456 = tpu.concatenate %454, %455 in 1 : vector<16x8xf32>, vector<16x120xf32> -> vector<16x128xf32>
    %457 = vector.extract_strided_slice %1 {offsets = [1, 0, 0], sizes = [1, 1, 128], strides = [1, 1, 1]} : vector<9x1x128xf32> to vector<1x1x128xf32>
    %458 = vector.shape_cast %457 : vector<1x1x128xf32> to vector<1x128xf32>
    %459 = vector.broadcast %458 : vector<1x128xf32> to vector<16x128xf32>
    %460 = arith.mulf %456, %459 : vector<16x128xf32>
    %cst_131 = arith.constant 0.000000e+00 : f32
    %461 = vector.broadcast %cst_131 : f32 to vector<16x7xf32>
    %462 = vector.extract_strided_slice %444 {offsets = [0, 0], sizes = [16, 121], strides = [1, 1]} : vector<16x128xf32> to vector<16x121xf32>
    %463 = tpu.concatenate %461, %462 in 1 : vector<16x7xf32>, vector<16x121xf32> -> vector<16x128xf32>
    %464 = vector.extract_strided_slice %1 {offsets = [2, 0, 0], sizes = [1, 1, 128], strides = [1, 1, 1]} : vector<9x1x128xf32> to vector<1x1x128xf32>
    %465 = vector.shape_cast %464 : vector<1x1x128xf32> to vector<1x128xf32>
    %466 = vector.broadcast %465 : vector<1x128xf32> to vector<16x128xf32>
    %467 = arith.mulf %463, %466 : vector<16x128xf32>
    %cst_132 = arith.constant 0.000000e+00 : f32
    %468 = vector.broadcast %cst_132 : f32 to vector<16x1xf32>
    %469 = vector.extract_strided_slice %444 {offsets = [0, 0], sizes = [16, 127], strides = [1, 1]} : vector<16x128xf32> to vector<16x127xf32>
    %470 = tpu.concatenate %468, %469 in 1 : vector<16x1xf32>, vector<16x127xf32> -> vector<16x128xf32>
    %471 = vector.extract_strided_slice %1 {offsets = [3, 0, 0], sizes = [1, 1, 128], strides = [1, 1, 1]} : vector<9x1x128xf32> to vector<1x1x128xf32>
    %472 = vector.shape_cast %471 : vector<1x1x128xf32> to vector<1x128xf32>
    %473 = vector.broadcast %472 : vector<1x128xf32> to vector<16x128xf32>
    %474 = arith.mulf %470, %473 : vector<16x128xf32>
    %cst_133 = arith.constant 0.000000e+00 : f32
    %475 = vector.broadcast %cst_133 : f32 to vector<16x1xf32>
    %476 = vector.extract_strided_slice %444 {offsets = [0, 1], sizes = [16, 127], strides = [1, 1]} : vector<16x128xf32> to vector<16x127xf32>
    %477 = tpu.concatenate %476, %475 in 1 : vector<16x127xf32>, vector<16x1xf32> -> vector<16x128xf32>
    %478 = vector.extract_strided_slice %1 {offsets = [5, 0, 0], sizes = [1, 1, 128], strides = [1, 1, 1]} : vector<9x1x128xf32> to vector<1x1x128xf32>
    %479 = vector.shape_cast %478 : vector<1x1x128xf32> to vector<1x128xf32>
    %480 = vector.broadcast %479 : vector<1x128xf32> to vector<16x128xf32>
    %481 = arith.mulf %477, %480 : vector<16x128xf32>
    %cst_134 = arith.constant 0.000000e+00 : f32
    %482 = vector.broadcast %cst_134 : f32 to vector<16x7xf32>
    %483 = vector.extract_strided_slice %444 {offsets = [0, 7], sizes = [16, 121], strides = [1, 1]} : vector<16x128xf32> to vector<16x121xf32>
    %484 = tpu.concatenate %483, %482 in 1 : vector<16x121xf32>, vector<16x7xf32> -> vector<16x128xf32>
    %485 = vector.extract_strided_slice %1 {offsets = [6, 0, 0], sizes = [1, 1, 128], strides = [1, 1, 1]} : vector<9x1x128xf32> to vector<1x1x128xf32>
    %486 = vector.shape_cast %485 : vector<1x1x128xf32> to vector<1x128xf32>
    %487 = vector.broadcast %486 : vector<1x128xf32> to vector<16x128xf32>
    %488 = arith.mulf %484, %487 : vector<16x128xf32>
    %cst_135 = arith.constant 0.000000e+00 : f32
    %489 = vector.broadcast %cst_135 : f32 to vector<16x8xf32>
    %490 = vector.extract_strided_slice %444 {offsets = [0, 8], sizes = [16, 120], strides = [1, 1]} : vector<16x128xf32> to vector<16x120xf32>
    %491 = tpu.concatenate %490, %489 in 1 : vector<16x120xf32>, vector<16x8xf32> -> vector<16x128xf32>
    %492 = vector.extract_strided_slice %1 {offsets = [7, 0, 0], sizes = [1, 1, 128], strides = [1, 1, 1]} : vector<9x1x128xf32> to vector<1x1x128xf32>
    %493 = vector.shape_cast %492 : vector<1x1x128xf32> to vector<1x128xf32>
    %494 = vector.broadcast %493 : vector<1x128xf32> to vector<16x128xf32>
    %495 = arith.mulf %491, %494 : vector<16x128xf32>
    %cst_136 = arith.constant 0.000000e+00 : f32
    %496 = vector.broadcast %cst_136 : f32 to vector<16x9xf32>
    %497 = vector.extract_strided_slice %444 {offsets = [0, 9], sizes = [16, 119], strides = [1, 1]} : vector<16x128xf32> to vector<16x119xf32>
    %498 = tpu.concatenate %497, %496 in 1 : vector<16x119xf32>, vector<16x9xf32> -> vector<16x128xf32>
    %499 = vector.extract_strided_slice %1 {offsets = [8, 0, 0], sizes = [1, 1, 128], strides = [1, 1, 1]} : vector<9x1x128xf32> to vector<1x1x128xf32>
    %500 = vector.shape_cast %499 : vector<1x1x128xf32> to vector<1x128xf32>
    %501 = vector.broadcast %500 : vector<1x128xf32> to vector<16x128xf32>
    %502 = arith.mulf %498, %501 : vector<16x128xf32>
    %503 = tpu.concatenate %453, %460, %467, %474, %444, %481, %488, %495, %502 in 0 : vector<16x128xf32>, vector<16x128xf32>, vector<16x128xf32>, vector<16x128xf32>, vector<16x128xf32>, vector<16x128xf32>, vector<16x128xf32>, vector<16x128xf32>, vector<16x128xf32> -> vector<144x128xf32>
    %504 = arith.truncf %503 : vector<144x128xf32> to vector<144x128xbf16>
    %cst_137 = arith.constant dense<0.000000e+00> : vector<32x128xf32>
    %505 = tpu.matmul %445, %504, %cst_137 {dimension_numbers = #tpu.dot_dimension_numbers<[1], [0], [0], [1], [0, 0, 1, 1], [], []>} : vector<32x144xbf16>, vector<144x128xbf16>, vector<32x128xf32> -> vector<32x128xf32>
    %506 = vector.extract_strided_slice %505 {offsets = [0, 0], sizes = [8, 128], strides = [1, 1]} : vector<32x128xf32> to vector<8x128xf32>
    %507 = arith.truncf %506 : vector<8x128xf32> to vector<8x128xbf16>
    %c0_138 = arith.constant 0 : index
    %c0_139 = arith.constant 0 : index
    %c0_140 = arith.constant 0 : index
    %508 = vector.load %arg7[%c0_138, %c0_139, %c0_140] : memref<4x128x512xbf16, #tpu.memory_space<vmem>>, vector<1x128x512xbf16>
    %509 = vector.shape_cast %508 : vector<1x128x512xbf16> to vector<128x512xbf16>
    %cst_141 = arith.constant dense<0.000000e+00> : vector<8x512xf32>
    %510 = tpu.matmul %507, %509, %cst_141 {dimension_numbers = #tpu.dot_dimension_numbers<[1], [0], [0], [1], [0, 0, 1, 1], [], []>} : vector<8x128xbf16>, vector<128x512xbf16>, vector<8x512xf32> -> vector<8x512xf32>
    %511 = vector.extract_strided_slice %505 {offsets = [8, 0], sizes = [8, 128], strides = [1, 1]} : vector<32x128xf32> to vector<8x128xf32>
    %512 = arith.truncf %511 : vector<8x128xf32> to vector<8x128xbf16>
    %c1_142 = arith.constant 1 : index
    %c0_143 = arith.constant 0 : index
    %c0_144 = arith.constant 0 : index
    %513 = vector.load %arg7[%c1_142, %c0_143, %c0_144] : memref<4x128x512xbf16, #tpu.memory_space<vmem>>, vector<1x128x512xbf16>
    %514 = vector.shape_cast %513 : vector<1x128x512xbf16> to vector<128x512xbf16>
    %cst_145 = arith.constant dense<0.000000e+00> : vector<8x512xf32>
    %515 = tpu.matmul %512, %514, %cst_145 {dimension_numbers = #tpu.dot_dimension_numbers<[1], [0], [0], [1], [0, 0, 1, 1], [], []>} : vector<8x128xbf16>, vector<128x512xbf16>, vector<8x512xf32> -> vector<8x512xf32>
    %516 = arith.addf %510, %515 : vector<8x512xf32>
    %517 = vector.extract_strided_slice %505 {offsets = [16, 0], sizes = [8, 128], strides = [1, 1]} : vector<32x128xf32> to vector<8x128xf32>
    %518 = arith.truncf %517 : vector<8x128xf32> to vector<8x128xbf16>
    %c2_146 = arith.constant 2 : index
    %c0_147 = arith.constant 0 : index
    %c0_148 = arith.constant 0 : index
    %519 = vector.load %arg7[%c2_146, %c0_147, %c0_148] : memref<4x128x512xbf16, #tpu.memory_space<vmem>>, vector<1x128x512xbf16>
    %520 = vector.shape_cast %519 : vector<1x128x512xbf16> to vector<128x512xbf16>
    %cst_149 = arith.constant dense<0.000000e+00> : vector<8x512xf32>
    %521 = tpu.matmul %518, %520, %cst_149 {dimension_numbers = #tpu.dot_dimension_numbers<[1], [0], [0], [1], [0, 0, 1, 1], [], []>} : vector<8x128xbf16>, vector<128x512xbf16>, vector<8x512xf32> -> vector<8x512xf32>
    %522 = arith.addf %516, %521 : vector<8x512xf32>
    %523 = vector.extract_strided_slice %505 {offsets = [24, 0], sizes = [8, 128], strides = [1, 1]} : vector<32x128xf32> to vector<8x128xf32>
    %524 = arith.truncf %523 : vector<8x128xf32> to vector<8x128xbf16>
    %c3_150 = arith.constant 3 : index
    %c0_151 = arith.constant 0 : index
    %c0_152 = arith.constant 0 : index
    %525 = vector.load %arg7[%c3_150, %c0_151, %c0_152] : memref<4x128x512xbf16, #tpu.memory_space<vmem>>, vector<1x128x512xbf16>
    %526 = vector.shape_cast %525 : vector<1x128x512xbf16> to vector<128x512xbf16>
    %cst_153 = arith.constant dense<0.000000e+00> : vector<8x512xf32>
    %527 = tpu.matmul %524, %526, %cst_153 {dimension_numbers = #tpu.dot_dimension_numbers<[1], [0], [0], [1], [0, 0, 1, 1], [], []>} : vector<8x128xbf16>, vector<128x512xbf16>, vector<8x512xf32> -> vector<8x512xf32>
    %528 = arith.addf %522, %527 : vector<8x512xf32>
    %529 = vector.broadcast %446 : vector<8x1xf32> to vector<8x512xf32>
    %530 = arith.addf %528, %529 : vector<8x512xf32>
    %531 = tpu.concatenate %530, %80 in 0 : vector<8x512xf32>, vector<8x512xf32> -> vector<16x512xf32>
    %c0_154 = arith.constant 0 : index
    %c0_155 = arith.constant 0 : index
    %532 = vector.load %arg16[%c0_154, %c0_155] : memref<8x144xbf16, #tpu.memory_space<vmem>>, vector<8x144xbf16>
    %c0_156 = arith.constant 0 : index
    %c0_157 = arith.constant 0 : index
    %533 = vector.load %arg17[%c0_156, %c0_157] : memref<8x1xf32, #tpu.memory_space<vmem>>, vector<8x1xf32>
    %cst_158 = arith.constant 0.000000e+00 : f32
    %534 = vector.broadcast %cst_158 : f32 to vector<16x17xf32>
    %535 = vector.extract_strided_slice %531 {offsets = [0, 0], sizes = [16, 495], strides = [1, 1]} : vector<16x512xf32> to vector<16x495xf32>
    %536 = tpu.concatenate %534, %535 in 1 : vector<16x17xf32>, vector<16x495xf32> -> vector<16x512xf32>
    %537 = vector.extract_strided_slice %0 {offsets = [0, 0, 0], sizes = [1, 1, 512], strides = [1, 1, 1]} : vector<9x1x512xf32> to vector<1x1x512xf32>
    %538 = vector.shape_cast %537 : vector<1x1x512xf32> to vector<1x512xf32>
    %539 = vector.broadcast %538 : vector<1x512xf32> to vector<16x512xf32>
    %540 = arith.mulf %536, %539 : vector<16x512xf32>
    %cst_159 = arith.constant 0.000000e+00 : f32
    %541 = vector.broadcast %cst_159 : f32 to vector<16x16xf32>
    %542 = vector.extract_strided_slice %531 {offsets = [0, 0], sizes = [16, 496], strides = [1, 1]} : vector<16x512xf32> to vector<16x496xf32>
    %543 = tpu.concatenate %541, %542 in 1 : vector<16x16xf32>, vector<16x496xf32> -> vector<16x512xf32>
    %544 = vector.extract_strided_slice %0 {offsets = [1, 0, 0], sizes = [1, 1, 512], strides = [1, 1, 1]} : vector<9x1x512xf32> to vector<1x1x512xf32>
    %545 = vector.shape_cast %544 : vector<1x1x512xf32> to vector<1x512xf32>
    %546 = vector.broadcast %545 : vector<1x512xf32> to vector<16x512xf32>
    %547 = arith.mulf %543, %546 : vector<16x512xf32>
    %cst_160 = arith.constant 0.000000e+00 : f32
    %548 = vector.broadcast %cst_160 : f32 to vector<16x15xf32>
    %549 = vector.extract_strided_slice %531 {offsets = [0, 0], sizes = [16, 497], strides = [1, 1]} : vector<16x512xf32> to vector<16x497xf32>
    %550 = tpu.concatenate %548, %549 in 1 : vector<16x15xf32>, vector<16x497xf32> -> vector<16x512xf32>
    %551 = vector.extract_strided_slice %0 {offsets = [2, 0, 0], sizes = [1, 1, 512], strides = [1, 1, 1]} : vector<9x1x512xf32> to vector<1x1x512xf32>
    %552 = vector.shape_cast %551 : vector<1x1x512xf32> to vector<1x512xf32>
    %553 = vector.broadcast %552 : vector<1x512xf32> to vector<16x512xf32>
    %554 = arith.mulf %550, %553 : vector<16x512xf32>
    %cst_161 = arith.constant 0.000000e+00 : f32
    %555 = vector.broadcast %cst_161 : f32 to vector<16x1xf32>
    %556 = vector.extract_strided_slice %531 {offsets = [0, 0], sizes = [16, 511], strides = [1, 1]} : vector<16x512xf32> to vector<16x511xf32>
    %557 = tpu.concatenate %555, %556 in 1 : vector<16x1xf32>, vector<16x511xf32> -> vector<16x512xf32>
    %558 = vector.extract_strided_slice %0 {offsets = [3, 0, 0], sizes = [1, 1, 512], strides = [1, 1, 1]} : vector<9x1x512xf32> to vector<1x1x512xf32>
    %559 = vector.shape_cast %558 : vector<1x1x512xf32> to vector<1x512xf32>
    %560 = vector.broadcast %559 : vector<1x512xf32> to vector<16x512xf32>
    %561 = arith.mulf %557, %560 : vector<16x512xf32>
    %cst_162 = arith.constant 0.000000e+00 : f32
    %562 = vector.broadcast %cst_162 : f32 to vector<16x1xf32>
    %563 = vector.extract_strided_slice %531 {offsets = [0, 1], sizes = [16, 511], strides = [1, 1]} : vector<16x512xf32> to vector<16x511xf32>
    %564 = tpu.concatenate %563, %562 in 1 : vector<16x511xf32>, vector<16x1xf32> -> vector<16x512xf32>
    %565 = vector.extract_strided_slice %0 {offsets = [5, 0, 0], sizes = [1, 1, 512], strides = [1, 1, 1]} : vector<9x1x512xf32> to vector<1x1x512xf32>
    %566 = vector.shape_cast %565 : vector<1x1x512xf32> to vector<1x512xf32>
    %567 = vector.broadcast %566 : vector<1x512xf32> to vector<16x512xf32>
    %568 = arith.mulf %564, %567 : vector<16x512xf32>
    %cst_163 = arith.constant 0.000000e+00 : f32
    %569 = vector.broadcast %cst_163 : f32 to vector<16x15xf32>
    %570 = vector.extract_strided_slice %531 {offsets = [0, 15], sizes = [16, 497], strides = [1, 1]} : vector<16x512xf32> to vector<16x497xf32>
    %571 = tpu.concatenate %570, %569 in 1 : vector<16x497xf32>, vector<16x15xf32> -> vector<16x512xf32>
    %572 = vector.extract_strided_slice %0 {offsets = [6, 0, 0], sizes = [1, 1, 512], strides = [1, 1, 1]} : vector<9x1x512xf32> to vector<1x1x512xf32>
    %573 = vector.shape_cast %572 : vector<1x1x512xf32> to vector<1x512xf32>
    %574 = vector.broadcast %573 : vector<1x512xf32> to vector<16x512xf32>
    %575 = arith.mulf %571, %574 : vector<16x512xf32>
    %cst_164 = arith.constant 0.000000e+00 : f32
    %576 = vector.broadcast %cst_164 : f32 to vector<16x16xf32>
    %577 = vector.extract_strided_slice %531 {offsets = [0, 16], sizes = [16, 496], strides = [1, 1]} : vector<16x512xf32> to vector<16x496xf32>
    %578 = tpu.concatenate %577, %576 in 1 : vector<16x496xf32>, vector<16x16xf32> -> vector<16x512xf32>
    %579 = vector.extract_strided_slice %0 {offsets = [7, 0, 0], sizes = [1, 1, 512], strides = [1, 1, 1]} : vector<9x1x512xf32> to vector<1x1x512xf32>
    %580 = vector.shape_cast %579 : vector<1x1x512xf32> to vector<1x512xf32>
    %581 = vector.broadcast %580 : vector<1x512xf32> to vector<16x512xf32>
    %582 = arith.mulf %578, %581 : vector<16x512xf32>
    %cst_165 = arith.constant 0.000000e+00 : f32
    %583 = vector.broadcast %cst_165 : f32 to vector<16x17xf32>
    %584 = vector.extract_strided_slice %531 {offsets = [0, 17], sizes = [16, 495], strides = [1, 1]} : vector<16x512xf32> to vector<16x495xf32>
    %585 = tpu.concatenate %584, %583 in 1 : vector<16x495xf32>, vector<16x17xf32> -> vector<16x512xf32>
    %586 = vector.extract_strided_slice %0 {offsets = [8, 0, 0], sizes = [1, 1, 512], strides = [1, 1, 1]} : vector<9x1x512xf32> to vector<1x1x512xf32>
    %587 = vector.shape_cast %586 : vector<1x1x512xf32> to vector<1x512xf32>
    %588 = vector.broadcast %587 : vector<1x512xf32> to vector<16x512xf32>
    %589 = arith.mulf %585, %588 : vector<16x512xf32>
    %590 = tpu.concatenate %540, %547, %554, %561, %531, %568, %575, %582, %589 in 0 : vector<16x512xf32>, vector<16x512xf32>, vector<16x512xf32>, vector<16x512xf32>, vector<16x512xf32>, vector<16x512xf32>, vector<16x512xf32>, vector<16x512xf32>, vector<16x512xf32> -> vector<144x512xf32>
    %591 = arith.truncf %590 : vector<144x512xf32> to vector<144x512xbf16>
    %cst_166 = arith.constant dense<0.000000e+00> : vector<8x512xf32>
    %592 = tpu.matmul %532, %591, %cst_166 {dimension_numbers = #tpu.dot_dimension_numbers<[1], [0], [0], [1], [0, 0, 1, 1], [], []>} : vector<8x144xbf16>, vector<144x512xbf16>, vector<8x512xf32> -> vector<8x512xf32>
    %593 = vector.broadcast %533 : vector<8x1xf32> to vector<8x512xf32>
    %594 = arith.addf %592, %593 : vector<8x512xf32>
    %cst_167 = arith.constant 0.000000e+00 : f32
    %595 = vector.broadcast %cst_167 : f32 to vector<8x512xf32>
    %596 = arith.maximumf %594, %595 : vector<8x512xf32>
    %cst_168 = arith.constant dense<0.000000e+00> : vector<8xf32>
    %597 = vector.multi_reduction <add>, %596, %cst_168 [1] : vector<8x512xf32> to vector<8xf32>
    %598 = vector.shape_cast %597 : vector<8xf32> to vector<8x1xf32>
    %cst_169 = arith.constant 0.001953125 : f32
    %599 = vector.broadcast %cst_169 : f32 to vector<8x1xf32>
    %600 = arith.mulf %598, %599 : vector<8x1xf32>
    %601 = arith.mulf %596, %596 : vector<8x512xf32>
    %cst_170 = arith.constant dense<0.000000e+00> : vector<8xf32>
    %602 = vector.multi_reduction <add>, %601, %cst_170 [1] : vector<8x512xf32> to vector<8xf32>
    %603 = vector.shape_cast %602 : vector<8xf32> to vector<8x1xf32>
    %cst_171 = arith.constant 0.001953125 : f32
    %604 = vector.broadcast %cst_171 : f32 to vector<8x1xf32>
    %605 = arith.mulf %603, %604 : vector<8x1xf32>
    %606 = arith.mulf %600, %600 : vector<8x1xf32>
    %607 = arith.subf %605, %606 : vector<8x1xf32>
    %cst_172 = arith.constant 0.000000e+00 : f32
    %608 = vector.broadcast %cst_172 : f32 to vector<8x1xf32>
    %609 = arith.maximumf %607, %608 : vector<8x1xf32>
    %610 = vector.broadcast %600 : vector<8x1xf32> to vector<8x512xf32>
    %611 = arith.subf %596, %610 : vector<8x512xf32>
    %cst_173 = arith.constant 9.99999974E-6 : f32
    %612 = vector.broadcast %cst_173 : f32 to vector<8x1xf32>
    %613 = arith.addf %609, %612 : vector<8x1xf32>
    %614 = math.rsqrt %613 : vector<8x1xf32>
    %615 = vector.broadcast %614 : vector<8x1xf32> to vector<8x512xf32>
    %616 = arith.mulf %611, %615 : vector<8x512xf32>
    %c0_174 = arith.constant 0 : index
    %c0_175 = arith.constant 0 : index
    %617 = vector.load %arg18[%c0_174, %c0_175] : memref<1x72xbf16, #tpu.memory_space<vmem>>, vector<1x72xbf16>
    %c0_176 = arith.constant 0 : index
    %c0_177 = arith.constant 0 : index
    %618 = vector.load %arg19[%c0_176, %c0_177] : memref<1x1xf32, #tpu.memory_space<vmem>>, vector<1x1xf32>
    %cst_178 = arith.constant 0.000000e+00 : f32
    %619 = vector.broadcast %cst_178 : f32 to vector<8x17xf32>
    %620 = vector.extract_strided_slice %616 {offsets = [0, 0], sizes = [8, 495], strides = [1, 1]} : vector<8x512xf32> to vector<8x495xf32>
    %621 = tpu.concatenate %619, %620 in 1 : vector<8x17xf32>, vector<8x495xf32> -> vector<8x512xf32>
    %622 = vector.extract_strided_slice %0 {offsets = [0, 0, 0], sizes = [1, 1, 512], strides = [1, 1, 1]} : vector<9x1x512xf32> to vector<1x1x512xf32>
    %623 = vector.shape_cast %622 : vector<1x1x512xf32> to vector<1x512xf32>
    %624 = vector.broadcast %623 : vector<1x512xf32> to vector<8x512xf32>
    %625 = arith.mulf %621, %624 : vector<8x512xf32>
    %cst_179 = arith.constant 0.000000e+00 : f32
    %626 = vector.broadcast %cst_179 : f32 to vector<8x16xf32>
    %627 = vector.extract_strided_slice %616 {offsets = [0, 0], sizes = [8, 496], strides = [1, 1]} : vector<8x512xf32> to vector<8x496xf32>
    %628 = tpu.concatenate %626, %627 in 1 : vector<8x16xf32>, vector<8x496xf32> -> vector<8x512xf32>
    %629 = vector.extract_strided_slice %0 {offsets = [1, 0, 0], sizes = [1, 1, 512], strides = [1, 1, 1]} : vector<9x1x512xf32> to vector<1x1x512xf32>
    %630 = vector.shape_cast %629 : vector<1x1x512xf32> to vector<1x512xf32>
    %631 = vector.broadcast %630 : vector<1x512xf32> to vector<8x512xf32>
    %632 = arith.mulf %628, %631 : vector<8x512xf32>
    %cst_180 = arith.constant 0.000000e+00 : f32
    %633 = vector.broadcast %cst_180 : f32 to vector<8x15xf32>
    %634 = vector.extract_strided_slice %616 {offsets = [0, 0], sizes = [8, 497], strides = [1, 1]} : vector<8x512xf32> to vector<8x497xf32>
    %635 = tpu.concatenate %633, %634 in 1 : vector<8x15xf32>, vector<8x497xf32> -> vector<8x512xf32>
    %636 = vector.extract_strided_slice %0 {offsets = [2, 0, 0], sizes = [1, 1, 512], strides = [1, 1, 1]} : vector<9x1x512xf32> to vector<1x1x512xf32>
    %637 = vector.shape_cast %636 : vector<1x1x512xf32> to vector<1x512xf32>
    %638 = vector.broadcast %637 : vector<1x512xf32> to vector<8x512xf32>
    %639 = arith.mulf %635, %638 : vector<8x512xf32>
    %cst_181 = arith.constant 0.000000e+00 : f32
    %640 = vector.broadcast %cst_181 : f32 to vector<8x1xf32>
    %641 = vector.extract_strided_slice %616 {offsets = [0, 0], sizes = [8, 511], strides = [1, 1]} : vector<8x512xf32> to vector<8x511xf32>
    %642 = tpu.concatenate %640, %641 in 1 : vector<8x1xf32>, vector<8x511xf32> -> vector<8x512xf32>
    %643 = vector.extract_strided_slice %0 {offsets = [3, 0, 0], sizes = [1, 1, 512], strides = [1, 1, 1]} : vector<9x1x512xf32> to vector<1x1x512xf32>
    %644 = vector.shape_cast %643 : vector<1x1x512xf32> to vector<1x512xf32>
    %645 = vector.broadcast %644 : vector<1x512xf32> to vector<8x512xf32>
    %646 = arith.mulf %642, %645 : vector<8x512xf32>
    %cst_182 = arith.constant 0.000000e+00 : f32
    %647 = vector.broadcast %cst_182 : f32 to vector<8x1xf32>
    %648 = vector.extract_strided_slice %616 {offsets = [0, 1], sizes = [8, 511], strides = [1, 1]} : vector<8x512xf32> to vector<8x511xf32>
    %649 = tpu.concatenate %648, %647 in 1 : vector<8x511xf32>, vector<8x1xf32> -> vector<8x512xf32>
    %650 = vector.extract_strided_slice %0 {offsets = [5, 0, 0], sizes = [1, 1, 512], strides = [1, 1, 1]} : vector<9x1x512xf32> to vector<1x1x512xf32>
    %651 = vector.shape_cast %650 : vector<1x1x512xf32> to vector<1x512xf32>
    %652 = vector.broadcast %651 : vector<1x512xf32> to vector<8x512xf32>
    %653 = arith.mulf %649, %652 : vector<8x512xf32>
    %cst_183 = arith.constant 0.000000e+00 : f32
    %654 = vector.broadcast %cst_183 : f32 to vector<8x15xf32>
    %655 = vector.extract_strided_slice %616 {offsets = [0, 15], sizes = [8, 497], strides = [1, 1]} : vector<8x512xf32> to vector<8x497xf32>
    %656 = tpu.concatenate %655, %654 in 1 : vector<8x497xf32>, vector<8x15xf32> -> vector<8x512xf32>
    %657 = vector.extract_strided_slice %0 {offsets = [6, 0, 0], sizes = [1, 1, 512], strides = [1, 1, 1]} : vector<9x1x512xf32> to vector<1x1x512xf32>
    %658 = vector.shape_cast %657 : vector<1x1x512xf32> to vector<1x512xf32>
    %659 = vector.broadcast %658 : vector<1x512xf32> to vector<8x512xf32>
    %660 = arith.mulf %656, %659 : vector<8x512xf32>
    %cst_184 = arith.constant 0.000000e+00 : f32
    %661 = vector.broadcast %cst_184 : f32 to vector<8x16xf32>
    %662 = vector.extract_strided_slice %616 {offsets = [0, 16], sizes = [8, 496], strides = [1, 1]} : vector<8x512xf32> to vector<8x496xf32>
    %663 = tpu.concatenate %662, %661 in 1 : vector<8x496xf32>, vector<8x16xf32> -> vector<8x512xf32>
    %664 = vector.extract_strided_slice %0 {offsets = [7, 0, 0], sizes = [1, 1, 512], strides = [1, 1, 1]} : vector<9x1x512xf32> to vector<1x1x512xf32>
    %665 = vector.shape_cast %664 : vector<1x1x512xf32> to vector<1x512xf32>
    %666 = vector.broadcast %665 : vector<1x512xf32> to vector<8x512xf32>
    %667 = arith.mulf %663, %666 : vector<8x512xf32>
    %cst_185 = arith.constant 0.000000e+00 : f32
    %668 = vector.broadcast %cst_185 : f32 to vector<8x17xf32>
    %669 = vector.extract_strided_slice %616 {offsets = [0, 17], sizes = [8, 495], strides = [1, 1]} : vector<8x512xf32> to vector<8x495xf32>
    %670 = tpu.concatenate %669, %668 in 1 : vector<8x495xf32>, vector<8x17xf32> -> vector<8x512xf32>
    %671 = vector.extract_strided_slice %0 {offsets = [8, 0, 0], sizes = [1, 1, 512], strides = [1, 1, 1]} : vector<9x1x512xf32> to vector<1x1x512xf32>
    %672 = vector.shape_cast %671 : vector<1x1x512xf32> to vector<1x512xf32>
    %673 = vector.broadcast %672 : vector<1x512xf32> to vector<8x512xf32>
    %674 = arith.mulf %670, %673 : vector<8x512xf32>
    %675 = tpu.concatenate %625, %632, %639, %646, %616, %653, %660, %667, %674 in 0 : vector<8x512xf32>, vector<8x512xf32>, vector<8x512xf32>, vector<8x512xf32>, vector<8x512xf32>, vector<8x512xf32>, vector<8x512xf32>, vector<8x512xf32>, vector<8x512xf32> -> vector<72x512xf32>
    %676 = arith.truncf %675 : vector<72x512xf32> to vector<72x512xbf16>
    %cst_186 = arith.constant dense<0.000000e+00> : vector<1x512xf32>
    %677 = tpu.matmul %617, %676, %cst_186 {dimension_numbers = #tpu.dot_dimension_numbers<[1], [0], [0], [1], [0, 0, 1, 1], [], []>} : vector<1x72xbf16>, vector<72x512xbf16>, vector<1x512xf32> -> vector<1x512xf32>
    %678 = vector.broadcast %618 : vector<1x1xf32> to vector<1x512xf32>
    %679 = arith.addf %677, %678 : vector<1x512xf32>
    %cst_187 = arith.constant dense<0.000000e+00> : vector<1xf32>
    %680 = vector.multi_reduction <add>, %679, %cst_187 [1] : vector<1x512xf32> to vector<1xf32>
    %681 = vector.shape_cast %680 : vector<1xf32> to vector<1x1xf32>
    %cst_188 = arith.constant 0.001953125 : f32
    %682 = vector.broadcast %cst_188 : f32 to vector<1x1xf32>
    %683 = arith.mulf %681, %682 : vector<1x1xf32>
    %684 = arith.mulf %679, %679 : vector<1x512xf32>
    %cst_189 = arith.constant dense<0.000000e+00> : vector<1xf32>
    %685 = vector.multi_reduction <add>, %684, %cst_189 [1] : vector<1x512xf32> to vector<1xf32>
    %686 = vector.shape_cast %685 : vector<1xf32> to vector<1x1xf32>
    %cst_190 = arith.constant 0.001953125 : f32
    %687 = vector.broadcast %cst_190 : f32 to vector<1x1xf32>
    %688 = arith.mulf %686, %687 : vector<1x1xf32>
    %689 = arith.mulf %683, %683 : vector<1x1xf32>
    %690 = arith.subf %688, %689 : vector<1x1xf32>
    %cst_191 = arith.constant 0.000000e+00 : f32
    %691 = vector.broadcast %cst_191 : f32 to vector<1x1xf32>
    %692 = arith.maximumf %690, %691 : vector<1x1xf32>
    %693 = vector.broadcast %683 : vector<1x1xf32> to vector<1x512xf32>
    %694 = arith.subf %679, %693 : vector<1x512xf32>
    %cst_192 = arith.constant 9.99999974E-6 : f32
    %695 = vector.broadcast %cst_192 : f32 to vector<1x1xf32>
    %696 = arith.addf %692, %695 : vector<1x1xf32>
    %697 = math.rsqrt %696 : vector<1x1xf32>
    %698 = vector.broadcast %697 : vector<1x1xf32> to vector<1x512xf32>
    %699 = arith.mulf %694, %698 : vector<1x512xf32>
    %700 = arith.negf %699 : vector<1x512xf32>
    %701 = math.exp %700 : vector<1x512xf32>
    %cst_193 = arith.constant 1.000000e+00 : f32
    %702 = vector.broadcast %cst_193 : f32 to vector<1x512xf32>
    %703 = arith.addf %702, %701 : vector<1x512xf32>
    %704 = arith.divf %702, %703 : vector<1x512xf32>
    %c0_194 = arith.constant 0 : index
    %c0_195 = arith.constant 0 : index
    %705 = vector.load %arg24[%c0_194, %c0_195] : memref<1x512xf32, #tpu.memory_space<vmem>>, vector<1x512xf32>
    tpu.vector_store %arg24[%c0_194, %c0_195], %704 {strides = array<i32>} : memref<1x512xf32, #tpu.memory_space<vmem>>, vector<1x512xf32>,
    return
  }
}

</mosaic_0001>

<llo_original>
// kernel: unet_forward.1
$region0: #{unet_forward.1}
  #allocation0 [shape = 'u32[]', space=smem, size = 0x4, offset = 0x4, fixed_abs, tag = 'smem constant byte address 0x4 - core index']
  #allocation1 [shape = 'u32[144,128]{1,0:T(1,128)}', space=vmem, size = 0x12000, scoped, tag = 'internal scratch']
  #allocation2 [shape = 'f32[1,1]{1,0:T(1,128)S(1)}', space=vmem, size = 0x200, scoped, tag = 'scoped memory for unet_forward.1']
  %s0 = inlined_call_operand.vmem [shape: f32[1,512], index: 0, kind: input, shape index: {}]
  %s1 = inlined_call_operand.hbm [shape: f32[9,1,512], index: 1, kind: input, shape index: {}]
  %s2 = inlined_call_operand.vmem [shape: f32[9,1,128], index: 2, kind: input, shape index: {}]
  %s3 = inlined_call_operand.vmem [shape: f32[9,1,32], index: 3, kind: input, shape index: {}]
  %s4 = inlined_call_operand.hbm [shape: bf16[512,128], index: 4, kind: input, shape index: {}]
  %s5 = inlined_call_operand.vmem [shape: bf16[128,32], index: 5, kind: input, shape index: {}]
  %s6 = inlined_call_operand.hbm [shape: bf16[4,32,128], index: 6, kind: input, shape index: {}]
  %s7 = inlined_call_operand.hbm [shape: bf16[4,128,512], index: 7, kind: input, shape index: {}]
  %s8 = inlined_call_operand.hbm [shape: bf16[8,9], index: 8, kind: input, shape index: {}]
  %s9 = inlined_call_operand.vmem [shape: f32[8,1], index: 9, kind: input, shape index: {}]
  %s10 = inlined_call_operand.hbm [shape: bf16[16,72], index: 10, kind: input, shape index: {}]
  %s11 = inlined_call_operand.vmem [shape: f32[16,1], index: 11, kind: input, shape index: {}]
  %s12 = inlined_call_operand.hbm [shape: bf16[32,144], index: 12, kind: input, shape index: {}]
  %s13 = inlined_call_operand.vmem [shape: f32[32,1], index: 13, kind: input, shape index: {}]
  %s14 = inlined_call_operand.hbm [shape: bf16[16,288], index: 14, kind: input, shape index: {}]
  %s15 = inlined_call_operand.vmem [shape: f32[16,1], index: 15, kind: input, shape index: {}]
  %s16 = inlined_call_operand.hbm [shape: bf16[8,144], index: 16, kind: input, shape index: {}]
  %s17 = inlined_call_operand.vmem [shape: f32[8,1], index: 17, kind: input, shape index: {}]
  %s18 = inlined_call_operand.hbm [shape: bf16[1,72], index: 18, kind: input, shape index: {}]
  %s19 = inlined_call_operand.<no memory space> [shape: f32[1,1], index: 19, kind: input, shape index: {}]
  %s20 = inlined_call_operand.vmem [shape: bf16[64,288], index: 20, kind: input, shape index: {}]
  %s21 = inlined_call_operand.vmem [shape: f32[16,1], index: 21, kind: input, shape index: {}]
  %s22 = inlined_call_operand.hbm [shape: bf16[32,144], index: 22, kind: input, shape index: {}]
  %s23 = inlined_call_operand.vmem [shape: f32[8,1], index: 23, kind: input, shape index: {}]
  %s24 = inlined_call_operand.vmem [shape: f32[1,512], index: 24, kind: output, shape index: {}]
  %s25 = sld [smem:[#allocation0]]
  $region150: #{unet_forward.1} parent=0
    _
  %s27 = ssub.s32 1, %s25
  %s28 = scalar_select 0, %s27, %s25
  %v29 = vstv %s19
  %30 = vst [vmem:[#allocation2] sm:$0x1] %v29
  $region1: #{unet_forward.1} parent=0
    #allocation3 [shape = 'u8[18432]{0}', space=vmem, size = 0x4800, scoped, tag = 'input window, operand 1, single buffered']
    #allocation4 [shape = 's32[1]{0}', space=sflag, size = 0x4, scoped, tag = 'scoped memory for unet_forward.1']
    #allocation5 [shape = 'u8[131072]{0}', space=vmem, size = 0x20000, scoped, tag = 'input window, operand 4, single buffered']
    #allocation6 [shape = 's32[1]{0}', space=sflag, size = 0x4, scoped, tag = 'scoped memory for unet_forward.1']
    #allocation7 [shape = 'u8[32768]{0}', space=vmem, size = 0x8000, scoped, tag = 'input window, operand 6, single buffered']
    #allocation8 [shape = 'u8[524288]{0}', space=vmem, size = 0x80000, scoped, tag = 'input window, operand 7, single buffered']
    #allocation9 [shape = 's32[1]{0}', space=sflag, size = 0x4, scoped, tag = 'scoped memory for unet_forward.1']
    #allocation10 [shape = 'u8[2048]{0}', space=vmem, size = 0x800, scoped, tag = 'input window, operand 8, single buffered']
    #allocation11 [shape = 'u8[4096]{0}', space=vmem, size = 0x1000, scoped, tag = 'input window, operand 10, single buffered']
    #allocation12 [shape = 's32[1]{0}', space=sflag, size = 0x4, scoped, tag = 'scoped memory for unet_forward.1']
    #allocation13 [shape = 'u8[16384]{0}', space=vmem, size = 0x4000, scoped, tag = 'input window, operand 12, single buffered']
    #allocation14 [shape = 'u8[12288]{0}', space=vmem, size = 0x3000, scoped, tag = 'input window, operand 14, single buffered']
    #allocation15 [shape = 's32[1]{0}', space=sflag, size = 0x4, scoped, tag = 'scoped memory for unet_forward.1']
    #allocation16 [shape = 'u8[4096]{0}', space=vmem, size = 0x1000, scoped, tag = 'input window, operand 16, single buffered']
    #allocation17 [shape = 'u8[512]{0}', space=vmem, size = 0x400, scoped, tag = 'input window, operand 18, single buffered']
    #allocation18 [shape = 's32[1]{0}', space=sflag, size = 0x4, scoped, tag = 'scoped memory for unet_forward.1']
    #allocation19 [shape = 'u8[16384]{0}', space=vmem, size = 0x4000, scoped, tag = 'input window, operand 22, single buffered']
    %31 = vsyncpa [#allocation4], 0
    %32 = vsyncpa [#allocation6], 0
    %33 = vsyncpa [#allocation9], 0
    %34 = vsyncpa [#allocation12], 0
    %35 = vsyncpa [#allocation15], 0
    %36 = vsyncpa [#allocation18], 0
    // Predicated region
    $region2: #{unet_forward.1} parent=1 // pred_check
      _
    $region3: #{unet_forward.1} parent=1 // pred_check_branch
      %38 = sbr.rel (0) target = $region5
    $region4: #{unet_forward.1} parent=1 // pred_region
      _
    $region5: #{unet_forward.1} parent=1 // pred_fallthru
      _
    // Predicated region
    $region6: #{unet_forward.1} parent=1 // pred_check
      _
    $region7: #{unet_forward.1} parent=1 // pred_check_branch
      %40 = sbr.rel (0) target = $region9
    $region8: #{unet_forward.1} parent=1 // pred_region
      %s42 = ssub.s32 576, 576
      %43 = vsyncadd [#allocation4], %s42
      %s44 = sshll.u32 [#allocation3], 4
      %s45 = int_to_ptr.vmem [resolvable:$true] %s44
      %50 = dma.hbm_to_vmem [thread:$0]  %s1, 576, %s45, [#allocation4], 64, 64, 4
    $region9: #{unet_forward.1} parent=1 // pred_fallthru
      _
    // Predicated region
    $region10: #{unet_forward.1} parent=1 // pred_check
      _
    $region11: #{unet_forward.1} parent=1 // pred_check_branch
      %52 = sbr.rel (0) target = $region13
    $region12: #{unet_forward.1} parent=1 // pred_region
      _
    $region13: #{unet_forward.1} parent=1 // pred_fallthru
      _
    // Predicated region
    $region14: #{unet_forward.1} parent=1 // pred_check
      _
    $region15: #{unet_forward.1} parent=1 // pred_check_branch
      %54 = sbr.rel (0) target = $region17
    $region16: #{unet_forward.1} parent=1 // pred_region
      _
    $region17: #{unet_forward.1} parent=1 // pred_fallthru
      _
    // Predicated region
    $region18: #{unet_forward.1} parent=1 // pred_check
      _
    $region19: #{unet_forward.1} parent=1 // pred_check_branch
      %56 = sbr.rel (0) target = $region21
    $region20: #{unet_forward.1} parent=1 // pred_region
      %s58 = ssub.s32 4096, 4096
      %59 = vsyncadd [#allocation6], %s58
      %s60 = sshll.u32 [#allocation5], 4
      %s61 = int_to_ptr.vmem [resolvable:$true] %s60
      %66 = dma.hbm_to_vmem [thread:$0]  %s4, 4096, %s61, [#allocation6], 64, 64, 4
    $region21: #{unet_forward.1} parent=1 // pred_fallthru
      _
    // Predicated region
    $region22: #{unet_forward.1} parent=1 // pred_check
      _
    $region23: #{unet_forward.1} parent=1 // pred_check_branch
      %68 = sbr.rel (0) target = $region25
    $region24: #{unet_forward.1} parent=1 // pred_region
      _
    $region25: #{unet_forward.1} parent=1 // pred_fallthru
      _
    // Predicated region
    $region26: #{unet_forward.1} parent=1 // pred_check
      _
    $region27: #{unet_forward.1} parent=1 // pred_check_branch
      %70 = sbr.rel (0) target = $region29
    $region28: #{unet_forward.1} parent=1 // pred_region
      %s72 = ssub.s32 1024, 1024
      %73 = vsyncadd [#allocation6], %s72
      %s74 = sshll.u32 [#allocation7], 4
      %s75 = int_to_ptr.vmem [resolvable:$true] %s74
      %80 = dma.hbm_to_vmem [thread:$0]  %s6, 1024, %s75, [#allocation6], 64, 64, 4
    $region29: #{unet_forward.1} parent=1 // pred_fallthru
      _
    // Predicated region
    $region30: #{unet_forward.1} parent=1 // pred_check
      _
    $region31: #{unet_forward.1} parent=1 // pred_check_branch
      %82 = sbr.rel (0) target = $region33
    $region32: #{unet_forward.1} parent=1 // pred_region
      %s84 = ssub.s32 16384, 16384
      %85 = vsyncadd [#allocation9], %s84
      %s86 = sshll.u32 [#allocation8], 4
      %s87 = int_to_ptr.vmem [resolvable:$true] %s86
      %92 = dma.hbm_to_vmem [thread:$0]  %s7, 16384, %s87, [#allocation9], 256, 256, 16
    $region33: #{unet_forward.1} parent=1 // pred_fallthru
      _
    // Predicated region
    $region34: #{unet_forward.1} parent=1 // pred_check
      _
    $region35: #{unet_forward.1} parent=1 // pred_check_branch
      %94 = sbr.rel (0) target = $region37
    $region36: #{unet_forward.1} parent=1 // pred_region
      %s96 = ssub.s32 64, 64
      %97 = vsyncadd [#allocation9], %s96
      %s99 = sshll.u32 [#allocation10], 4
      %s100 = int_to_ptr.vmem [resolvable:$true] %s99
      %102 = dma.hbm_to_vmem [thread:$0]  %s8, 64, %s100, [#allocation9]
    $region37: #{unet_forward.1} parent=1 // pred_fallthru
      _
    // Predicated region
    $region38: #{unet_forward.1} parent=1 // pred_check
      _
    $region39: #{unet_forward.1} parent=1 // pred_check_branch
      %104 = sbr.rel (0) target = $region41
    $region40: #{unet_forward.1} parent=1 // pred_region
      _
    $region41: #{unet_forward.1} parent=1 // pred_fallthru
      _
    // Predicated region
    $region42: #{unet_forward.1} parent=1 // pred_check
      _
    $region43: #{unet_forward.1} parent=1 // pred_check_branch
      %106 = sbr.rel (0) target = $region45
    $region44: #{unet_forward.1} parent=1 // pred_region
      %s108 = ssub.s32 128, 128
      %109 = vsyncadd [#allocation12], %s108
      %s110 = sshll.u32 [#allocation11], 4
      %s111 = int_to_ptr.vmem [resolvable:$true] %s110
      %116 = dma.hbm_to_vmem [thread:$0]  %s10, 128, %s111, [#allocation12], 64, 64, 4
    $region45: #{unet_forward.1} parent=1 // pred_fallthru
      _
    // Predicated region
    $region46: #{unet_forward.1} parent=1 // pred_check
      _
    $region47: #{unet_forward.1} parent=1 // pred_check_branch
      %118 = sbr.rel (0) target = $region49
    $region48: #{unet_forward.1} parent=1 // pred_region
      _
    $region49: #{unet_forward.1} parent=1 // pred_fallthru
      _
    // Predicated region
    $region50: #{unet_forward.1} parent=1 // pred_check
      _
    $region51: #{unet_forward.1} parent=1 // pred_check_branch
      %120 = sbr.rel (0) target = $region53
    $region52: #{unet_forward.1} parent=1 // pred_region
      %s122 = ssub.s32 512, 512
      %123 = vsyncadd [#allocation12], %s122
      %s124 = sshll.u32 [#allocation13], 4
      %s125 = int_to_ptr.vmem [resolvable:$true] %s124
      %130 = dma.hbm_to_vmem [thread:$0]  %s12, 512, %s125, [#allocation12], 128, 128, 8
    $region53: #{unet_forward.1} parent=1 // pred_fallthru
      _
    // Predicated region
    $region54: #{unet_forward.1} parent=1 // pred_check
      _
    $region55: #{unet_forward.1} parent=1 // pred_check_branch
      %132 = sbr.rel (0) target = $region57
    $region56: #{unet_forward.1} parent=1 // pred_region
      _
    $region57: #{unet_forward.1} parent=1 // pred_fallthru
      _
    // Predicated region
    $region58: #{unet_forward.1} parent=1 // pred_check
      _
    $region59: #{unet_forward.1} parent=1 // pred_check_branch
      %134 = sbr.rel (0) target = $region61
    $region60: #{unet_forward.1} parent=1 // pred_region
      %s136 = ssub.s32 384, 384
      %137 = vsyncadd [#allocation15], %s136
      %s138 = sshll.u32 [#allocation14], 4
      %s139 = int_to_ptr.vmem [resolvable:$true] %s138
      %144 = dma.hbm_to_vmem [thread:$0]  %s14, 384, %s139, [#allocation15], 192, 192, 12
    $region61: #{unet_forward.1} parent=1 // pred_fallthru
      _
    // Predicated region
    $region62: #{unet_forward.1} parent=1 // pred_check
      _
    $region63: #{unet_forward.1} parent=1 // pred_check_branch
      %146 = sbr.rel (0) target = $region65
    $region64: #{unet_forward.1} parent=1 // pred_region
      _
    $region65: #{unet_forward.1} parent=1 // pred_fallthru
      _
    // Predicated region
    $region66: #{unet_forward.1} parent=1 // pred_check
      _
    $region67: #{unet_forward.1} parent=1 // pred_check_branch
      %148 = sbr.rel (0) target = $region69
    $region68: #{unet_forward.1} parent=1 // pred_region
      %s150 = ssub.s32 128, 128
      %151 = vsyncadd [#allocation15], %s150
      %s153 = sshll.u32 [#allocation16], 4
      %s154 = int_to_ptr.vmem [resolvable:$true] %s153
      %156 = dma.hbm_to_vmem [thread:$0]  %s16, 128, %s154, [#allocation15]
    $region69: #{unet_forward.1} parent=1 // pred_fallthru
      _
    // Predicated region
    $region70: #{unet_forward.1} parent=1 // pred_check
      _
    $region71: #{unet_forward.1} parent=1 // pred_check_branch
      %158 = sbr.rel (0) target = $region73
    $region72: #{unet_forward.1} parent=1 // pred_region
      _
    $region73: #{unet_forward.1} parent=1 // pred_fallthru
      _
    // Predicated region
    $region74: #{unet_forward.1} parent=1 // pred_check
      _
    $region75: #{unet_forward.1} parent=1 // pred_check_branch
      %160 = sbr.rel (0) target = $region77
    $region76: #{unet_forward.1} parent=1 // pred_region
      %s162 = ssub.s32 16, 16
      %163 = vsyncadd [#allocation18], %s162
      %s165 = sshll.u32 [#allocation17], 4
      %s166 = int_to_ptr.vmem [resolvable:$true] %s165
      %168 = dma.hbm_to_vmem [thread:$0]  %s18, 16, %s166, [#allocation18]
    $region77: #{unet_forward.1} parent=1 // pred_fallthru
      _
    // Predicated region
    $region78: #{unet_forward.1} parent=1 // pred_check
      _
    $region79: #{unet_forward.1} parent=1 // pred_check_branch
      %170 = sbr.rel (0) target = $region81
    $region80: #{unet_forward.1} parent=1 // pred_region
      _
    $region81: #{unet_forward.1} parent=1 // pred_fallthru
      _
    // Predicated region
    $region82: #{unet_forward.1} parent=1 // pred_check
      _
    $region83: #{unet_forward.1} parent=1 // pred_check_branch
      %172 = sbr.rel (0) target = $region85
    $region84: #{unet_forward.1} parent=1 // pred_region
      _
    $region85: #{unet_forward.1} parent=1 // pred_fallthru
      _
    // Predicated region
    $region86: #{unet_forward.1} parent=1 // pred_check
      _
    $region87: #{unet_forward.1} parent=1 // pred_check_branch
      %174 = sbr.rel (0) target = $region89
    $region88: #{unet_forward.1} parent=1 // pred_region
      _
    $region89: #{unet_forward.1} parent=1 // pred_fallthru
      _
    // Predicated region
    $region90: #{unet_forward.1} parent=1 // pred_check
      _
    $region91: #{unet_forward.1} parent=1 // pred_check_branch
      %176 = sbr.rel (0) target = $region93
    $region92: #{unet_forward.1} parent=1 // pred_region
      %s178 = ssub.s32 512, 512
      %179 = vsyncadd [#allocation18], %s178
      %s180 = sshll.u32 [#allocation19], 4
      %s181 = int_to_ptr.vmem [resolvable:$true] %s180
      %186 = dma.hbm_to_vmem [thread:$0]  %s22, 512, %s181, [#allocation18], 128, 128, 8
    $region93: #{unet_forward.1} parent=1 // pred_fallthru
      _
    // Predicated region
    $region94: #{unet_forward.1} parent=1 // pred_check
      _
    $region95: #{unet_forward.1} parent=1 // pred_check_branch
      %188 = sbr.rel (0) target = $region97
    $region96: #{unet_forward.1} parent=1 // pred_region
      _
    $region97: #{unet_forward.1} parent=1 // pred_fallthru
      _
    // Predicated region
    $region98: #{unet_forward.1} parent=1 // pred_check
      _
    $region99: #{unet_forward.1} parent=1 // pred_check_branch
      %190 = sbr.rel (0) target = $region101
    $region100: #{unet_forward.1} parent=1 // pred_region
      %191 = dma.done [#allocation4], 576
    $region101: #{unet_forward.1} parent=1 // pred_fallthru
      _
    // Predicated region
    $region102: #{unet_forward.1} parent=1 // pred_check
      _
    $region103: #{unet_forward.1} parent=1 // pred_check_branch
      %193 = sbr.rel (0) target = $region105
    $region104: #{unet_forward.1} parent=1 // pred_region
      %194 = dma.done [#allocation6], 4096
    $region105: #{unet_forward.1} parent=1 // pred_fallthru
      _
    // Predicated region
    $region106: #{unet_forward.1} parent=1 // pred_check
      _
    $region107: #{unet_forward.1} parent=1 // pred_check_branch
      %196 = sbr.rel (0) target = $region109
    $region108: #{unet_forward.1} parent=1 // pred_region
      %197 = dma.done [#allocation6], 1024
    $region109: #{unet_forward.1} parent=1 // pred_fallthru
      _
    // Predicated region
    $region110: #{unet_forward.1} parent=1 // pred_check
      _
    $region111: #{unet_forward.1} parent=1 // pred_check_branch
      %199 = sbr.rel (0) target = $region113
    $region112: #{unet_forward.1} parent=1 // pred_region
      %200 = dma.done [#allocation9], 16384
    $region113: #{unet_forward.1} parent=1 // pred_fallthru
      _
    // Predicated region
    $region114: #{unet_forward.1} parent=1 // pred_check
      _
    $region115: #{unet_forward.1} parent=1 // pred_check_branch
      %202 = sbr.rel (0) target = $region117
    $region116: #{unet_forward.1} parent=1 // pred_region
      %203 = dma.done [#allocation9], 64
    $region117: #{unet_forward.1} parent=1 // pred_fallthru
      _
    // Predicated region
    $region118: #{unet_forward.1} parent=1 // pred_check
      _
    $region119: #{unet_forward.1} parent=1 // pred_check_branch
      %205 = sbr.rel (0) target = $region121
    $region120: #{unet_forward.1} parent=1 // pred_region
      %206 = dma.done [#allocation12], 128
    $region121: #{unet_forward.1} parent=1 // pred_fallthru
      _
    // Predicated region
    $region122: #{unet_forward.1} parent=1 // pred_check
      _
    $region123: #{unet_forward.1} parent=1 // pred_check_branch
      %208 = sbr.rel (0) target = $region125
    $region124: #{unet_forward.1} parent=1 // pred_region
      %209 = dma.done [#allocation12], 512
    $region125: #{unet_forward.1} parent=1 // pred_fallthru
      _
    // Predicated region
    $region126: #{unet_forward.1} parent=1 // pred_check
      _
    $region127: #{unet_forward.1} parent=1 // pred_check_branch
      %211 = sbr.rel (0) target = $region129
    $region128: #{unet_forward.1} parent=1 // pred_region
      %212 = dma.done [#allocation15], 384
    $region129: #{unet_forward.1} parent=1 // pred_fallthru
      _
    // Predicated region
    $region130: #{unet_forward.1} parent=1 // pred_check
      _
    $region131: #{unet_forward.1} parent=1 // pred_check_branch
      %214 = sbr.rel (0) target = $region133
    $region132: #{unet_forward.1} parent=1 // pred_region
      %215 = dma.done [#allocation15], 128
    $region133: #{unet_forward.1} parent=1 // pred_fallthru
      _
    // Predicated region
    $region134: #{unet_forward.1} parent=1 // pred_check
      _
    $region135: #{unet_forward.1} parent=1 // pred_check_branch
      %217 = sbr.rel (0) target = $region137
    $region136: #{unet_forward.1} parent=1 // pred_region
      %218 = dma.done [#allocation18], 16
    $region137: #{unet_forward.1} parent=1 // pred_fallthru
      _
    // Predicated region
    $region138: #{unet_forward.1} parent=1 // pred_check
      _
    $region139: #{unet_forward.1} parent=1 // pred_check_branch
      %220 = sbr.rel (0) target = $region141
    $region140: #{unet_forward.1} parent=1 // pred_region
      %221 = dma.done [#allocation18], 512
    $region141: #{unet_forward.1} parent=1 // pred_fallthru
      _
    %v223 = vld [vmem:[#allocation3] sm:$0xf]
    %v224 = vld [vmem:[#allocation3 + $0x4] sm:$0xf]
    %v225 = vld [vmem:[#allocation3 + $0x8] sm:$0xf]
    %v226 = vld [vmem:[#allocation3 + $0xc] sm:$0xf]
    %v227 = vld [vmem:[#allocation3 + $0x14] sm:$0xf]
    %v228 = vld [vmem:[#allocation3 + $0x18] sm:$0xf]
    %v229 = vld [vmem:[#allocation3 + $0x1c] sm:$0xf]
    %v230 = vld [vmem:[#allocation3 + $0x20] sm:$0xf]
    %v231 = vld [vmem:[%s2] sm:$0x1]
    %v232 = vld [vmem:[%s2 + $0x1] sm:$0x1]
    %v233 = vld [vmem:[%s2 + $0x2] sm:$0x1]
    %v234 = vld [vmem:[%s2 + $0x3] sm:$0x1]
    %v235 = vld [vmem:[%s2 + $0x5] sm:$0x1]
    %v236 = vld [vmem:[%s2 + $0x6] sm:$0x1]
    %v237 = vld [vmem:[%s2 + $0x7] sm:$0x1]
    %v238 = vld [vmem:[%s2 + $0x8] sm:$0x1]
    %v239 = vld [vmem:[%s3] sm:$0x1]
    %v240 = vld [vmem:[%s3 + $0x1] sm:$0x1]
    %v241 = vld [vmem:[%s3 + $0x2] sm:$0x1]
    %v242 = vld [vmem:[%s3 + $0x3] sm:$0x1]
    %v243 = vld [vmem:[%s3 + $0x5] sm:$0x1]
    %v244 = vld [vmem:[%s3 + $0x6] sm:$0x1]
    %v245 = vld [vmem:[%s3 + $0x7] sm:$0x1]
    %v246 = vld [vmem:[%s3 + $0x8] sm:$0x1]
    %v247 = vld [vmem:[%s0] sm:$0xf]
    %v248 = vld [vmem:[#allocation10] sm:$0xf]
    %v249 = vld [vmem:[%s9] sm:$0xff]
    %v251 = vlaneseq
    %v252 = vshrl.u32 %v251, 7
    %v253 = vsub.s32 0, %v252
    %v254 = vrot.slane %v247, %v253
    %v255 = vlaneseq
    %v256 = vshrl.u32 %v255, 7
    %v257 = vsub.s32 1, %v256
    %v258 = vrot.slane %v247, %v257
    %v259 = vlaneseq
    %v260 = vshrl.u32 %v259, 7
    %v261 = vsub.s32 2, %v260
    %v262 = vrot.slane %v247, %v261
    %v263 = vlaneseq
    %v264 = vshrl.u32 %v263, 7
    %v265 = vsub.s32 3, %v264
    %v266 = vrot.slane %v247, %v265
    %267 = vrot.lane.b32.xlu0 %v254, 17
    %v268 = vpop.permute.xlu0 %267
    %269 = vrot.lane.b32.xlu0 %v258, 17
    %v270 = vpop.permute.xlu0 %269
    %271 = vrot.lane.b32.xlu0 %v262, 17
    %v272 = vpop.permute.xlu0 %271
    %273 = vrot.lane.b32.xlu0 %v266, 17
    %v274 = vpop.permute.xlu0 %273
    %vm275 = vcmask 138240
    %v276 = vsel %vm275, %v268, %v270
    %v277 = vsel %vm275, %v270, %v272
    %v278 = vsel %vm275, %v272, %v274
    %v283 = vsel %vm275, 0.0, %v268
    %v285 = vlaneseq
    %v286 = vshrl.u32 %v285, 7
    %v287 = vsub.s32 0, %v286
    %v288 = vrot.slane %v223, %v287
    %v289 = vlaneseq
    %v290 = vshrl.u32 %v289, 7
    %v291 = vsub.s32 1, %v290
    %v292 = vrot.slane %v223, %v291
    %v293 = vlaneseq
    %v294 = vshrl.u32 %v293, 7
    %v295 = vsub.s32 2, %v294
    %v296 = vrot.slane %v223, %v295
    %v297 = vlaneseq
    %v298 = vshrl.u32 %v297, 7
    %v299 = vsub.s32 3, %v298
    %v300 = vrot.slane %v223, %v299
    %v305 = vmul.f32 %v283, %v288
    %v306 = vmul.f32 %v276, %v292
    %v307 = vmul.f32 %v277, %v296
    %v308 = vmul.f32 %v278, %v300
    %309 = vrot.lane.b32.xlu0 %v254, 16
    %v310 = vpop.permute.xlu0 %309
    %311 = vrot.lane.b32.xlu0 %v258, 16
    %v312 = vpop.permute.xlu0 %311
    %313 = vrot.lane.b32.xlu0 %v262, 16
    %v314 = vpop.permute.xlu0 %313
    %315 = vrot.lane.b32.xlu0 %v266, 16
    %v316 = vpop.permute.xlu0 %315
    %vm317 = vcmask 130048
    %v318 = vsel %vm317, %v310, %v312
    %v319 = vsel %vm317, %v312, %v314
    %v320 = vsel %vm317, %v314, %v316
    %v325 = vsel %vm317, 0.0, %v310
    %v327 = vlaneseq
    %v328 = vshrl.u32 %v327, 7
    %v329 = vsub.s32 0, %v328
    %v330 = vrot.slane %v224, %v329
    %v331 = vlaneseq
    %v332 = vshrl.u32 %v331, 7
    %v333 = vsub.s32 1, %v332
    %v334 = vrot.slane %v224, %v333
    %v335 = vlaneseq
    %v336 = vshrl.u32 %v335, 7
    %v337 = vsub.s32 2, %v336
    %v338 = vrot.slane %v224, %v337
    %v339 = vlaneseq
    %v340 = vshrl.u32 %v339, 7
    %v341 = vsub.s32 3, %v340
    %v342 = vrot.slane %v224, %v341
    %v347 = vmul.f32 %v325, %v330
    %v348 = vmul.f32 %v318, %v334
    %v349 = vmul.f32 %v319, %v338
    %v350 = vmul.f32 %v320, %v342
    %351 = vrot.lane.b32.xlu0 %v254, 15
    %v352 = vpop.permute.xlu0 %351
    %353 = vrot.lane.b32.xlu0 %v258, 15
    %v354 = vpop.permute.xlu0 %353
    %355 = vrot.lane.b32.xlu0 %v262, 15
    %v356 = vpop.permute.xlu0 %355
    %357 = vrot.lane.b32.xlu0 %v266, 15
    %v358 = vpop.permute.xlu0 %357
    %vm359 = vcmask 121856
    %v360 = vsel %vm359, %v352, %v354
    %v361 = vsel %vm359, %v354, %v356
    %v362 = vsel %vm359, %v356, %v358
    %v367 = vsel %vm359, 0.0, %v352
    %v369 = vlaneseq
    %v370 = vshrl.u32 %v369, 7
    %v371 = vsub.s32 0, %v370
    %v372 = vrot.slane %v225, %v371
    %v373 = vlaneseq
    %v374 = vshrl.u32 %v373, 7
    %v375 = vsub.s32 1, %v374
    %v376 = vrot.slane %v225, %v375
    %v377 = vlaneseq
    %v378 = vshrl.u32 %v377, 7
    %v379 = vsub.s32 2, %v378
    %v380 = vrot.slane %v225, %v379
    %v381 = vlaneseq
    %v382 = vshrl.u32 %v381, 7
    %v383 = vsub.s32 3, %v382
    %v384 = vrot.slane %v225, %v383
    %v389 = vmul.f32 %v367, %v372
    %v390 = vmul.f32 %v360, %v376
    %v391 = vmul.f32 %v361, %v380
    %v392 = vmul.f32 %v362, %v384
    %393 = vrot.lane.b32.xlu0 %v254, 1
    %v394 = vpop.permute.xlu0 %393
    %395 = vrot.lane.b32.xlu0 %v258, 1
    %v396 = vpop.permute.xlu0 %395
    %397 = vrot.lane.b32.xlu0 %v262, 1
    %v398 = vpop.permute.xlu0 %397
    %399 = vrot.lane.b32.xlu0 %v266, 1
    %v400 = vpop.permute.xlu0 %399
    %vm401 = vcmask 7168
    %v402 = vsel %vm401, %v394, %v396
    %v403 = vsel %vm401, %v396, %v398
    %v404 = vsel %vm401, %v398, %v400
    %v409 = vsel %vm401, 0.0, %v394
    %v411 = vlaneseq
    %v412 = vshrl.u32 %v411, 7
    %v413 = vsub.s32 0, %v412
    %v414 = vrot.slane %v226, %v413
    %v415 = vlaneseq
    %v416 = vshrl.u32 %v415, 7
    %v417 = vsub.s32 1, %v416
    %v418 = vrot.slane %v226, %v417
    %v419 = vlaneseq
    %v420 = vshrl.u32 %v419, 7
    %v421 = vsub.s32 2, %v420
    %v422 = vrot.slane %v226, %v421
    %v423 = vlaneseq
    %v424 = vshrl.u32 %v423, 7
    %v425 = vsub.s32 3, %v424
    %v426 = vrot.slane %v226, %v425
    %v431 = vmul.f32 %v409, %v414
    %v432 = vmul.f32 %v402, %v418
    %v433 = vmul.f32 %v403, %v422
    %v434 = vmul.f32 %v404, %v426
    %435 = vrot.lane.b32.xlu0 %v254, 127
    %v436 = vpop.permute.xlu0 %435
    %437 = vrot.lane.b32.xlu0 %v258, 127
    %v438 = vpop.permute.xlu0 %437
    %439 = vrot.lane.b32.xlu0 %v262, 127
    %v440 = vpop.permute.xlu0 %439
    %441 = vrot.lane.b32.xlu0 %v266, 127
    %v442 = vpop.permute.xlu0 %441
    %vm443 = vcmask 1039360
    %v444 = vsel %vm443, %v436, %v438
    %v445 = vsel %vm443, %v438, %v440
    %v446 = vsel %vm443, %v440, %v442
    %v451 = vsel %vm443, %v442, 0.0
    %v453 = vlaneseq
    %v454 = vshrl.u32 %v453, 7
    %v455 = vsub.s32 0, %v454
    %v456 = vrot.slane %v227, %v455
    %v457 = vlaneseq
    %v458 = vshrl.u32 %v457, 7
    %v459 = vsub.s32 1, %v458
    %v460 = vrot.slane %v227, %v459
    %v461 = vlaneseq
    %v462 = vshrl.u32 %v461, 7
    %v463 = vsub.s32 2, %v462
    %v464 = vrot.slane %v227, %v463
    %v465 = vlaneseq
    %v466 = vshrl.u32 %v465, 7
    %v467 = vsub.s32 3, %v466
    %v468 = vrot.slane %v227, %v467
    %v473 = vmul.f32 %v444, %v456
    %v474 = vmul.f32 %v445, %v460
    %v475 = vmul.f32 %v446, %v464
    %v476 = vmul.f32 %v451, %v468
    %477 = vrot.lane.b32.xlu0 %v254, 113
    %v478 = vpop.permute.xlu0 %477
    %479 = vrot.lane.b32.xlu0 %v258, 113
    %v480 = vpop.permute.xlu0 %479
    %481 = vrot.lane.b32.xlu0 %v262, 113
    %v482 = vpop.permute.xlu0 %481
    %483 = vrot.lane.b32.xlu0 %v266, 113
    %v484 = vpop.permute.xlu0 %483
    %vm485 = vcmask 924672
    %v486 = vsel %vm485, %v478, %v480
    %v487 = vsel %vm485, %v480, %v482
    %v488 = vsel %vm485, %v482, %v484
    %v493 = vsel %vm485, %v484, 0.0
    %v495 = vlaneseq
    %v496 = vshrl.u32 %v495, 7
    %v497 = vsub.s32 0, %v496
    %v498 = vrot.slane %v228, %v497
    %v499 = vlaneseq
    %v500 = vshrl.u32 %v499, 7
    %v501 = vsub.s32 1, %v500
    %v502 = vrot.slane %v228, %v501
    %v503 = vlaneseq
    %v504 = vshrl.u32 %v503, 7
    %v505 = vsub.s32 2, %v504
    %v506 = vrot.slane %v228, %v505
    %v507 = vlaneseq
    %v508 = vshrl.u32 %v507, 7
    %v509 = vsub.s32 3, %v508
    %v510 = vrot.slane %v228, %v509
    %v515 = vmul.f32 %v486, %v498
    %v516 = vmul.f32 %v487, %v502
    %v517 = vmul.f32 %v488, %v506
    %v518 = vmul.f32 %v493, %v510
    %519 = vrot.lane.b32.xlu0 %v254, 112
    %v520 = vpop.permute.xlu0 %519
    %521 = vrot.lane.b32.xlu0 %v258, 112
    %v522 = vpop.permute.xlu0 %521
    %523 = vrot.lane.b32.xlu0 %v262, 112
    %v524 = vpop.permute.xlu0 %523
    %525 = vrot.lane.b32.xlu0 %v266, 112
    %v526 = vpop.permute.xlu0 %525
    %vm527 = vcmask 916480
    %v528 = vsel %vm527, %v520, %v522
    %v529 = vsel %vm527, %v522, %v524
    %v530 = vsel %vm527, %v524, %v526
    %v535 = vsel %vm527, %v526, 0.0
    %v537 = vlaneseq
    %v538 = vshrl.u32 %v537, 7
    %v539 = vsub.s32 0, %v538
    %v540 = vrot.slane %v229, %v539
    %v541 = vlaneseq
    %v542 = vshrl.u32 %v541, 7
    %v543 = vsub.s32 1, %v542
    %v544 = vrot.slane %v229, %v543
    %v545 = vlaneseq
    %v546 = vshrl.u32 %v545, 7
    %v547 = vsub.s32 2, %v546
    %v548 = vrot.slane %v229, %v547
    %v549 = vlaneseq
    %v550 = vshrl.u32 %v549, 7
    %v551 = vsub.s32 3, %v550
    %v552 = vrot.slane %v229, %v551
    %v557 = vmul.f32 %v528, %v540
    %v558 = vmul.f32 %v529, %v544
    %v559 = vmul.f32 %v530, %v548
    %v560 = vmul.f32 %v535, %v552
    %561 = vrot.lane.b32.xlu0 %v254, 111
    %v562 = vpop.permute.xlu0 %561
    %563 = vrot.lane.b32.xlu0 %v258, 111
    %v564 = vpop.permute.xlu0 %563
    %565 = vrot.lane.b32.xlu0 %v262, 111
    %v566 = vpop.permute.xlu0 %565
    %567 = vrot.lane.b32.xlu0 %v266, 111
    %v568 = vpop.permute.xlu0 %567
    %vm569 = vcmask 908288
    %v570 = vsel %vm569, %v562, %v564
    %v571 = vsel %vm569, %v564, %v566
    %v572 = vsel %vm569, %v566, %v568
    %v577 = vsel %vm569, %v568, 0.0
    %v579 = vlaneseq
    %v580 = vshrl.u32 %v579, 7
    %v581 = vsub.s32 0, %v580
    %v582 = vrot.slane %v230, %v581
    %v583 = vlaneseq
    %v584 = vshrl.u32 %v583, 7
    %v585 = vsub.s32 1, %v584
    %v586 = vrot.slane %v230, %v585
    %v587 = vlaneseq
    %v588 = vshrl.u32 %v587, 7
    %v589 = vsub.s32 2, %v588
    %v590 = vrot.slane %v230, %v589
    %v591 = vlaneseq
    %v592 = vshrl.u32 %v591, 7
    %v593 = vsub.s32 3, %v592
    %v594 = vrot.slane %v230, %v593
    %v599 = vmul.f32 %v570, %v582
    %v600 = vmul.f32 %v571, %v586
    %v601 = vmul.f32 %v572, %v590
    %v602 = vmul.f32 %v577, %v594
    %v607 = vrot.slane %v347, 7
    %v608 = vrot.slane %v348, 7
    %v609 = vrot.slane %v349, 7
    %v610 = vrot.slane %v350, 7
    %v619 = vrot.slane %v389, 6
    %v620 = vrot.slane %v390, 6
    %v621 = vrot.slane %v391, 6
    %v622 = vrot.slane %v392, 6
    %v631 = vrot.slane %v431, 5
    %v632 = vrot.slane %v432, 5
    %v633 = vrot.slane %v433, 5
    %v634 = vrot.slane %v434, 5
    %v647 = vrot.slane %v473, 3
    %v648 = vrot.slane %v474, 3
    %v649 = vrot.slane %v475, 3
    %v650 = vrot.slane %v476, 3
    %v659 = vrot.slane %v515, 2
    %v660 = vrot.slane %v516, 2
    %v661 = vrot.slane %v517, 2
    %v662 = vrot.slane %v518, 2
    %v671 = vrot.slane %v557, 1
    %v672 = vrot.slane %v558, 1
    %v673 = vrot.slane %v559, 1
    %v674 = vrot.slane %v560, 1
    %vm679 = vcmask 1040384
    %v680 = vsel %vm679, %v305, %v607
    %v681 = vsel %vm679, %v306, %v608
    %v682 = vsel %vm679, %v307, %v609
    %v683 = vsel %vm679, %v308, %v610
    %vm684 = vcmask 1041408
    %v685 = vsel %vm684, %v680, %v619
    %v686 = vsel %vm684, %v681, %v620
    %v687 = vsel %vm684, %v682, %v621
    %v688 = vsel %vm684, %v683, %v622
    %vm689 = vcmask 1042432
    %v690 = vsel %vm689, %v685, %v631
    %v691 = vsel %vm689, %v686, %v632
    %v692 = vsel %vm689, %v687, %v633
    %v693 = vsel %vm689, %v688, %v634
    %vm694 = vcmask 1043456
    %v695 = vsel %vm694, %v690, %v254
    %v696 = vsel %vm694, %v691, %v258
    %v697 = vsel %vm694, %v692, %v262
    %v698 = vsel %vm694, %v693, %v266
    %vm699 = vcmask 1044480
    %v700 = vsel %vm699, %v695, %v647
    %v701 = vsel %vm699, %v696, %v648
    %v702 = vsel %vm699, %v697, %v649
    %v703 = vsel %vm699, %v698, %v650
    %vm704 = vcmask 1045504
    %v705 = vsel %vm704, %v700, %v659
    %v706 = vsel %vm704, %v701, %v660
    %v707 = vsel %vm704, %v702, %v661
    %v708 = vsel %vm704, %v703, %v662
    %vm709 = vcmask 1046528
    %v710 = vsel %vm709, %v705, %v671
    %v711 = vsel %vm709, %v706, %v672
    %v712 = vsel %vm709, %v707, %v673
    %v713 = vsel %vm709, %v708, %v674
    %v714 = vpack.c.bf16 %v599, %v710
    %v715 = vpack.c.bf16 %v600, %v711
    %v716 = vpack.c.bf16 %v601, %v712
    %v717 = vpack.c.bf16 %v602, %v713
    %719 = vset.pattern.permute.xlu0 0
    %720 = vperm.xlu0 %719, %v249
    %v721 = vpop.permute.xlu0 %720
    %vm723 = vcmask 72704
    %v725 = vsel %vm723, %v248, 0
    %v727 = vsel %vm694, 4294967295, 65535
    %v728 = vsel %vm699, %v727, 0
    %v730 = vand.u32 %v714, %v728
    %v733 = vand.u32 %v715, %v728
    %v736 = vand.u32 %v716, %v728
    %v739 = vand.u32 %v717, %v728
    %741 = vmatprep.subr.bf16.mxu0 0
    %742 = vmatpush1.bf16.msra.mxu0 0
    %743 = vmatprep.subr.bf16.mxu0 0
    %744 = vmatpush1.bf16.msra.mxu0 0
    %745 = vmatprep.subr.bf16.mxu0 0
    %746 = vmatpush1.bf16.msra.mxu0 0
    %747 = vmatprep.subr.bf16.mxu0 0
    %748 = vmatpush1.bf16.msra.mxu0 0
    %749 = vmatprep.subr.bf16.mxu0 0
    %750 = vmatpush1.bf16.msra.mxu0 0
    %751 = vmatprep.subr.bf16.mxu0 0
    %752 = vmatpush1.bf16.msra.mxu0 0
    %753 = vmatprep.subr.bf16.mxu0 0
    %754 = vmatpush1.bf16.msra.mxu0 0
    %755 = vmatprep.subr.bf16.mxu0 %v733
    %756 = vmatpush1.bf16.msra.mxu0 %v730
    %757 = vmatprep.subr.bf16.mxu0 0
    %758 = vmatpush2.bf16.msra.mxu0 0
    %759 = vmatprep.subr.bf16.mxu0 0
    %760 = vmatpush2.bf16.msra.mxu0 0
    %761 = vmatprep.subr.bf16.mxu0 0
    %762 = vmatpush2.bf16.msra.mxu0 0
    %763 = vmatprep.subr.bf16.mxu0 0
    %764 = vmatpush2.bf16.msra.mxu0 0
    %765 = vmatprep.subr.bf16.mxu0 0
    %766 = vmatpush2.bf16.msra.mxu0 0
    %767 = vmatprep.subr.bf16.mxu0 0
    %768 = vmatpush2.bf16.msra.mxu0 0
    %769 = vmatprep.subr.bf16.mxu0 0
    %770 = vmatpush2.bf16.msra.mxu0 0
    %771 = vmatprep.subr.bf16.mxu0 0
    %772 = vmatpush2.bf16.msra.mxu0 0
    %773 = vmatprep.mubr.bf16.mxu0 0
    %774 = vmatmul.mubr.bf16.gmra.mxu0 %v725
    %v775 = vpop.f32.mrf.mxu0
    %v776 = vadd.f32 %v721, %v775
    %v777 = vpop.f32.mrf.mxu0
    %v778 = vadd.f32 %v721, %v777
    %v779 = vpop.f32.mrf.mxu0
    %v780 = vpop.f32.mrf.mxu0
    %781 = vdwg.mxu0
    %782 = vmatprep.subr.bf16.mxu0 0
    %783 = vmatpush1.bf16.msra.mxu0 0
    %784 = vmatprep.subr.bf16.mxu0 0
    %785 = vmatpush1.bf16.msra.mxu0 0
    %786 = vmatprep.subr.bf16.mxu0 0
    %787 = vmatpush1.bf16.msra.mxu0 0
    %788 = vmatprep.subr.bf16.mxu0 0
    %789 = vmatpush1.bf16.msra.mxu0 0
    %790 = vmatprep.subr.bf16.mxu0 0
    %791 = vmatpush1.bf16.msra.mxu0 0
    %792 = vmatprep.subr.bf16.mxu0 0
    %793 = vmatpush1.bf16.msra.mxu0 0
    %794 = vmatprep.subr.bf16.mxu0 0
    %795 = vmatpush1.bf16.msra.mxu0 0
    %796 = vmatprep.subr.bf16.mxu0 %v739
    %797 = vmatpush1.bf16.msra.mxu0 %v736
    %798 = vmatprep.subr.bf16.mxu0 0
    %799 = vmatpush2.bf16.msra.mxu0 0
    %800 = vmatprep.subr.bf16.mxu0 0
    %801 = vmatpush2.bf16.msra.mxu0 0
    %802 = vmatprep.subr.bf16.mxu0 0
    %803 = vmatpush2.bf16.msra.mxu0 0
    %804 = vmatprep.subr.bf16.mxu0 0
    %805 = vmatpush2.bf16.msra.mxu0 0
    %806 = vmatprep.subr.bf16.mxu0 0
    %807 = vmatpush2.bf16.msra.mxu0 0
    %808 = vmatprep.subr.bf16.mxu0 0
    %809 = vmatpush2.bf16.msra.mxu0 0
    %810 = vmatprep.subr.bf16.mxu0 0
    %811 = vmatpush2.bf16.msra.mxu0 0
    %812 = vmatprep.subr.bf16.mxu0 0
    %813 = vmatpush2.bf16.msra.mxu0 0
    %814 = vmatprep.mubr.bf16.mxu0 0
    %815 = vmatmul.mubr.bf16.gmra.mxu0 %v725
    %v816 = vpop.f32.mrf.mxu0
    %v817 = vadd.f32 %v721, %v816
    %v818 = vpop.f32.mrf.mxu0
    %v819 = vadd.f32 %v721, %v818
    %v820 = vpop.f32.mrf.mxu0
    %v821 = vpop.f32.mrf.mxu0
    %822 = vdwg.mxu0
    %v823 = vmax.f32 %v776, 0.0
    %v824 = vmax.f32 %v778, 0.0
    %v825 = vmax.f32 %v817, 0.0
    %v826 = vmax.f32 %v819, 0.0
    %v827 = vadd.f32 %v823, %v824
    %v828 = vadd.f32 %v827, %v825
    %v829 = vadd.f32 %v828, %v826
    %830 = vadd.xlane.f32.xlu0 %v829
    %v831 = vpop.xlane.xlu0 %830
    %v832 = vmul.f32 %v831, 0.001953125
    %v833 = vmul.f32 %v823, %v823
    %v834 = vmul.f32 %v824, %v824
    %v835 = vmul.f32 %v825, %v825
    %v836 = vmul.f32 %v826, %v826
    %v837 = vadd.f32 %v833, %v834
    %v838 = vadd.f32 %v837, %v835
    %v839 = vadd.f32 %v838, %v836
    %840 = vadd.xlane.f32.xlu0 %v839
    %v841 = vpop.xlane.xlu0 %840
    %v842 = vmul.f32 %v841, 0.001953125
    %v843 = vmul.f32 %v832, %v832
    %v844 = vsub.f32 %v842, %v843
    %v845 = vmax.f32 %v844, 0.0
    %v846 = vsub.f32 %v823, %v832
    %v847 = vsub.f32 %v824, %v832
    %v848 = vsub.f32 %v825, %v832
    %v849 = vsub.f32 %v826, %v832
    %v850 = vadd.f32 %v845, 1e-05
    %v851 = vrsqrt.pop %v850
    %v852 = vmul.f32 %v846, %v851
    %v853 = vmul.f32 %v847, %v851
    %v854 = vmul.f32 %v848, %v851
    %v855 = vmul.f32 %v849, %v851
    %v856 = vld [vmem:[#allocation5] sm:$0xf]
    %v857 = vld [vmem:[#allocation5 + $0x4] sm:$0xf]
    %v858 = vld [vmem:[#allocation5 + $0x8] sm:$0xf]
    %v859 = vld [vmem:[#allocation5 + $0xc] sm:$0xf]
    %v860 = vld [vmem:[#allocation5 + $0x10] sm:$0xf]
    %v861 = vld [vmem:[#allocation5 + $0x14] sm:$0xf]
    %v862 = vld [vmem:[#allocation5 + $0x18] sm:$0xf]
    %v863 = vld [vmem:[#allocation5 + $0x1c] sm:$0xf]
    %v864 = vld [vmem:[#allocation5 + $0x20] sm:$0xf]
    %v865 = vld [vmem:[#allocation5 + $0x24] sm:$0xf]
    %v866 = vld [vmem:[#allocation5 + $0x28] sm:$0xf]
    %v867 = vld [vmem:[#allocation5 + $0x2c] sm:$0xf]
    %v868 = vld [vmem:[#allocation5 + $0x30] sm:$0xf]
    %v869 = vld [vmem:[#allocation5 + $0x34] sm:$0xf]
    %v870 = vld [vmem:[#allocation5 + $0x38] sm:$0xf]
    %v871 = vld [vmem:[#allocation5 + $0x3c] sm:$0xf]
    %v872 = vld [vmem:[#allocation5 + $0x40] sm:$0xf]
    %v873 = vld [vmem:[#allocation5 + $0x44] sm:$0xf]
    %v874 = vld [vmem:[#allocation5 + $0x48] sm:$0xf]
    %v875 = vld [vmem:[#allocation5 + $0x4c] sm:$0xf]
    %v876 = vld [vmem:[#allocation5 + $0x50] sm:$0xf]
    %v877 = vld [vmem:[#allocation5 + $0x54] sm:$0xf]
    %v878 = vld [vmem:[#allocation5 + $0x58] sm:$0xf]
    %v879 = vld [vmem:[#allocation5 + $0x5c] sm:$0xf]
    %v880 = vld [vmem:[#allocation5 + $0x60] sm:$0xf]
    %v881 = vld [vmem:[#allocation5 + $0x64] sm:$0xf]
    %v882 = vld [vmem:[#allocation5 + $0x68] sm:$0xf]
    %v883 = vld [vmem:[#allocation5 + $0x6c] sm:$0xf]
    %v884 = vld [vmem:[#allocation5 + $0x70] sm:$0xf]
    %v885 = vld [vmem:[#allocation5 + $0x74] sm:$0xf]
    %v886 = vld [vmem:[#allocation5 + $0x78] sm:$0xf]
    %v887 = vld [vmem:[#allocation5 + $0x7c] sm:$0xf]
    %v888 = vld [vmem:[#allocation5 + $0x80] sm:$0xf]
    %v889 = vld [vmem:[#allocation5 + $0x84] sm:$0xf]
    %v890 = vld [vmem:[#allocation5 + $0x88] sm:$0xf]
    %v891 = vld [vmem:[#allocation5 + $0x8c] sm:$0xf]
    %v892 = vld [vmem:[#allocation5 + $0x90] sm:$0xf]
    %v893 = vld [vmem:[#allocation5 + $0x94] sm:$0xf]
    %v894 = vld [vmem:[#allocation5 + $0x98] sm:$0xf]
    %v895 = vld [vmem:[#allocation5 + $0x9c] sm:$0xf]
    %v896 = vld [vmem:[#allocation5 + $0xa0] sm:$0xf]
    %v897 = vld [vmem:[#allocation5 + $0xa4] sm:$0xf]
    %v898 = vld [vmem:[#allocation5 + $0xa8] sm:$0xf]
    %v899 = vld [vmem:[#allocation5 + $0xac] sm:$0xf]
    %v900 = vld [vmem:[#allocation5 + $0xb0] sm:$0xf]
    %v901 = vld [vmem:[#allocation5 + $0xb4] sm:$0xf]
    %v902 = vld [vmem:[#allocation5 + $0xb8] sm:$0xf]
    %v903 = vld [vmem:[#allocation5 + $0xbc] sm:$0xf]
    %v904 = vld [vmem:[#allocation5 + $0xc0] sm:$0xf]
    %v905 = vld [vmem:[#allocation5 + $0xc4] sm:$0xf]
    %v906 = vld [vmem:[#allocation5 + $0xc8] sm:$0xf]
    %v907 = vld [vmem:[#allocation5 + $0xcc] sm:$0xf]
    %v908 = vld [vmem:[#allocation5 + $0xd0] sm:$0xf]
    %v909 = vld [vmem:[#allocation5 + $0xd4] sm:$0xf]
    %v910 = vld [vmem:[#allocation5 + $0xd8] sm:$0xf]
    %v911 = vld [vmem:[#allocation5 + $0xdc] sm:$0xf]
    %v912 = vld [vmem:[#allocation5 + $0xe0] sm:$0xf]
    %v913 = vld [vmem:[#allocation5 + $0xe4] sm:$0xf]
    %v914 = vld [vmem:[#allocation5 + $0xe8] sm:$0xf]
    %v915 = vld [vmem:[#allocation5 + $0xec] sm:$0xf]
    %v916 = vld [vmem:[#allocation5 + $0xf0] sm:$0xf]
    %v917 = vld [vmem:[#allocation5 + $0xf4] sm:$0xf]
    %v918 = vld [vmem:[#allocation5 + $0xf8] sm:$0xf]
    %v919 = vld [vmem:[#allocation5 + $0xfc] sm:$0xf]
    %924 = vrot.lane.b32.xlu0 %v852, 127
    %v925 = vpop.permute.xlu0 %924
    %926 = vrot.lane.b32.xlu0 %v853, 127
    %v927 = vpop.permute.xlu0 %926
    %928 = vrot.lane.b32.xlu0 %v854, 127
    %v929 = vpop.permute.xlu0 %928
    %930 = vrot.lane.b32.xlu0 %v855, 127
    %v931 = vpop.permute.xlu0 %930
    %v932 = vsel %vm443, %v925, %v927
    %v933 = vsel %vm443, %v927, %v929
    %v934 = vsel %vm443, %v929, %v931
    %v939 = vsel %vm443, %v931, 0.0
    %v940 = vmax.f32 %v852, %v932
    %v941 = vmax.f32 %v853, %v933
    %v942 = vmax.f32 %v854, %v934
    %v943 = vmax.f32 %v855, %v939
    %948 = vrot.lane.b32.xlu0 %v940, 112
    %v949 = vpop.permute.xlu0 %948
    %950 = vrot.lane.b32.xlu0 %v941, 112
    %v951 = vpop.permute.xlu0 %950
    %952 = vrot.lane.b32.xlu0 %v942, 112
    %v953 = vpop.permute.xlu0 %952
    %954 = vrot.lane.b32.xlu0 %v943, 112
    %v955 = vpop.permute.xlu0 %954
    %v956 = vsel %vm527, %v949, %v951
    %v957 = vsel %vm527, %v951, %v953
    %v958 = vsel %vm527, %v953, %v955
    %v963 = vsel %vm527, %v955, 0.0
    %v964 = vmax.f32 %v940, %v956
    %v965 = vmax.f32 %v941, %v957
    %v966 = vmax.f32 %v942, %v958
    %v967 = vmax.f32 %v943, %v963
    %v968 = vpack.c.bf16 %v964, %v964
    %v969 = vpack.c.bf16 %v965, %v965
    %v970 = vpack.c.bf16 %v966, %v966
    %v971 = vpack.c.bf16 %v967, %v967
    %v1036 = vunpack.c.l.b16 %v856
    %v1037 = vunpack.c.l.b16 %v857
    %v1038 = vunpack.c.l.b16 %v858
    %v1039 = vunpack.c.l.b16 %v859
    %v1040 = vunpack.c.l.b16 %v860
    %v1041 = vunpack.c.l.b16 %v861
    %v1042 = vunpack.c.l.b16 %v862
    %v1043 = vunpack.c.l.b16 %v863
    %v1044 = vunpack.c.l.b16 %v864
    %v1045 = vunpack.c.l.b16 %v865
    %v1046 = vunpack.c.l.b16 %v866
    %v1047 = vunpack.c.l.b16 %v867
    %v1048 = vunpack.c.l.b16 %v868
    %v1049 = vunpack.c.l.b16 %v869
    %v1050 = vunpack.c.l.b16 %v870
    %v1051 = vunpack.c.l.b16 %v871
    %v1052 = vunpack.c.l.b16 %v872
    %v1053 = vunpack.c.l.b16 %v873
    %v1054 = vunpack.c.l.b16 %v874
    %v1055 = vunpack.c.l.b16 %v875
    %v1056 = vunpack.c.l.b16 %v876
    %v1057 = vunpack.c.l.b16 %v877
    %v1058 = vunpack.c.l.b16 %v878
    %v1059 = vunpack.c.l.b16 %v879
    %v1060 = vunpack.c.l.b16 %v880
    %v1061 = vunpack.c.l.b16 %v881
    %v1062 = vunpack.c.l.b16 %v882
    %v1063 = vunpack.c.l.b16 %v883
    %v1064 = vunpack.c.l.b16 %v884
    %v1065 = vunpack.c.l.b16 %v885
    %v1066 = vunpack.c.l.b16 %v886
    %v1067 = vunpack.c.l.b16 %v887
    %v1068 = vunpack.c.l.b16 %v888
    %v1069 = vunpack.c.l.b16 %v889
    %v1070 = vunpack.c.l.b16 %v890
    %v1071 = vunpack.c.l.b16 %v891
    %v1072 = vunpack.c.l.b16 %v892
    %v1073 = vunpack.c.l.b16 %v893
    %v1074 = vunpack.c.l.b16 %v894
    %v1075 = vunpack.c.l.b16 %v895
    %v1076 = vunpack.c.l.b16 %v896
    %v1077 = vunpack.c.l.b16 %v897
    %v1078 = vunpack.c.l.b16 %v898
    %v1079 = vunpack.c.l.b16 %v899
    %v1080 = vunpack.c.l.b16 %v900
    %v1081 = vunpack.c.l.b16 %v901
    %v1082 = vunpack.c.l.b16 %v902
    %v1083 = vunpack.c.l.b16 %v903
    %v1084 = vunpack.c.l.b16 %v904
    %v1085 = vunpack.c.l.b16 %v905
    %v1086 = vunpack.c.l.b16 %v906
    %v1087 = vunpack.c.l.b16 %v907
    %v1088 = vunpack.c.l.b16 %v908
    %v1089 = vunpack.c.l.b16 %v909
    %v1090 = vunpack.c.l.b16 %v910
    %v1091 = vunpack.c.l.b16 %v911
    %v1092 = vunpack.c.l.b16 %v912
    %v1093 = vunpack.c.l.b16 %v913
    %v1094 = vunpack.c.l.b16 %v914
    %v1095 = vunpack.c.l.b16 %v915
    %v1096 = vunpack.c.l.b16 %v916
    %v1097 = vunpack.c.l.b16 %v917
    %v1098 = vunpack.c.l.b16 %v918
    %v1099 = vunpack.c.l.b16 %v919
    %v1100 = vpack.c.b16 %v1037, %v1036
    %v1101 = vpack.c.b16 %v1039, %v1038
    %v1102 = vpack.c.b16 %v1041, %v1040
    %v1103 = vpack.c.b16 %v1043, %v1042
    %v1104 = vpack.c.b16 %v1045, %v1044
    %v1105 = vpack.c.b16 %v1047, %v1046
    %v1106 = vpack.c.b16 %v1049, %v1048
    %v1107 = vpack.c.b16 %v1051, %v1050
    %v1108 = vpack.c.b16 %v1053, %v1052
    %v1109 = vpack.c.b16 %v1055, %v1054
    %v1110 = vpack.c.b16 %v1057, %v1056
    %v1111 = vpack.c.b16 %v1059, %v1058
    %v1112 = vpack.c.b16 %v1061, %v1060
    %v1113 = vpack.c.b16 %v1063, %v1062
    %v1114 = vpack.c.b16 %v1065, %v1064
    %v1115 = vpack.c.b16 %v1067, %v1066
    %v1116 = vpack.c.b16 %v1069, %v1068
    %v1117 = vpack.c.b16 %v1071, %v1070
    %v1118 = vpack.c.b16 %v1073, %v1072
    %v1119 = vpack.c.b16 %v1075, %v1074
    %v1120 = vpack.c.b16 %v1077, %v1076
    %v1121 = vpack.c.b16 %v1079, %v1078
    %v1122 = vpack.c.b16 %v1081, %v1080
    %v1123 = vpack.c.b16 %v1083, %v1082
    %v1124 = vpack.c.b16 %v1085, %v1084
    %v1125 = vpack.c.b16 %v1087, %v1086
    %v1126 = vpack.c.b16 %v1089, %v1088
    %v1127 = vpack.c.b16 %v1091, %v1090
    %v1128 = vpack.c.b16 %v1093, %v1092
    %v1129 = vpack.c.b16 %v1095, %v1094
    %v1130 = vpack.c.b16 %v1097, %v1096
    %v1131 = vpack.c.b16 %v1099, %v1098
    %1164 = vmatprep.subr.bf16.mxu0 0
    %1165 = vmatpush1.bf16.msra.mxu0 %v1107
    %1166 = vmatprep.subr.bf16.mxu0 0
    %1167 = vmatpush1.bf16.msra.mxu0 %v1106
    %1168 = vmatprep.subr.bf16.mxu0 0
    %1169 = vmatpush1.bf16.msra.mxu0 %v1105
    %1170 = vmatprep.subr.bf16.mxu0 0
    %1171 = vmatpush1.bf16.msra.mxu0 %v1104
    %1172 = vmatprep.subr.bf16.mxu0 0
    %1173 = vmatpush1.bf16.msra.mxu0 %v1103
    %1174 = vmatprep.subr.bf16.mxu0 0
    %1175 = vmatpush1.bf16.msra.mxu0 %v1102
    %1176 = vmatprep.subr.bf16.mxu0 0
    %1177 = vmatpush1.bf16.msra.mxu0 %v1101
    %1178 = vmatprep.subr.bf16.mxu0 0
    %1179 = vmatpush1.bf16.msra.mxu0 %v1100
    %1180 = vmatprep.subr.bf16.mxu0 0
    %1181 = vmatpush2.bf16.msra.mxu0 %v1115
    %1182 = vmatprep.subr.bf16.mxu0 0
    %1183 = vmatpush2.bf16.msra.mxu0 %v1114
    %1184 = vmatprep.subr.bf16.mxu0 0
    %1185 = vmatpush2.bf16.msra.mxu0 %v1113
    %1186 = vmatprep.subr.bf16.mxu0 0
    %1187 = vmatpush2.bf16.msra.mxu0 %v1112
    %1188 = vmatprep.subr.bf16.mxu0 0
    %1189 = vmatpush2.bf16.msra.mxu0 %v1111
    %1190 = vmatprep.subr.bf16.mxu0 0
    %1191 = vmatpush2.bf16.msra.mxu0 %v1110
    %1192 = vmatprep.subr.bf16.mxu0 0
    %1193 = vmatpush2.bf16.msra.mxu0 %v1109
    %1194 = vmatprep.subr.bf16.mxu0 0
    %1195 = vmatpush2.bf16.msra.mxu0 %v1108
    %1196 = vmatprep.mubr.bf16.mxu0 %v969
    %1197 = vmatmul.mubr.bf16.gmra.mxu0 %v968
    %v1198 = vpop.f32.mrf.mxu0
    %v1199 = vadd.f32 0.0, %v1198
    %v1200 = vpop.f32.mrf.mxu0
    %v1201 = vpop.f32.mrf.mxu0
    %v1202 = vpop.f32.mrf.mxu0
    %1203 = vdwg.mxu0
    %1204 = vmatprep.subr.bf16.mxu0 0
    %1205 = vmatpush1.bf16.msra.mxu0 %v1123
    %1206 = vmatprep.subr.bf16.mxu0 0
    %1207 = vmatpush1.bf16.msra.mxu0 %v1122
    %1208 = vmatprep.subr.bf16.mxu0 0
    %1209 = vmatpush1.bf16.msra.mxu0 %v1121
    %1210 = vmatprep.subr.bf16.mxu0 0
    %1211 = vmatpush1.bf16.msra.mxu0 %v1120
    %1212 = vmatprep.subr.bf16.mxu0 0
    %1213 = vmatpush1.bf16.msra.mxu0 %v1119
    %1214 = vmatprep.subr.bf16.mxu0 0
    %1215 = vmatpush1.bf16.msra.mxu0 %v1118
    %1216 = vmatprep.subr.bf16.mxu0 0
    %1217 = vmatpush1.bf16.msra.mxu0 %v1117
    %1218 = vmatprep.subr.bf16.mxu0 0
    %1219 = vmatpush1.bf16.msra.mxu0 %v1116
    %1220 = vmatprep.subr.bf16.mxu0 0
    %1221 = vmatpush2.bf16.msra.mxu0 %v1131
    %1222 = vmatprep.subr.bf16.mxu0 0
    %1223 = vmatpush2.bf16.msra.mxu0 %v1130
    %1224 = vmatprep.subr.bf16.mxu0 0
    %1225 = vmatpush2.bf16.msra.mxu0 %v1129
    %1226 = vmatprep.subr.bf16.mxu0 0
    %1227 = vmatpush2.bf16.msra.mxu0 %v1128
    %1228 = vmatprep.subr.bf16.mxu0 0
    %1229 = vmatpush2.bf16.msra.mxu0 %v1127
    %1230 = vmatprep.subr.bf16.mxu0 0
    %1231 = vmatpush2.bf16.msra.mxu0 %v1126
    %1232 = vmatprep.subr.bf16.mxu0 0
    %1233 = vmatpush2.bf16.msra.mxu0 %v1125
    %1234 = vmatprep.subr.bf16.mxu0 0
    %1235 = vmatpush2.bf16.msra.mxu0 %v1124
    %1236 = vmatprep.mubr.bf16.mxu0 %v971
    %1237 = vmatmul.mubr.bf16.gmra.mxu0 %v970
    %v1238 = vpop.f32.mrf.mxu0
    %v1239 = vadd.f32 %v1199, %v1238
    %v1240 = vpop.f32.mrf.mxu0
    %v1241 = vpop.f32.mrf.mxu0
    %v1242 = vpop.f32.mrf.mxu0
    %1243 = vdwg.mxu0
    %v1244 = vld [vmem:[#allocation11] sm:$0xf]
    %v1245 = vld [vmem:[#allocation11 + $0x4] sm:$0xf]
    %v1246 = vld [vmem:[%s11] sm:$0xff]
    %v1247 = vld [vmem:[%s11 + $0x8] sm:$0xff]
    %1249 = vrot.lane.b32.xlu0 %v1239, 9
    %v1250 = vpop.permute.xlu0 %1249
    %v1252 = vsel %vm723, 0.0, %v1250
    %v1254 = vlaneseq
    %v1255 = vshrl.u32 %v1254, 7
    %v1256 = vsub.s32 0, %v1255
    %v1257 = vrot.slane %v231, %v1256
    %v1259 = vmul.f32 %v1252, %v1257
    %1260 = vrot.lane.b32.xlu0 %v1239, 8
    %v1261 = vpop.permute.xlu0 %1260
    %vm1263 = vcmask 64512
    %v1264 = vsel %vm1263, 0.0, %v1261
    %v1266 = vlaneseq
    %v1267 = vshrl.u32 %v1266, 7
    %v1268 = vsub.s32 0, %v1267
    %v1269 = vrot.slane %v232, %v1268
    %v1271 = vmul.f32 %v1264, %v1269
    %1272 = vrot.lane.b32.xlu0 %v1239, 7
    %v1273 = vpop.permute.xlu0 %1272
    %vm1275 = vcmask 56320
    %v1276 = vsel %vm1275, 0.0, %v1273
    %v1278 = vlaneseq
    %v1279 = vshrl.u32 %v1278, 7
    %v1280 = vsub.s32 0, %v1279
    %v1281 = vrot.slane %v233, %v1280
    %v1283 = vmul.f32 %v1276, %v1281
    %1284 = vrot.lane.b32.xlu0 %v1239, 1
    %v1285 = vpop.permute.xlu0 %1284
    %v1287 = vsel %vm401, 0.0, %v1285
    %v1289 = vlaneseq
    %v1290 = vshrl.u32 %v1289, 7
    %v1291 = vsub.s32 0, %v1290
    %v1292 = vrot.slane %v234, %v1291
    %v1294 = vmul.f32 %v1287, %v1292
    %1295 = vrot.lane.b32.xlu0 %v1239, 127
    %v1296 = vpop.permute.xlu0 %1295
    %v1298 = vsel %vm443, %v1296, 0.0
    %v1300 = vlaneseq
    %v1301 = vshrl.u32 %v1300, 7
    %v1302 = vsub.s32 0, %v1301
    %v1303 = vrot.slane %v235, %v1302
    %v1305 = vmul.f32 %v1298, %v1303
    %1306 = vrot.lane.b32.xlu0 %v1239, 121
    %v1307 = vpop.permute.xlu0 %1306
    %vm1309 = vcmask 990208
    %v1310 = vsel %vm1309, %v1307, 0.0
    %v1312 = vlaneseq
    %v1313 = vshrl.u32 %v1312, 7
    %v1314 = vsub.s32 0, %v1313
    %v1315 = vrot.slane %v236, %v1314
    %v1317 = vmul.f32 %v1310, %v1315
    %1318 = vrot.lane.b32.xlu0 %v1239, 120
    %v1319 = vpop.permute.xlu0 %1318
    %vm1321 = vcmask 982016
    %v1322 = vsel %vm1321, %v1319, 0.0
    %v1324 = vlaneseq
    %v1325 = vshrl.u32 %v1324, 7
    %v1326 = vsub.s32 0, %v1325
    %v1327 = vrot.slane %v237, %v1326
    %v1329 = vmul.f32 %v1322, %v1327
    %1330 = vrot.lane.b32.xlu0 %v1239, 119
    %v1331 = vpop.permute.xlu0 %1330
    %vm1333 = vcmask 973824
    %v1334 = vsel %vm1333, %v1331, 0.0
    %v1336 = vlaneseq
    %v1337 = vshrl.u32 %v1336, 7
    %v1338 = vsub.s32 0, %v1337
    %v1339 = vrot.slane %v238, %v1338
    %v1341 = vmul.f32 %v1334, %v1339
    %v1342 = vpack.c.bf16 %v1271, %v1259
    %v1343 = vpack.c.bf16 %v1294, %v1283
    %v1344 = vpack.c.bf16 %v1305, %v1239
    %v1345 = vpack.c.bf16 %v1329, %v1317
    %v1346 = vpack.c.bf16 %v1341, %v1341
    %1348 = vset.pattern.permute.xlu0 0
    %1349 = vperm.xlu0 %1348, %v1246
    %v1350 = vpop.permute.xlu0 %1349
    %1353 = vset.pattern.permute.xlu0 0
    %1354 = vperm.xlu0 %1353, %v1247
    %v1355 = vpop.permute.xlu0 %1354
    %v1359 = vunpack.c.l.b16 %v1244
    %v1360 = vunpack.c.l.b16 %v1245
    %v1361 = vpack.c.b16 %v1360, %v1359
    %vm1362 = vcmask 588800
    %v1364 = vsel %vm1362, %v1361, 0
    %v1367 = vsel %vm694, %v1346, 0
    %1369 = vmatprep.subr.bf16.mxu0 0
    %1370 = vmatpush1.bf16.msra.mxu0 0
    %1371 = vmatprep.subr.bf16.mxu0 0
    %1372 = vmatpush1.bf16.msra.mxu0 0
    %1373 = vmatprep.subr.bf16.mxu0 0
    %1374 = vmatpush1.bf16.msra.mxu0 0
    %1375 = vmatprep.subr.bf16.mxu0 0
    %1376 = vmatpush1.bf16.msra.mxu0 %v1367
    %1377 = vmatprep.subr.bf16.mxu0 0
    %1378 = vmatpush1.bf16.msra.mxu0 %v1345
    %1379 = vmatprep.subr.bf16.mxu0 0
    %1380 = vmatpush1.bf16.msra.mxu0 %v1344
    %1381 = vmatprep.subr.bf16.mxu0 0
    %1382 = vmatpush1.bf16.msra.mxu0 %v1343
    %1383 = vmatprep.subr.bf16.mxu0 0
    %1384 = vmatpush1.bf16.msra.mxu0 %v1342
    %1385 = vmatprep.subr.bf16.mxu0 0
    %1386 = vmatpush2.bf16.msra.mxu0 0
    %1387 = vmatprep.subr.bf16.mxu0 0
    %1388 = vmatpush2.bf16.msra.mxu0 0
    %1389 = vmatprep.subr.bf16.mxu0 0
    %1390 = vmatpush2.bf16.msra.mxu0 0
    %1391 = vmatprep.subr.bf16.mxu0 0
    %1392 = vmatpush2.bf16.msra.mxu0 0
    %1393 = vmatprep.subr.bf16.mxu0 0
    %1394 = vmatpush2.bf16.msra.mxu0 0
    %1395 = vmatprep.subr.bf16.mxu0 0
    %1396 = vmatpush2.bf16.msra.mxu0 0
    %1397 = vmatprep.subr.bf16.mxu0 0
    %1398 = vmatpush2.bf16.msra.mxu0 0
    %1399 = vmatprep.subr.bf16.mxu0 0
    %1400 = vmatpush2.bf16.msra.mxu0 0
    %1401 = vmatprep.mubr.bf16.mxu0 0
    %1402 = vmatmul.mubr.bf16.gmra.mxu0 %v1364
    %v1403 = vpop.f32.mrf.mxu0
    %v1404 = vadd.f32 %v1350, %v1403
    %v1405 = vpop.f32.mrf.mxu0
    %v1406 = vpop.f32.mrf.mxu0
    %v1407 = vadd.f32 %v1355, %v1406
    %v1408 = vpop.f32.mrf.mxu0
    %1409 = vdwg.mxu0
    %v1410 = vmax.f32 %v1404, 0.0
    %v1411 = vmax.f32 %v1407, 0.0
    %1412 = vadd.xlane.f32.xlu0 %v1410
    %v1413 = vpop.xlane.xlu0 %1412
    %1414 = vadd.xlane.f32.xlu0 %v1411
    %v1415 = vpop.xlane.xlu0 %1414
    %v1416 = vmul.f32 %v1413, 0.0078125
    %v1417 = vmul.f32 %v1415, 0.0078125
    %v1418 = vmul.f32 %v1410, %v1410
    %v1419 = vmul.f32 %v1411, %v1411
    %1420 = vadd.xlane.f32.xlu0 %v1418
    %v1421 = vpop.xlane.xlu0 %1420
    %1422 = vadd.xlane.f32.xlu0 %v1419
    %v1423 = vpop.xlane.xlu0 %1422
    %v1424 = vmul.f32 %v1421, 0.0078125
    %v1425 = vmul.f32 %v1423, 0.0078125
    %v1426 = vmul.f32 %v1416, %v1416
    %v1427 = vmul.f32 %v1417, %v1417
    %v1428 = vsub.f32 %v1424, %v1426
    %v1429 = vsub.f32 %v1425, %v1427
    %v1430 = vmax.f32 %v1428, 0.0
    %v1431 = vmax.f32 %v1429, 0.0
    %v1432 = vsub.f32 %v1410, %v1416
    %v1433 = vsub.f32 %v1411, %v1417
    %v1434 = vadd.f32 %v1430, 1e-05
    %v1435 = vadd.f32 %v1431, 1e-05
    %v1436 = vrsqrt.pop %v1434
    %v1437 = vrsqrt.pop %v1435
    %v1438 = vmul.f32 %v1432, %v1436
    %v1439 = vmul.f32 %v1433, %v1437
    %v1440 = vld [vmem:[%s5] sm:$0xf]
    %v1441 = vld [vmem:[%s5 + $0x4] sm:$0xf]
    %v1442 = vld [vmem:[%s5 + $0x8] sm:$0xf]
    %v1443 = vld [vmem:[%s5 + $0xc] sm:$0xf]
    %v1444 = vld [vmem:[%s5 + $0x10] sm:$0xf]
    %v1445 = vld [vmem:[%s5 + $0x14] sm:$0xf]
    %v1446 = vld [vmem:[%s5 + $0x18] sm:$0xf]
    %v1447 = vld [vmem:[%s5 + $0x1c] sm:$0xf]
    %v1448 = vld [vmem:[%s5 + $0x20] sm:$0xf]
    %v1449 = vld [vmem:[%s5 + $0x24] sm:$0xf]
    %v1450 = vld [vmem:[%s5 + $0x28] sm:$0xf]
    %v1451 = vld [vmem:[%s5 + $0x2c] sm:$0xf]
    %v1452 = vld [vmem:[%s5 + $0x30] sm:$0xf]
    %v1453 = vld [vmem:[%s5 + $0x34] sm:$0xf]
    %v1454 = vld [vmem:[%s5 + $0x38] sm:$0xf]
    %v1455 = vld [vmem:[%s5 + $0x3c] sm:$0xf]
    %1458 = vrot.lane.b32.xlu0 %v1438, 127
    %v1459 = vpop.permute.xlu0 %1458
    %1460 = vrot.lane.b32.xlu0 %v1439, 127
    %v1461 = vpop.permute.xlu0 %1460
    %v1464 = vsel %vm443, %v1459, 0.0
    %v1465 = vsel %vm443, %v1461, 0.0
    %v1466 = vmax.f32 %v1438, %v1464
    %v1467 = vmax.f32 %v1439, %v1465
    %1470 = vrot.lane.b32.xlu0 %v1466, 120
    %v1471 = vpop.permute.xlu0 %1470
    %1472 = vrot.lane.b32.xlu0 %v1467, 120
    %v1473 = vpop.permute.xlu0 %1472
    %v1476 = vsel %vm1321, %v1471, 0.0
    %v1477 = vsel %vm1321, %v1473, 0.0
    %v1478 = vmax.f32 %v1466, %v1476
    %v1479 = vmax.f32 %v1467, %v1477
    %v1480 = vpack.c.bf16 %v1479, %v1478
    %v1497 = vunpack.c.l.b16 %v1440
    %v1498 = vunpack.c.l.b16 %v1441
    %v1499 = vunpack.c.l.b16 %v1442
    %v1500 = vunpack.c.l.b16 %v1443
    %v1501 = vunpack.c.l.b16 %v1444
    %v1502 = vunpack.c.l.b16 %v1445
    %v1503 = vunpack.c.l.b16 %v1446
    %v1504 = vunpack.c.l.b16 %v1447
    %v1505 = vunpack.c.l.b16 %v1448
    %v1506 = vunpack.c.l.b16 %v1449
    %v1507 = vunpack.c.l.b16 %v1450
    %v1508 = vunpack.c.l.b16 %v1451
    %v1509 = vunpack.c.l.b16 %v1452
    %v1510 = vunpack.c.l.b16 %v1453
    %v1511 = vunpack.c.l.b16 %v1454
    %v1512 = vunpack.c.l.b16 %v1455
    %v1513 = vpack.c.b16 %v1498, %v1497
    %v1514 = vpack.c.b16 %v1500, %v1499
    %v1515 = vpack.c.b16 %v1502, %v1501
    %v1516 = vpack.c.b16 %v1504, %v1503
    %v1517 = vpack.c.b16 %v1506, %v1505
    %v1518 = vpack.c.b16 %v1508, %v1507
    %v1519 = vpack.c.b16 %v1510, %v1509
    %v1520 = vpack.c.b16 %v1512, %v1511
    %1529 = vmatprep.subr.bf16.mxu0 0
    %1530 = vmatpush1.bf16.msra.mxu0 %v1520
    %1531 = vmatprep.subr.bf16.mxu0 0
    %1532 = vmatpush1.bf16.msra.mxu0 %v1519
    %1533 = vmatprep.subr.bf16.mxu0 0
    %1534 = vmatpush1.bf16.msra.mxu0 %v1518
    %1535 = vmatprep.subr.bf16.mxu0 0
    %1536 = vmatpush1.bf16.msra.mxu0 %v1517
    %1537 = vmatprep.subr.bf16.mxu0 0
    %1538 = vmatpush1.bf16.msra.mxu0 %v1516
    %1539 = vmatprep.subr.bf16.mxu0 0
    %1540 = vmatpush1.bf16.msra.mxu0 %v1515
    %1541 = vmatprep.subr.bf16.mxu0 0
    %1542 = vmatpush1.bf16.msra.mxu0 %v1514
    %1543 = vmatprep.subr.bf16.mxu0 0
    %1544 = vmatpush1.bf16.msra.mxu0 %v1513
    %1545 = vmatprep.subr.bf16.mxu0 0
    %1546 = vmatpush2.bf16.msra.mxu0 0
    %1547 = vmatprep.subr.bf16.mxu0 0
    %1548 = vmatpush2.bf16.msra.mxu0 0
    %1549 = vmatprep.subr.bf16.mxu0 0
    %1550 = vmatpush2.bf16.msra.mxu0 0
    %1551 = vmatprep.subr.bf16.mxu0 0
    %1552 = vmatpush2.bf16.msra.mxu0 0
    %1553 = vmatprep.subr.bf16.mxu0 0
    %1554 = vmatpush2.bf16.msra.mxu0 0
    %1555 = vmatprep.subr.bf16.mxu0 0
    %1556 = vmatpush2.bf16.msra.mxu0 0
    %1557 = vmatprep.subr.bf16.mxu0 0
    %1558 = vmatpush2.bf16.msra.mxu0 0
    %1559 = vmatprep.subr.bf16.mxu0 0
    %1560 = vmatpush2.bf16.msra.mxu0 0
    %1561 = vmatprep.mubr.bf16.mxu0 0
    %1562 = vmatmul.mubr.bf16.gmra.mxu0 %v1480
    %v1563 = vpop.f32.mrf.mxu0
    %v1564 = vadd.f32 0.0, %v1563
    %v1565 = vpop.f32.mrf.mxu0
    %v1566 = vpop.f32.mrf.mxu0
    %v1567 = vadd.f32 0.0, %v1566
    %v1568 = vpop.f32.mrf.mxu0
    %1569 = vdwg.mxu0
    %v1570 = vld [vmem:[#allocation13] sm:$0xff]
    %v1571 = vld [vmem:[#allocation13 + $0x8] sm:$0xff]
    %v1572 = vld [vmem:[#allocation13 + $0x10] sm:$0xff]
    %v1573 = vld [vmem:[#allocation13 + $0x18] sm:$0xff]
    %v1574 = vld [vmem:[%s13] sm:$0xff]
    %v1575 = vld [vmem:[%s13 + $0x8] sm:$0xff]
    %v1576 = vld [vmem:[%s13 + $0x10] sm:$0xff]
    %v1577 = vld [vmem:[%s13 + $0x18] sm:$0xff]
    %1580 = vrot.lane.b32.xlu0 %v1564, 5
    %v1581 = vpop.permute.xlu0 %1580
    %1582 = vrot.lane.b32.xlu0 %v1567, 5
    %v1583 = vpop.permute.xlu0 %1582
    %vm1586 = vcmask 39936
    %v1587 = vsel %vm1586, 0.0, %v1581
    %v1588 = vsel %vm1586, 0.0, %v1583
    %v1590 = vlaneseq
    %v1591 = vshrl.u32 %v1590, 7
    %v1592 = vsub.s32 0, %v1591
    %v1593 = vrot.slane %v239, %v1592
    %v1595 = vmul.f32 %v1587, %v1593
    %v1596 = vmul.f32 %v1588, %v1593
    %1597 = vrot.lane.b32.xlu0 %v1564, 4
    %v1598 = vpop.permute.xlu0 %1597
    %1599 = vrot.lane.b32.xlu0 %v1567, 4
    %v1600 = vpop.permute.xlu0 %1599
    %vm1603 = vcmask 31744
    %v1604 = vsel %vm1603, 0.0, %v1598
    %v1605 = vsel %vm1603, 0.0, %v1600
    %v1607 = vlaneseq
    %v1608 = vshrl.u32 %v1607, 7
    %v1609 = vsub.s32 0, %v1608
    %v1610 = vrot.slane %v240, %v1609
    %v1612 = vmul.f32 %v1604, %v1610
    %v1613 = vmul.f32 %v1605, %v1610
    %1614 = vrot.lane.b32.xlu0 %v1564, 3
    %v1615 = vpop.permute.xlu0 %1614
    %1616 = vrot.lane.b32.xlu0 %v1567, 3
    %v1617 = vpop.permute.xlu0 %1616
    %vm1620 = vcmask 23552
    %v1621 = vsel %vm1620, 0.0, %v1615
    %v1622 = vsel %vm1620, 0.0, %v1617
    %v1624 = vlaneseq
    %v1625 = vshrl.u32 %v1624, 7
    %v1626 = vsub.s32 0, %v1625
    %v1627 = vrot.slane %v241, %v1626
    %v1629 = vmul.f32 %v1621, %v1627
    %v1630 = vmul.f32 %v1622, %v1627
    %1631 = vrot.lane.b32.xlu0 %v1564, 1
    %v1632 = vpop.permute.xlu0 %1631
    %1633 = vrot.lane.b32.xlu0 %v1567, 1
    %v1634 = vpop.permute.xlu0 %1633
    %v1637 = vsel %vm401, 0.0, %v1632
    %v1638 = vsel %vm401, 0.0, %v1634
    %v1640 = vlaneseq
    %v1641 = vshrl.u32 %v1640, 7
    %v1642 = vsub.s32 0, %v1641
    %v1643 = vrot.slane %v242, %v1642
    %v1645 = vmul.f32 %v1637, %v1643
    %v1646 = vmul.f32 %v1638, %v1643
    %1647 = vrot.lane.b32.xlu0 %v1564, 127
    %v1648 = vpop.permute.xlu0 %1647
    %1649 = vrot.lane.b32.xlu0 %v1567, 127
    %v1650 = vpop.permute.xlu0 %1649
    %vm1653 = vcmask 252928
    %v1654 = vsel %vm1653, %v1648, 0.0
    %v1655 = vsel %vm1653, %v1650, 0.0
    %v1657 = vlaneseq
    %v1658 = vshrl.u32 %v1657, 7
    %v1659 = vsub.s32 0, %v1658
    %v1660 = vrot.slane %v243, %v1659
    %v1662 = vmul.f32 %v1654, %v1660
    %v1663 = vmul.f32 %v1655, %v1660
    %1664 = vrot.lane.b32.xlu0 %v1564, 125
    %v1665 = vpop.permute.xlu0 %1664
    %1666 = vrot.lane.b32.xlu0 %v1567, 125
    %v1667 = vpop.permute.xlu0 %1666
    %vm1670 = vcmask 236544
    %v1671 = vsel %vm1670, %v1665, 0.0
    %v1672 = vsel %vm1670, %v1667, 0.0
    %v1674 = vlaneseq
    %v1675 = vshrl.u32 %v1674, 7
    %v1676 = vsub.s32 0, %v1675
    %v1677 = vrot.slane %v244, %v1676
    %v1679 = vmul.f32 %v1671, %v1677
    %v1680 = vmul.f32 %v1672, %v1677
    %1681 = vrot.lane.b32.xlu0 %v1564, 124
    %v1682 = vpop.permute.xlu0 %1681
    %1683 = vrot.lane.b32.xlu0 %v1567, 124
    %v1684 = vpop.permute.xlu0 %1683
    %vm1687 = vcmask 228352
    %v1688 = vsel %vm1687, %v1682, 0.0
    %v1689 = vsel %vm1687, %v1684, 0.0
    %v1691 = vlaneseq
    %v1692 = vshrl.u32 %v1691, 7
    %v1693 = vsub.s32 0, %v1692
    %v1694 = vrot.slane %v245, %v1693
    %v1696 = vmul.f32 %v1688, %v1694
    %v1697 = vmul.f32 %v1689, %v1694
    %1698 = vrot.lane.b32.xlu0 %v1564, 123
    %v1699 = vpop.permute.xlu0 %1698
    %1700 = vrot.lane.b32.xlu0 %v1567, 123
    %v1701 = vpop.permute.xlu0 %1700
    %vm1704 = vcmask 220160
    %v1705 = vsel %vm1704, %v1699, 0.0
    %v1706 = vsel %vm1704, %v1701, 0.0
    %v1708 = vlaneseq
    %v1709 = vshrl.u32 %v1708, 7
    %v1710 = vsub.s32 0, %v1709
    %v1711 = vrot.slane %v246, %v1710
    %v1713 = vmul.f32 %v1705, %v1711
    %v1714 = vmul.f32 %v1706, %v1711
    %v1715 = vpack.c.bf16 %v1596, %v1595
    %v1716 = vpack.c.bf16 %v1613, %v1612
    %v1717 = vpack.c.bf16 %v1630, %v1629
    %v1718 = vpack.c.bf16 %v1646, %v1645
    %v1719 = vpack.c.bf16 %v1567, %v1564
    %v1720 = vpack.c.bf16 %v1663, %v1662
    %v1721 = vpack.c.bf16 %v1680, %v1679
    %v1722 = vpack.c.bf16 %v1697, %v1696
    %v1723 = vpack.c.bf16 %v1714, %v1713
    %1725 = vset.pattern.permute.xlu0 0
    %1726 = vperm.xlu0 %1725, %v1574
    %v1727 = vpop.permute.xlu0 %1726
    %1730 = vset.pattern.permute.xlu0 0
    %1731 = vperm.xlu0 %1730, %v1575
    %v1732 = vpop.permute.xlu0 %1731
    %1735 = vset.pattern.permute.xlu0 0
    %1736 = vperm.xlu0 %1735, %v1576
    %v1737 = vpop.permute.xlu0 %1736
    %1740 = vset.pattern.permute.xlu0 0
    %1741 = vperm.xlu0 %1740, %v1577
    %v1742 = vpop.permute.xlu0 %1741
    %v1748 = vunpack.c.l.b16 %v1570
    %v1749 = vunpack.c.h.b16 %v1570
    %v1750 = vunpack.c.l.b16 %v1571
    %v1751 = vunpack.c.h.b16 %v1571
    %v1752 = vunpack.c.l.b16 %v1572
    %v1753 = vunpack.c.h.b16 %v1572
    %v1754 = vunpack.c.l.b16 %v1573
    %v1755 = vunpack.c.h.b16 %v1573
    %v1756 = vpack.c.b16 %v1750, %v1748
    %v1757 = vpack.c.b16 %v1751, %v1749
    %v1758 = vpack.c.b16 %v1754, %v1752
    %v1759 = vpack.c.b16 %v1755, %v1753
    %v1763 = vsel %vm317, %v1757, 0
    %v1766 = vsel %vm317, %v1759, 0
    %1768 = vmatprep.subr.bf16.mxu0 0
    %1769 = vmatpush1.bf16.msra.mxu0 %v1722
    %1770 = vmatprep.subr.bf16.mxu0 0
    %1771 = vmatpush1.bf16.msra.mxu0 %v1721
    %1772 = vmatprep.subr.bf16.mxu0 0
    %1773 = vmatpush1.bf16.msra.mxu0 %v1720
    %1774 = vmatprep.subr.bf16.mxu0 0
    %1775 = vmatpush1.bf16.msra.mxu0 %v1719
    %1776 = vmatprep.subr.bf16.mxu0 0
    %1777 = vmatpush1.bf16.msra.mxu0 %v1718
    %1778 = vmatprep.subr.bf16.mxu0 0
    %1779 = vmatpush1.bf16.msra.mxu0 %v1717
    %1780 = vmatprep.subr.bf16.mxu0 0
    %1781 = vmatpush1.bf16.msra.mxu0 %v1716
    %1782 = vmatprep.subr.bf16.mxu0 0
    %1783 = vmatpush1.bf16.msra.mxu0 %v1715
    %1784 = vmatprep.subr.bf16.mxu0 0
    %1785 = vmatpush2.bf16.msra.mxu0 0
    %1786 = vmatprep.subr.bf16.mxu0 0
    %1787 = vmatpush2.bf16.msra.mxu0 0
    %1788 = vmatprep.subr.bf16.mxu0 0
    %1789 = vmatpush2.bf16.msra.mxu0 0
    %1790 = vmatprep.subr.bf16.mxu0 0
    %1791 = vmatpush2.bf16.msra.mxu0 0
    %1792 = vmatprep.subr.bf16.mxu0 0
    %1793 = vmatpush2.bf16.msra.mxu0 0
    %1794 = vmatprep.subr.bf16.mxu0 0
    %1795 = vmatpush2.bf16.msra.mxu0 0
    %1796 = vmatprep.subr.bf16.mxu0 0
    %1797 = vmatpush2.bf16.msra.mxu0 0
    %1798 = vmatprep.subr.bf16.mxu0 0
    %1799 = vmatpush2.bf16.msra.mxu0 %v1723
    %1800 = vmatprep.mubr.bf16.mxu0 %v1763
    %1801 = vmatmul.mubr.bf16.gmra.mxu0 %v1756
    %v1802 = vpop.f32.mrf.mxu0
    %v1803 = vadd.f32 %v1727, %v1802
    %v1804 = vpop.f32.mrf.mxu0
    %v1805 = vpop.f32.mrf.mxu0
    %v1806 = vadd.f32 %v1732, %v1805
    %v1807 = vpop.f32.mrf.mxu0
    %1808 = vmatprep.mubr.bf16.mxu0 %v1766
    %1809 = vmatmul.mubr.bf16.gmra.mxu0 %v1758
    %v1810 = vpop.f32.mrf.mxu0
    %v1811 = vadd.f32 %v1737, %v1810
    %v1812 = vpop.f32.mrf.mxu0
    %v1813 = vpop.f32.mrf.mxu0
    %v1814 = vadd.f32 %v1742, %v1813
    %v1815 = vpop.f32.mrf.mxu0
    %1816 = vdwg.mxu0
    %v1817 = vmax.f32 %v1803, 0.0
    %v1818 = vmax.f32 %v1806, 0.0
    %v1819 = vmax.f32 %v1811, 0.0
    %v1820 = vmax.f32 %v1814, 0.0
    %vm1821 = vcmask 261120
    %v1822 = vsel %vm1821, %v1817, 0.0
    %1823 = vadd.xlane.f32.xlu0 %v1822
    %v1824 = vpop.xlane.xlu0 %1823
    %v1825 = vsel %vm1821, %v1818, 0.0
    %1826 = vadd.xlane.f32.xlu0 %v1825
    %v1827 = vpop.xlane.xlu0 %1826
    %v1828 = vsel %vm1821, %v1819, 0.0
    %1829 = vadd.xlane.f32.xlu0 %v1828
    %v1830 = vpop.xlane.xlu0 %1829
    %v1831 = vsel %vm1821, %v1820, 0.0
    %1832 = vadd.xlane.f32.xlu0 %v1831
    %v1833 = vpop.xlane.xlu0 %1832
    %v1834 = vmul.f32 %v1824, 0.03125
    %v1835 = vmul.f32 %v1827, 0.03125
    %v1836 = vmul.f32 %v1830, 0.03125
    %v1837 = vmul.f32 %v1833, 0.03125
    %v1838 = vmul.f32 %v1817, %v1817
    %v1839 = vmul.f32 %v1818, %v1818
    %v1840 = vmul.f32 %v1819, %v1819
    %v1841 = vmul.f32 %v1820, %v1820
    %v1842 = vsel %vm1821, %v1838, 0.0
    %1843 = vadd.xlane.f32.xlu0 %v1842
    %v1844 = vpop.xlane.xlu0 %1843
    %v1845 = vsel %vm1821, %v1839, 0.0
    %1846 = vadd.xlane.f32.xlu0 %v1845
    %v1847 = vpop.xlane.xlu0 %1846
    %v1848 = vsel %vm1821, %v1840, 0.0
    %1849 = vadd.xlane.f32.xlu0 %v1848
    %v1850 = vpop.xlane.xlu0 %1849
    %v1851 = vsel %vm1821, %v1841, 0.0
    %1852 = vadd.xlane.f32.xlu0 %v1851
    %v1853 = vpop.xlane.xlu0 %1852
    %v1854 = vmul.f32 %v1844, 0.03125
    %v1855 = vmul.f32 %v1847, 0.03125
    %v1856 = vmul.f32 %v1850, 0.03125
    %v1857 = vmul.f32 %v1853, 0.03125
    %v1858 = vmul.f32 %v1834, %v1834
    %v1859 = vmul.f32 %v1835, %v1835
    %v1860 = vmul.f32 %v1836, %v1836
    %v1861 = vmul.f32 %v1837, %v1837
    %v1862 = vsub.f32 %v1854, %v1858
    %v1863 = vsub.f32 %v1855, %v1859
    %v1864 = vsub.f32 %v1856, %v1860
    %v1865 = vsub.f32 %v1857, %v1861
    %v1866 = vmax.f32 %v1862, 0.0
    %v1867 = vmax.f32 %v1863, 0.0
    %v1868 = vmax.f32 %v1864, 0.0
    %v1869 = vmax.f32 %v1865, 0.0
    %v1870 = vsub.f32 %v1817, %v1834
    %v1871 = vsub.f32 %v1818, %v1835
    %v1872 = vsub.f32 %v1819, %v1836
    %v1873 = vsub.f32 %v1820, %v1837
    %v1874 = vadd.f32 %v1866, 1e-05
    %v1875 = vadd.f32 %v1867, 1e-05
    %v1876 = vadd.f32 %v1868, 1e-05
    %v1877 = vadd.f32 %v1869, 1e-05
    %v1878 = vrsqrt.pop %v1874
    %v1879 = vrsqrt.pop %v1875
    %v1880 = vrsqrt.pop %v1876
    %v1881 = vrsqrt.pop %v1877
    %v1882 = vmul.f32 %v1870, %v1878
    %v1883 = vmul.f32 %v1871, %v1879
    %v1884 = vmul.f32 %v1872, %v1880
    %v1885 = vmul.f32 %v1873, %v1881
    %v1886 = vld [vmem:[%s20] sm:$0xff]
    %v1887 = vld [vmem:[%s20 + $0x8] sm:$0xf]
    %v1888 = vld [vmem:[%s20 + $0xc] sm:$0xff]
    %v1889 = vld [vmem:[%s20 + $0x14] sm:$0xf]
    %v1890 = vld [vmem:[%s20 + $0x18] sm:$0xff]
    %v1891 = vld [vmem:[%s20 + $0x20] sm:$0xf]
    %v1892 = vld [vmem:[%s20 + $0x24] sm:$0xff]
    %v1893 = vld [vmem:[%s20 + $0x2c] sm:$0xf]
    %v1894 = vld [vmem:[%s20 + $0x30] sm:$0xff]
    %v1895 = vld [vmem:[%s20 + $0x38] sm:$0xf]
    %v1896 = vld [vmem:[%s20 + $0x3c] sm:$0xff]
    %v1897 = vld [vmem:[%s20 + $0x44] sm:$0xf]
    %v1898 = vld [vmem:[%s20 + $0x48] sm:$0xff]
    %v1899 = vld [vmem:[%s20 + $0x50] sm:$0xf]
    %v1900 = vld [vmem:[%s20 + $0x54] sm:$0xff]
    %v1901 = vld [vmem:[%s20 + $0x5c] sm:$0xf]
    %v1902 = vld [vmem:[%s21] sm:$0xff]
    %v1903 = vld [vmem:[%s21 + $0x8] sm:$0xff]
    %1908 = vrot.lane.b32.xlu0 %v1882, 5
    %v1909 = vpop.permute.xlu0 %1908
    %1910 = vrot.lane.b32.xlu0 %v1883, 5
    %v1911 = vpop.permute.xlu0 %1910
    %1912 = vrot.lane.b32.xlu0 %v1884, 5
    %v1913 = vpop.permute.xlu0 %1912
    %1914 = vrot.lane.b32.xlu0 %v1885, 5
    %v1915 = vpop.permute.xlu0 %1914
    %v1920 = vsel %vm1586, 0.0, %v1909
    %v1921 = vsel %vm1586, 0.0, %v1911
    %v1922 = vsel %vm1586, 0.0, %v1913
    %v1923 = vsel %vm1586, 0.0, %v1915
    %v1924 = vmul.f32 %v1920, %v1593
    %v1925 = vmul.f32 %v1921, %v1593
    %v1926 = vmul.f32 %v1922, %v1593
    %v1927 = vmul.f32 %v1923, %v1593
    %1928 = vrot.lane.b32.xlu0 %v1882, 4
    %v1929 = vpop.permute.xlu0 %1928
    %1930 = vrot.lane.b32.xlu0 %v1883, 4
    %v1931 = vpop.permute.xlu0 %1930
    %1932 = vrot.lane.b32.xlu0 %v1884, 4
    %v1933 = vpop.permute.xlu0 %1932
    %1934 = vrot.lane.b32.xlu0 %v1885, 4
    %v1935 = vpop.permute.xlu0 %1934
    %v1940 = vsel %vm1603, 0.0, %v1929
    %v1941 = vsel %vm1603, 0.0, %v1931
    %v1942 = vsel %vm1603, 0.0, %v1933
    %v1943 = vsel %vm1603, 0.0, %v1935
    %v1944 = vmul.f32 %v1940, %v1610
    %v1945 = vmul.f32 %v1941, %v1610
    %v1946 = vmul.f32 %v1942, %v1610
    %v1947 = vmul.f32 %v1943, %v1610
    %1948 = vrot.lane.b32.xlu0 %v1882, 3
    %v1949 = vpop.permute.xlu0 %1948
    %1950 = vrot.lane.b32.xlu0 %v1883, 3
    %v1951 = vpop.permute.xlu0 %1950
    %1952 = vrot.lane.b32.xlu0 %v1884, 3
    %v1953 = vpop.permute.xlu0 %1952
    %1954 = vrot.lane.b32.xlu0 %v1885, 3
    %v1955 = vpop.permute.xlu0 %1954
    %v1960 = vsel %vm1620, 0.0, %v1949
    %v1961 = vsel %vm1620, 0.0, %v1951
    %v1962 = vsel %vm1620, 0.0, %v1953
    %v1963 = vsel %vm1620, 0.0, %v1955
    %v1964 = vmul.f32 %v1960, %v1627
    %v1965 = vmul.f32 %v1961, %v1627
    %v1966 = vmul.f32 %v1962, %v1627
    %v1967 = vmul.f32 %v1963, %v1627
    %1968 = vrot.lane.b32.xlu0 %v1882, 1
    %v1969 = vpop.permute.xlu0 %1968
    %1970 = vrot.lane.b32.xlu0 %v1883, 1
    %v1971 = vpop.permute.xlu0 %1970
    %1972 = vrot.lane.b32.xlu0 %v1884, 1
    %v1973 = vpop.permute.xlu0 %1972
    %1974 = vrot.lane.b32.xlu0 %v1885, 1
    %v1975 = vpop.permute.xlu0 %1974
    %v1980 = vsel %vm401, 0.0, %v1969
    %v1981 = vsel %vm401, 0.0, %v1971
    %v1982 = vsel %vm401, 0.0, %v1973
    %v1983 = vsel %vm401, 0.0, %v1975
    %v1984 = vmul.f32 %v1980, %v1643
    %v1985 = vmul.f32 %v1981, %v1643
    %v1986 = vmul.f32 %v1982, %v1643
    %v1987 = vmul.f32 %v1983, %v1643
    %1988 = vrot.lane.b32.xlu0 %v1882, 127
    %v1989 = vpop.permute.xlu0 %1988
    %1990 = vrot.lane.b32.xlu0 %v1883, 127
    %v1991 = vpop.permute.xlu0 %1990
    %1992 = vrot.lane.b32.xlu0 %v1884, 127
    %v1993 = vpop.permute.xlu0 %1992
    %1994 = vrot.lane.b32.xlu0 %v1885, 127
    %v1995 = vpop.permute.xlu0 %1994
    %v2000 = vsel %vm1653, %v1989, 0.0
    %v2001 = vsel %vm1653, %v1991, 0.0
    %v2002 = vsel %vm1653, %v1993, 0.0
    %v2003 = vsel %vm1653, %v1995, 0.0
    %v2004 = vmul.f32 %v2000, %v1660
    %v2005 = vmul.f32 %v2001, %v1660
    %v2006 = vmul.f32 %v2002, %v1660
    %v2007 = vmul.f32 %v2003, %v1660
    %2008 = vrot.lane.b32.xlu0 %v1882, 125
    %v2009 = vpop.permute.xlu0 %2008
    %2010 = vrot.lane.b32.xlu0 %v1883, 125
    %v2011 = vpop.permute.xlu0 %2010
    %2012 = vrot.lane.b32.xlu0 %v1884, 125
    %v2013 = vpop.permute.xlu0 %2012
    %2014 = vrot.lane.b32.xlu0 %v1885, 125
    %v2015 = vpop.permute.xlu0 %2014
    %v2020 = vsel %vm1670, %v2009, 0.0
    %v2021 = vsel %vm1670, %v2011, 0.0
    %v2022 = vsel %vm1670, %v2013, 0.0
    %v2023 = vsel %vm1670, %v2015, 0.0
    %v2024 = vmul.f32 %v2020, %v1677
    %v2025 = vmul.f32 %v2021, %v1677
    %v2026 = vmul.f32 %v2022, %v1677
    %v2027 = vmul.f32 %v2023, %v1677
    %2028 = vrot.lane.b32.xlu0 %v1882, 124
    %v2029 = vpop.permute.xlu0 %2028
    %2030 = vrot.lane.b32.xlu0 %v1883, 124
    %v2031 = vpop.permute.xlu0 %2030
    %2032 = vrot.lane.b32.xlu0 %v1884, 124
    %v2033 = vpop.permute.xlu0 %2032
    %2034 = vrot.lane.b32.xlu0 %v1885, 124
    %v2035 = vpop.permute.xlu0 %2034
    %v2040 = vsel %vm1687, %v2029, 0.0
    %v2041 = vsel %vm1687, %v2031, 0.0
    %v2042 = vsel %vm1687, %v2033, 0.0
    %v2043 = vsel %vm1687, %v2035, 0.0
    %v2044 = vmul.f32 %v2040, %v1694
    %v2045 = vmul.f32 %v2041, %v1694
    %v2046 = vmul.f32 %v2042, %v1694
    %v2047 = vmul.f32 %v2043, %v1694
    %2048 = vrot.lane.b32.xlu0 %v1882, 123
    %v2049 = vpop.permute.xlu0 %2048
    %2050 = vrot.lane.b32.xlu0 %v1883, 123
    %v2051 = vpop.permute.xlu0 %2050
    %2052 = vrot.lane.b32.xlu0 %v1884, 123
    %v2053 = vpop.permute.xlu0 %2052
    %2054 = vrot.lane.b32.xlu0 %v1885, 123
    %v2055 = vpop.permute.xlu0 %2054
    %v2060 = vsel %vm1704, %v2049, 0.0
    %v2061 = vsel %vm1704, %v2051, 0.0
    %v2062 = vsel %vm1704, %v2053, 0.0
    %v2063 = vsel %vm1704, %v2055, 0.0
    %v2064 = vmul.f32 %v2060, %v1711
    %v2065 = vmul.f32 %v2061, %v1711
    %v2066 = vmul.f32 %v2062, %v1711
    %v2067 = vmul.f32 %v2063, %v1711
    %v2068 = vpack.c.bf16 %v1925, %v1924
    %v2069 = vpack.c.bf16 %v1927, %v1926
    %v2070 = vpack.c.bf16 %v1945, %v1944
    %v2071 = vpack.c.bf16 %v1947, %v1946
    %v2072 = vpack.c.bf16 %v1965, %v1964
    %v2073 = vpack.c.bf16 %v1967, %v1966
    %v2074 = vpack.c.bf16 %v1985, %v1984
    %v2075 = vpack.c.bf16 %v1987, %v1986
    %v2076 = vpack.c.bf16 %v1883, %v1882
    %v2077 = vpack.c.bf16 %v1885, %v1884
    %v2078 = vpack.c.bf16 %v2005, %v2004
    %v2079 = vpack.c.bf16 %v2007, %v2006
    %v2080 = vpack.c.bf16 %v2025, %v2024
    %v2081 = vpack.c.bf16 %v2027, %v2026
    %v2082 = vpack.c.bf16 %v2045, %v2044
    %v2083 = vpack.c.bf16 %v2047, %v2046
    %v2084 = vpack.c.bf16 %v2065, %v2064
    %v2085 = vpack.c.bf16 %v2067, %v2066
    %v2102 = vunpack.c.l.b16 %v1886
    %v2103 = vunpack.c.h.b16 %v1886
    %v2104 = vunpack.c.l.b16 %v1887
    %v2105 = vunpack.c.l.b16 %v1888
    %v2106 = vunpack.c.h.b16 %v1888
    %v2107 = vunpack.c.l.b16 %v1889
    %v2108 = vunpack.c.l.b16 %v1890
    %v2109 = vunpack.c.h.b16 %v1890
    %v2110 = vunpack.c.l.b16 %v1891
    %v2111 = vunpack.c.l.b16 %v1892
    %v2112 = vunpack.c.h.b16 %v1892
    %v2113 = vunpack.c.l.b16 %v1893
    %v2114 = vunpack.c.l.b16 %v1894
    %v2115 = vunpack.c.h.b16 %v1894
    %v2116 = vunpack.c.l.b16 %v1895
    %v2117 = vunpack.c.l.b16 %v1896
    %v2118 = vunpack.c.h.b16 %v1896
    %v2119 = vunpack.c.l.b16 %v1897
    %v2120 = vunpack.c.l.b16 %v1898
    %v2121 = vunpack.c.h.b16 %v1898
    %v2122 = vunpack.c.l.b16 %v1899
    %v2123 = vunpack.c.l.b16 %v1900
    %v2124 = vunpack.c.h.b16 %v1900
    %v2125 = vunpack.c.l.b16 %v1901
    %v2126 = vpack.c.b16 %v2105, %v2102
    %v2127 = vpack.c.b16 %v2106, %v2103
    %v2128 = vpack.c.b16 %v2107, %v2104
    %v2129 = vpack.c.b16 %v2111, %v2108
    %v2130 = vpack.c.b16 %v2112, %v2109
    %v2131 = vpack.c.b16 %v2113, %v2110
    %v2132 = vpack.c.b16 %v2117, %v2114
    %v2133 = vpack.c.b16 %v2118, %v2115
    %v2134 = vpack.c.b16 %v2119, %v2116
    %v2135 = vpack.c.b16 %v2123, %v2120
    %v2136 = vpack.c.b16 %v2124, %v2121
    %v2137 = vpack.c.b16 %v2125, %v2122
    %v2147 = vsel %vm1821, %v2128, 0
    %v2150 = vsel %vm1821, %v2131, 0
    %v2153 = vsel %vm1821, %v2134, 0
    %v2156 = vsel %vm1821, %v2137, 0
    %2158 = vmatprep.subr.bf16.mxu0 0
    %2159 = vmatpush1.bf16.msra.mxu0 %v2075
    %2160 = vmatprep.subr.bf16.mxu0 0
    %2161 = vmatpush1.bf16.msra.mxu0 %v2074
    %2162 = vmatprep.subr.bf16.mxu0 0
    %2163 = vmatpush1.bf16.msra.mxu0 %v2073
    %2164 = vmatprep.subr.bf16.mxu0 0
    %2165 = vmatpush1.bf16.msra.mxu0 %v2072
    %2166 = vmatprep.subr.bf16.mxu0 0
    %2167 = vmatpush1.bf16.msra.mxu0 %v2071
    %2168 = vmatprep.subr.bf16.mxu0 0
    %2169 = vmatpush1.bf16.msra.mxu0 %v2070
    %2170 = vmatprep.subr.bf16.mxu0 0
    %2171 = vmatpush1.bf16.msra.mxu0 %v2069
    %2172 = vmatprep.subr.bf16.mxu0 0
    %2173 = vmatpush1.bf16.msra.mxu0 %v2068
    %2174 = vmatprep.subr.bf16.mxu0 0
    %2175 = vmatpush2.bf16.msra.mxu0 %v2083
    %2176 = vmatprep.subr.bf16.mxu0 0
    %2177 = vmatpush2.bf16.msra.mxu0 %v2082
    %2178 = vmatprep.subr.bf16.mxu0 0
    %2179 = vmatpush2.bf16.msra.mxu0 %v2081
    %2180 = vmatprep.subr.bf16.mxu0 0
    %2181 = vmatpush2.bf16.msra.mxu0 %v2080
    %2182 = vmatprep.subr.bf16.mxu0 0
    %2183 = vmatpush2.bf16.msra.mxu0 %v2079
    %2184 = vmatprep.subr.bf16.mxu0 0
    %2185 = vmatpush2.bf16.msra.mxu0 %v2078
    %2186 = vmatprep.subr.bf16.mxu0 0
    %2187 = vmatpush2.bf16.msra.mxu0 %v2077
    %2188 = vmatprep.subr.bf16.mxu0 0
    %2189 = vmatpush2.bf16.msra.mxu0 %v2076
    %2190 = vmatprep.mubr.bf16.mxu0 %v2127
    %2191 = vmatmul.mubr.bf16.gmra.mxu0 %v2126
    %v2192 = vpop.f32.mrf.mxu0
    %v2193 = vadd.f32 0.0, %v2192
    %v2194 = vpop.f32.mrf.mxu0
    %v2195 = vpop.f32.mrf.mxu0
    %v2196 = vadd.f32 0.0, %v2195
    %v2197 = vpop.f32.mrf.mxu0
    %2198 = vmatprep.mubr.bf16.mxu0 %v2130
    %2199 = vmatmul.mubr.bf16.gmra.mxu0 %v2129
    %v2200 = vpop.f32.mrf.mxu0
    %v2201 = vadd.f32 0.0, %v2200
    %v2202 = vpop.f32.mrf.mxu0
    %v2203 = vpop.f32.mrf.mxu0
    %v2204 = vadd.f32 0.0, %v2203
    %v2205 = vpop.f32.mrf.mxu0
    %2206 = vmatprep.mubr.bf16.mxu0 %v2133
    %2207 = vmatmul.mubr.bf16.gmra.mxu0 %v2132
    %v2208 = vpop.f32.mrf.mxu0
    %v2209 = vadd.f32 0.0, %v2208
    %v2210 = vpop.f32.mrf.mxu0
    %v2211 = vpop.f32.mrf.mxu0
    %v2212 = vadd.f32 0.0, %v2211
    %v2213 = vpop.f32.mrf.mxu0
    %2214 = vmatprep.mubr.bf16.mxu0 %v2136
    %2215 = vmatmul.mubr.bf16.gmra.mxu0 %v2135
    %v2216 = vpop.f32.mrf.mxu0
    %v2217 = vadd.f32 0.0, %v2216
    %v2218 = vpop.f32.mrf.mxu0
    %v2219 = vpop.f32.mrf.mxu0
    %v2220 = vadd.f32 0.0, %v2219
    %v2221 = vpop.f32.mrf.mxu0
    %2222 = vdwg.mxu0
    %2223 = vmatprep.subr.bf16.mxu0 0
    %2224 = vmatpush1.bf16.msra.mxu0 0
    %2225 = vmatprep.subr.bf16.mxu0 0
    %2226 = vmatpush1.bf16.msra.mxu0 0
    %2227 = vmatprep.subr.bf16.mxu0 0
    %2228 = vmatpush1.bf16.msra.mxu0 0
    %2229 = vmatprep.subr.bf16.mxu0 0
    %2230 = vmatpush1.bf16.msra.mxu0 0
    %2231 = vmatprep.subr.bf16.mxu0 0
    %2232 = vmatpush1.bf16.msra.mxu0 0
    %2233 = vmatprep.subr.bf16.mxu0 0
    %2234 = vmatpush1.bf16.msra.mxu0 0
    %2235 = vmatprep.subr.bf16.mxu0 0
    %2236 = vmatpush1.bf16.msra.mxu0 %v2085
    %2237 = vmatprep.subr.bf16.mxu0 0
    %2238 = vmatpush1.bf16.msra.mxu0 %v2084
    %2239 = vmatprep.subr.bf16.mxu0 0
    %2240 = vmatpush2.bf16.msra.mxu0 0
    %2241 = vmatprep.subr.bf16.mxu0 0
    %2242 = vmatpush2.bf16.msra.mxu0 0
    %2243 = vmatprep.subr.bf16.mxu0 0
    %2244 = vmatpush2.bf16.msra.mxu0 0
    %2245 = vmatprep.subr.bf16.mxu0 0
    %2246 = vmatpush2.bf16.msra.mxu0 0
    %2247 = vmatprep.subr.bf16.mxu0 0
    %2248 = vmatpush2.bf16.msra.mxu0 0
    %2249 = vmatprep.subr.bf16.mxu0 0
    %2250 = vmatpush2.bf16.msra.mxu0 0
    %2251 = vmatprep.subr.bf16.mxu0 0
    %2252 = vmatpush2.bf16.msra.mxu0 0
    %2253 = vmatprep.subr.bf16.mxu0 0
    %2254 = vmatpush2.bf16.msra.mxu0 0
    %2255 = vmatprep.mubr.bf16.mxu0 0
    %2256 = vmatmul.mubr.bf16.gmra.mxu0 %v2147
    %v2257 = vpop.f32.mrf.mxu0
    %v2258 = vadd.f32 %v2193, %v2257
    %v2259 = vpop.f32.mrf.mxu0
    %v2260 = vpop.f32.mrf.mxu0
    %v2261 = vadd.f32 %v2196, %v2260
    %v2262 = vpop.f32.mrf.mxu0
    %2263 = vmatprep.mubr.bf16.mxu0 0
    %2264 = vmatmul.mubr.bf16.gmra.mxu0 %v2150
    %v2265 = vpop.f32.mrf.mxu0
    %v2266 = vadd.f32 %v2201, %v2265
    %v2267 = vpop.f32.mrf.mxu0
    %v2268 = vpop.f32.mrf.mxu0
    %v2269 = vadd.f32 %v2204, %v2268
    %v2270 = vpop.f32.mrf.mxu0
    %2271 = vmatprep.mubr.bf16.mxu0 0
    %2272 = vmatmul.mubr.bf16.gmra.mxu0 %v2153
    %v2273 = vpop.f32.mrf.mxu0
    %v2274 = vadd.f32 %v2209, %v2273
    %v2275 = vpop.f32.mrf.mxu0
    %v2276 = vpop.f32.mrf.mxu0
    %v2277 = vadd.f32 %v2212, %v2276
    %v2278 = vpop.f32.mrf.mxu0
    %2279 = vmatprep.mubr.bf16.mxu0 0
    %2280 = vmatmul.mubr.bf16.gmra.mxu0 %v2156
    %v2281 = vpop.f32.mrf.mxu0
    %v2282 = vadd.f32 %v2217, %v2281
    %v2283 = vpop.f32.mrf.mxu0
    %v2284 = vpop.f32.mrf.mxu0
    %v2285 = vadd.f32 %v2220, %v2284
    %v2286 = vpop.f32.mrf.mxu0
    %2287 = vdwg.mxu0
    %v2288 = vpack.c.bf16 %v2261, %v2258
    %v2289 = vld [vmem:[#allocation7] sm:$0xf]
    %v2290 = vld [vmem:[#allocation7 + $0x4] sm:$0xf]
    %v2291 = vld [vmem:[#allocation7 + $0x8] sm:$0xf]
    %v2292 = vld [vmem:[#allocation7 + $0xc] sm:$0xf]
    %v2293 = vpack.c.bf16 %v2269, %v2266
    %s2294 = scalar_lea.vmem [#allocation7], 16
    %v2295 = vld [vmem:[%s2294] sm:$0xf]
    %v2296 = vld [vmem:[%s2294 + $0x4] sm:$0xf]
    %v2297 = vld [vmem:[%s2294 + $0x8] sm:$0xf]
    %v2298 = vld [vmem:[%s2294 + $0xc] sm:$0xf]
    %v2303 = vunpack.c.l.b16 %v2295
    %v2304 = vunpack.c.l.b16 %v2296
    %v2305 = vunpack.c.l.b16 %v2297
    %v2306 = vunpack.c.l.b16 %v2298
    %v2307 = vpack.c.b16 %v2304, %v2303
    %v2308 = vpack.c.b16 %v2306, %v2305
    %v2312 = vsel %vm1821, %v2293, 0
    %2314 = vmatprep.subr.bf16.mxu0 0
    %2315 = vmatpush1.bf16.msra.mxu0 0
    %2316 = vmatprep.subr.bf16.mxu0 0
    %2317 = vmatpush1.bf16.msra.mxu0 0
    %2318 = vmatprep.subr.bf16.mxu0 0
    %2319 = vmatpush1.bf16.msra.mxu0 0
    %2320 = vmatprep.subr.bf16.mxu0 0
    %2321 = vmatpush1.bf16.msra.mxu0 0
    %2322 = vmatprep.subr.bf16.mxu0 0
    %2323 = vmatpush1.bf16.msra.mxu0 0
    %2324 = vmatprep.subr.bf16.mxu0 0
    %2325 = vmatpush1.bf16.msra.mxu0 0
    %2326 = vmatprep.subr.bf16.mxu0 0
    %2327 = vmatpush1.bf16.msra.mxu0 %v2308
    %2328 = vmatprep.subr.bf16.mxu0 0
    %2329 = vmatpush1.bf16.msra.mxu0 %v2307
    %2330 = vmatprep.subr.bf16.mxu0 0
    %2331 = vmatpush2.bf16.msra.mxu0 0
    %2332 = vmatprep.subr.bf16.mxu0 0
    %2333 = vmatpush2.bf16.msra.mxu0 0
    %2334 = vmatprep.subr.bf16.mxu0 0
    %2335 = vmatpush2.bf16.msra.mxu0 0
    %2336 = vmatprep.subr.bf16.mxu0 0
    %2337 = vmatpush2.bf16.msra.mxu0 0
    %2338 = vmatprep.subr.bf16.mxu0 0
    %2339 = vmatpush2.bf16.msra.mxu0 0
    %2340 = vmatprep.subr.bf16.mxu0 0
    %2341 = vmatpush2.bf16.msra.mxu0 0
    %2342 = vmatprep.subr.bf16.mxu0 0
    %2343 = vmatpush2.bf16.msra.mxu0 0
    %2344 = vmatprep.subr.bf16.mxu0 0
    %2345 = vmatpush2.bf16.msra.mxu0 0
    %2346 = vmatprep.mubr.bf16.mxu0 0
    %2347 = vmatmul.mubr.bf16.gmra.mxu0 %v2312
    %v2348 = vpop.f32.mrf.mxu0
    %v2349 = vadd.f32 0.0, %v2348
    %v2350 = vpop.f32.mrf.mxu0
    %v2351 = vpop.f32.mrf.mxu0
    %v2352 = vadd.f32 0.0, %v2351
    %v2353 = vpop.f32.mrf.mxu0
    %2354 = vdwg.mxu0
    %v2359 = vunpack.c.l.b16 %v2289
    %v2360 = vunpack.c.l.b16 %v2290
    %v2361 = vunpack.c.l.b16 %v2291
    %v2362 = vunpack.c.l.b16 %v2292
    %v2363 = vpack.c.b16 %v2360, %v2359
    %v2364 = vpack.c.b16 %v2362, %v2361
    %v2368 = vsel %vm1821, %v2288, 0
    %2370 = vmatprep.subr.bf16.mxu0 0
    %2371 = vmatpush1.bf16.msra.mxu0 0
    %2372 = vmatprep.subr.bf16.mxu0 0
    %2373 = vmatpush1.bf16.msra.mxu0 0
    %2374 = vmatprep.subr.bf16.mxu0 0
    %2375 = vmatpush1.bf16.msra.mxu0 0
    %2376 = vmatprep.subr.bf16.mxu0 0
    %2377 = vmatpush1.bf16.msra.mxu0 0
    %2378 = vmatprep.subr.bf16.mxu0 0
    %2379 = vmatpush1.bf16.msra.mxu0 0
    %2380 = vmatprep.subr.bf16.mxu0 0
    %2381 = vmatpush1.bf16.msra.mxu0 0
    %2382 = vmatprep.subr.bf16.mxu0 0
    %2383 = vmatpush1.bf16.msra.mxu0 %v2364
    %2384 = vmatprep.subr.bf16.mxu0 0
    %2385 = vmatpush1.bf16.msra.mxu0 %v2363
    %2386 = vmatprep.subr.bf16.mxu0 0
    %2387 = vmatpush2.bf16.msra.mxu0 0
    %2388 = vmatprep.subr.bf16.mxu0 0
    %2389 = vmatpush2.bf16.msra.mxu0 0
    %2390 = vmatprep.subr.bf16.mxu0 0
    %2391 = vmatpush2.bf16.msra.mxu0 0
    %2392 = vmatprep.subr.bf16.mxu0 0
    %2393 = vmatpush2.bf16.msra.mxu0 0
    %2394 = vmatprep.subr.bf16.mxu0 0
    %2395 = vmatpush2.bf16.msra.mxu0 0
    %2396 = vmatprep.subr.bf16.mxu0 0
    %2397 = vmatpush2.bf16.msra.mxu0 0
    %2398 = vmatprep.subr.bf16.mxu0 0
    %2399 = vmatpush2.bf16.msra.mxu0 0
    %2400 = vmatprep.subr.bf16.mxu0 0
    %2401 = vmatpush2.bf16.msra.mxu0 0
    %2402 = vmatprep.mubr.bf16.mxu0 0
    %2403 = vmatmul.mubr.bf16.gmra.mxu0 %v2368
    %v2404 = vpop.f32.mrf.mxu0
    %v2405 = vadd.f32 %v2349, %v2404
    %v2406 = vpop.f32.mrf.mxu0
    %v2407 = vpop.f32.mrf.mxu0
    %v2408 = vadd.f32 %v2352, %v2407
    %v2409 = vpop.f32.mrf.mxu0
    %2410 = vdwg.mxu0
    %v2411 = vpack.c.bf16 %v2277, %v2274
    %s2412 = scalar_lea.vmem [#allocation7], 32
    %v2413 = vld [vmem:[%s2412] sm:$0xf]
    %v2414 = vld [vmem:[%s2412 + $0x4] sm:$0xf]
    %v2415 = vld [vmem:[%s2412 + $0x8] sm:$0xf]
    %v2416 = vld [vmem:[%s2412 + $0xc] sm:$0xf]
    %v2421 = vunpack.c.l.b16 %v2413
    %v2422 = vunpack.c.l.b16 %v2414
    %v2423 = vunpack.c.l.b16 %v2415
    %v2424 = vunpack.c.l.b16 %v2416
    %v2425 = vpack.c.b16 %v2422, %v2421
    %v2426 = vpack.c.b16 %v2424, %v2423
    %v2430 = vsel %vm1821, %v2411, 0
    %2432 = vmatprep.subr.bf16.mxu0 0
    %2433 = vmatpush1.bf16.msra.mxu0 0
    %2434 = vmatprep.subr.bf16.mxu0 0
    %2435 = vmatpush1.bf16.msra.mxu0 0
    %2436 = vmatprep.subr.bf16.mxu0 0
    %2437 = vmatpush1.bf16.msra.mxu0 0
    %2438 = vmatprep.subr.bf16.mxu0 0
    %2439 = vmatpush1.bf16.msra.mxu0 0
    %2440 = vmatprep.subr.bf16.mxu0 0
    %2441 = vmatpush1.bf16.msra.mxu0 0
    %2442 = vmatprep.subr.bf16.mxu0 0
    %2443 = vmatpush1.bf16.msra.mxu0 0
    %2444 = vmatprep.subr.bf16.mxu0 0
    %2445 = vmatpush1.bf16.msra.mxu0 %v2426
    %2446 = vmatprep.subr.bf16.mxu0 0
    %2447 = vmatpush1.bf16.msra.mxu0 %v2425
    %2448 = vmatprep.subr.bf16.mxu0 0
    %2449 = vmatpush2.bf16.msra.mxu0 0
    %2450 = vmatprep.subr.bf16.mxu0 0
    %2451 = vmatpush2.bf16.msra.mxu0 0
    %2452 = vmatprep.subr.bf16.mxu0 0
    %2453 = vmatpush2.bf16.msra.mxu0 0
    %2454 = vmatprep.subr.bf16.mxu0 0
    %2455 = vmatpush2.bf16.msra.mxu0 0
    %2456 = vmatprep.subr.bf16.mxu0 0
    %2457 = vmatpush2.bf16.msra.mxu0 0
    %2458 = vmatprep.subr.bf16.mxu0 0
    %2459 = vmatpush2.bf16.msra.mxu0 0
    %2460 = vmatprep.subr.bf16.mxu0 0
    %2461 = vmatpush2.bf16.msra.mxu0 0
    %2462 = vmatprep.subr.bf16.mxu0 0
    %2463 = vmatpush2.bf16.msra.mxu0 0
    %2464 = vmatprep.mubr.bf16.mxu0 0
    %2465 = vmatmul.mubr.bf16.gmra.mxu0 %v2430
    %v2466 = vpop.f32.mrf.mxu0
    %v2467 = vadd.f32 0.0, %v2466
    %v2468 = vpop.f32.mrf.mxu0
    %v2469 = vpop.f32.mrf.mxu0
    %v2470 = vadd.f32 0.0, %v2469
    %v2471 = vpop.f32.mrf.mxu0
    %2472 = vdwg.mxu0
    %v2473 = vadd.f32 %v2405, %v2467
    %v2474 = vadd.f32 %v2408, %v2470
    %v2475 = vpack.c.bf16 %v2285, %v2282
    %s2476 = scalar_lea.vmem [#allocation7], 48
    %v2477 = vld [vmem:[%s2476] sm:$0xf]
    %v2478 = vld [vmem:[%s2476 + $0x4] sm:$0xf]
    %v2479 = vld [vmem:[%s2476 + $0x8] sm:$0xf]
    %v2480 = vld [vmem:[%s2476 + $0xc] sm:$0xf]
    %v2485 = vunpack.c.l.b16 %v2477
    %v2486 = vunpack.c.l.b16 %v2478
    %v2487 = vunpack.c.l.b16 %v2479
    %v2488 = vunpack.c.l.b16 %v2480
    %v2489 = vpack.c.b16 %v2486, %v2485
    %v2490 = vpack.c.b16 %v2488, %v2487
    %v2494 = vsel %vm1821, %v2475, 0
    %2496 = vmatprep.subr.bf16.mxu0 0
    %2497 = vmatpush1.bf16.msra.mxu0 0
    %2498 = vmatprep.subr.bf16.mxu0 0
    %2499 = vmatpush1.bf16.msra.mxu0 0
    %2500 = vmatprep.subr.bf16.mxu0 0
    %2501 = vmatpush1.bf16.msra.mxu0 0
    %2502 = vmatprep.subr.bf16.mxu0 0
    %2503 = vmatpush1.bf16.msra.mxu0 0
    %2504 = vmatprep.subr.bf16.mxu0 0
    %2505 = vmatpush1.bf16.msra.mxu0 0
    %2506 = vmatprep.subr.bf16.mxu0 0
    %2507 = vmatpush1.bf16.msra.mxu0 0
    %2508 = vmatprep.subr.bf16.mxu0 0
    %2509 = vmatpush1.bf16.msra.mxu0 %v2490
    %2510 = vmatprep.subr.bf16.mxu0 0
    %2511 = vmatpush1.bf16.msra.mxu0 %v2489
    %2512 = vmatprep.subr.bf16.mxu0 0
    %2513 = vmatpush2.bf16.msra.mxu0 0
    %2514 = vmatprep.subr.bf16.mxu0 0
    %2515 = vmatpush2.bf16.msra.mxu0 0
    %2516 = vmatprep.subr.bf16.mxu0 0
    %2517 = vmatpush2.bf16.msra.mxu0 0
    %2518 = vmatprep.subr.bf16.mxu0 0
    %2519 = vmatpush2.bf16.msra.mxu0 0
    %2520 = vmatprep.subr.bf16.mxu0 0
    %2521 = vmatpush2.bf16.msra.mxu0 0
    %2522 = vmatprep.subr.bf16.mxu0 0
    %2523 = vmatpush2.bf16.msra.mxu0 0
    %2524 = vmatprep.subr.bf16.mxu0 0
    %2525 = vmatpush2.bf16.msra.mxu0 0
    %2526 = vmatprep.subr.bf16.mxu0 0
    %2527 = vmatpush2.bf16.msra.mxu0 0
    %2528 = vmatprep.mubr.bf16.mxu0 0
    %2529 = vmatmul.mubr.bf16.gmra.mxu0 %v2494
    %v2530 = vpop.f32.mrf.mxu0
    %v2531 = vadd.f32 0.0, %v2530
    %v2532 = vpop.f32.mrf.mxu0
    %v2533 = vpop.f32.mrf.mxu0
    %v2534 = vadd.f32 0.0, %v2533
    %v2535 = vpop.f32.mrf.mxu0
    %2536 = vdwg.mxu0
    %v2537 = vadd.f32 %v2473, %v2531
    %v2538 = vadd.f32 %v2474, %v2534
    %2540 = vset.pattern.permute.xlu0 0
    %2541 = vperm.xlu0 %2540, %v1902
    %v2542 = vpop.permute.xlu0 %2541
    %2545 = vset.pattern.permute.xlu0 0
    %2546 = vperm.xlu0 %2545, %v1903
    %v2547 = vpop.permute.xlu0 %2546
    %v2549 = vadd.f32 %v2537, %v2542
    %v2550 = vadd.f32 %v2538, %v2547
    %v2551 = vld [vmem:[#allocation14] sm:$0xff]
    %v2552 = vld [vmem:[#allocation14 + $0x8] sm:$0xf]
    %v2553 = vld [vmem:[#allocation14 + $0xc] sm:$0xff]
    %v2554 = vld [vmem:[#allocation14 + $0x14] sm:$0xf]
    %v2555 = vld [vmem:[%s15] sm:$0xff]
    %v2556 = vld [vmem:[%s15 + $0x8] sm:$0xff]
    %2559 = vrot.lane.b32.xlu0 %v2549, 9
    %v2560 = vpop.permute.xlu0 %2559
    %2561 = vrot.lane.b32.xlu0 %v2550, 9
    %v2562 = vpop.permute.xlu0 %2561
    %2563 = vrot.lane.b32.xlu0 %v1438, 9
    %v2564 = vpop.permute.xlu0 %2563
    %2565 = vrot.lane.b32.xlu0 %v1439, 9
    %v2566 = vpop.permute.xlu0 %2565
    %v2571 = vsel %vm723, 0.0, %v2560
    %v2572 = vsel %vm723, 0.0, %v2562
    %v2573 = vsel %vm723, 0.0, %v2564
    %v2574 = vsel %vm723, 0.0, %v2566
    %v2575 = vmul.f32 %v2571, %v1257
    %v2576 = vmul.f32 %v2572, %v1257
    %v2577 = vmul.f32 %v2573, %v1257
    %v2578 = vmul.f32 %v2574, %v1257
    %2579 = vrot.lane.b32.xlu0 %v2549, 8
    %v2580 = vpop.permute.xlu0 %2579
    %2581 = vrot.lane.b32.xlu0 %v2550, 8
    %v2582 = vpop.permute.xlu0 %2581
    %2583 = vrot.lane.b32.xlu0 %v1438, 8
    %v2584 = vpop.permute.xlu0 %2583
    %2585 = vrot.lane.b32.xlu0 %v1439, 8
    %v2586 = vpop.permute.xlu0 %2585
    %v2591 = vsel %vm1263, 0.0, %v2580
    %v2592 = vsel %vm1263, 0.0, %v2582
    %v2593 = vsel %vm1263, 0.0, %v2584
    %v2594 = vsel %vm1263, 0.0, %v2586
    %v2595 = vmul.f32 %v2591, %v1269
    %v2596 = vmul.f32 %v2592, %v1269
    %v2597 = vmul.f32 %v2593, %v1269
    %v2598 = vmul.f32 %v2594, %v1269
    %2599 = vrot.lane.b32.xlu0 %v2549, 7
    %v2600 = vpop.permute.xlu0 %2599
    %2601 = vrot.lane.b32.xlu0 %v2550, 7
    %v2602 = vpop.permute.xlu0 %2601
    %2603 = vrot.lane.b32.xlu0 %v1438, 7
    %v2604 = vpop.permute.xlu0 %2603
    %2605 = vrot.lane.b32.xlu0 %v1439, 7
    %v2606 = vpop.permute.xlu0 %2605
    %v2611 = vsel %vm1275, 0.0, %v2600
    %v2612 = vsel %vm1275, 0.0, %v2602
    %v2613 = vsel %vm1275, 0.0, %v2604
    %v2614 = vsel %vm1275, 0.0, %v2606
    %v2615 = vmul.f32 %v2611, %v1281
    %v2616 = vmul.f32 %v2612, %v1281
    %v2617 = vmul.f32 %v2613, %v1281
    %v2618 = vmul.f32 %v2614, %v1281
    %2619 = vrot.lane.b32.xlu0 %v2549, 1
    %v2620 = vpop.permute.xlu0 %2619
    %2621 = vrot.lane.b32.xlu0 %v2550, 1
    %v2622 = vpop.permute.xlu0 %2621
    %2623 = vrot.lane.b32.xlu0 %v1438, 1
    %v2624 = vpop.permute.xlu0 %2623
    %2625 = vrot.lane.b32.xlu0 %v1439, 1
    %v2626 = vpop.permute.xlu0 %2625
    %v2631 = vsel %vm401, 0.0, %v2620
    %v2632 = vsel %vm401, 0.0, %v2622
    %v2633 = vsel %vm401, 0.0, %v2624
    %v2634 = vsel %vm401, 0.0, %v2626
    %v2635 = vmul.f32 %v2631, %v1292
    %v2636 = vmul.f32 %v2632, %v1292
    %v2637 = vmul.f32 %v2633, %v1292
    %v2638 = vmul.f32 %v2634, %v1292
    %2639 = vrot.lane.b32.xlu0 %v2549, 127
    %v2640 = vpop.permute.xlu0 %2639
    %2641 = vrot.lane.b32.xlu0 %v2550, 127
    %v2642 = vpop.permute.xlu0 %2641
    %v2645 = vsel %vm443, %v2640, 0.0
    %v2646 = vsel %vm443, %v2642, 0.0
    %v2647 = vmul.f32 %v2645, %v1303
    %v2648 = vmul.f32 %v2646, %v1303
    %v2649 = vmul.f32 %v1464, %v1303
    %v2650 = vmul.f32 %v1465, %v1303
    %2651 = vrot.lane.b32.xlu0 %v2549, 121
    %v2652 = vpop.permute.xlu0 %2651
    %2653 = vrot.lane.b32.xlu0 %v2550, 121
    %v2654 = vpop.permute.xlu0 %2653
    %2655 = vrot.lane.b32.xlu0 %v1438, 121
    %v2656 = vpop.permute.xlu0 %2655
    %2657 = vrot.lane.b32.xlu0 %v1439, 121
    %v2658 = vpop.permute.xlu0 %2657
    %v2663 = vsel %vm1309, %v2652, 0.0
    %v2664 = vsel %vm1309, %v2654, 0.0
    %v2665 = vsel %vm1309, %v2656, 0.0
    %v2666 = vsel %vm1309, %v2658, 0.0
    %v2667 = vmul.f32 %v2663, %v1315
    %v2668 = vmul.f32 %v2664, %v1315
    %v2669 = vmul.f32 %v2665, %v1315
    %v2670 = vmul.f32 %v2666, %v1315
    %2671 = vrot.lane.b32.xlu0 %v2549, 120
    %v2672 = vpop.permute.xlu0 %2671
    %2673 = vrot.lane.b32.xlu0 %v2550, 120
    %v2674 = vpop.permute.xlu0 %2673
    %2675 = vrot.lane.b32.xlu0 %v1438, 120
    %v2676 = vpop.permute.xlu0 %2675
    %2677 = vrot.lane.b32.xlu0 %v1439, 120
    %v2678 = vpop.permute.xlu0 %2677
    %v2683 = vsel %vm1321, %v2672, 0.0
    %v2684 = vsel %vm1321, %v2674, 0.0
    %v2685 = vsel %vm1321, %v2676, 0.0
    %v2686 = vsel %vm1321, %v2678, 0.0
    %v2687 = vmul.f32 %v2683, %v1327
    %v2688 = vmul.f32 %v2684, %v1327
    %v2689 = vmul.f32 %v2685, %v1327
    %v2690 = vmul.f32 %v2686, %v1327
    %2691 = vrot.lane.b32.xlu0 %v2549, 119
    %v2692 = vpop.permute.xlu0 %2691
    %2693 = vrot.lane.b32.xlu0 %v2550, 119
    %v2694 = vpop.permute.xlu0 %2693
    %2695 = vrot.lane.b32.xlu0 %v1438, 119
    %v2696 = vpop.permute.xlu0 %2695
    %2697 = vrot.lane.b32.xlu0 %v1439, 119
    %v2698 = vpop.permute.xlu0 %2697
    %v2703 = vsel %vm1333, %v2692, 0.0
    %v2704 = vsel %vm1333, %v2694, 0.0
    %v2705 = vsel %vm1333, %v2696, 0.0
    %v2706 = vsel %vm1333, %v2698, 0.0
    %v2707 = vmul.f32 %v2703, %v1339
    %v2708 = vmul.f32 %v2704, %v1339
    %v2709 = vmul.f32 %v2705, %v1339
    %v2710 = vmul.f32 %v2706, %v1339
    %v2711 = vpack.c.bf16 %v2576, %v2575
    %v2712 = vpack.c.bf16 %v2578, %v2577
    %v2713 = vpack.c.bf16 %v2596, %v2595
    %v2714 = vpack.c.bf16 %v2598, %v2597
    %v2715 = vpack.c.bf16 %v2616, %v2615
    %v2716 = vpack.c.bf16 %v2618, %v2617
    %v2717 = vpack.c.bf16 %v2636, %v2635
    %v2718 = vpack.c.bf16 %v2638, %v2637
    %v2719 = vpack.c.bf16 %v2550, %v2549
    %v2720 = vpack.c.bf16 %v1439, %v1438
    %v2721 = vpack.c.bf16 %v2648, %v2647
    %v2722 = vpack.c.bf16 %v2650, %v2649
    %v2723 = vpack.c.bf16 %v2668, %v2667
    %v2724 = vpack.c.bf16 %v2670, %v2669
    %v2725 = vpack.c.bf16 %v2688, %v2687
    %v2726 = vpack.c.bf16 %v2690, %v2689
    %v2727 = vpack.c.bf16 %v2708, %v2707
    %v2728 = vpack.c.bf16 %v2710, %v2709
    %2730 = vset.pattern.permute.xlu0 0
    %2731 = vperm.xlu0 %2730, %v2555
    %v2732 = vpop.permute.xlu0 %2731
    %2735 = vset.pattern.permute.xlu0 0
    %2736 = vperm.xlu0 %2735, %v2556
    %v2737 = vpop.permute.xlu0 %2736
    %v2743 = vunpack.c.l.b16 %v2551
    %v2744 = vunpack.c.h.b16 %v2551
    %v2745 = vunpack.c.l.b16 %v2552
    %v2746 = vunpack.c.l.b16 %v2553
    %v2747 = vunpack.c.h.b16 %v2553
    %v2748 = vunpack.c.l.b16 %v2554
    %v2749 = vpack.c.b16 %v2746, %v2743
    %v2750 = vpack.c.b16 %v2747, %v2744
    %v2751 = vpack.c.b16 %v2748, %v2745
    %v2755 = vsel %vm1821, %v2751, 0
    %2757 = vmatprep.subr.bf16.mxu0 0
    %2758 = vmatpush1.bf16.msra.mxu0 %v2718
    %2759 = vmatprep.subr.bf16.mxu0 0
    %2760 = vmatpush1.bf16.msra.mxu0 %v2717
    %2761 = vmatprep.subr.bf16.mxu0 0
    %2762 = vmatpush1.bf16.msra.mxu0 %v2716
    %2763 = vmatprep.subr.bf16.mxu0 0
    %2764 = vmatpush1.bf16.msra.mxu0 %v2715
    %2765 = vmatprep.subr.bf16.mxu0 0
    %2766 = vmatpush1.bf16.msra.mxu0 %v2714
    %2767 = vmatprep.subr.bf16.mxu0 0
    %2768 = vmatpush1.bf16.msra.mxu0 %v2713
    %2769 = vmatprep.subr.bf16.mxu0 0
    %2770 = vmatpush1.bf16.msra.mxu0 %v2712
    %2771 = vmatprep.subr.bf16.mxu0 0
    %2772 = vmatpush1.bf16.msra.mxu0 %v2711
    %2773 = vmatprep.subr.bf16.mxu0 0
    %2774 = vmatpush2.bf16.msra.mxu0 %v2726
    %2775 = vmatprep.subr.bf16.mxu0 0
    %2776 = vmatpush2.bf16.msra.mxu0 %v2725
    %2777 = vmatprep.subr.bf16.mxu0 0
    %2778 = vmatpush2.bf16.msra.mxu0 %v2724
    %2779 = vmatprep.subr.bf16.mxu0 0
    %2780 = vmatpush2.bf16.msra.mxu0 %v2723
    %2781 = vmatprep.subr.bf16.mxu0 0
    %2782 = vmatpush2.bf16.msra.mxu0 %v2722
    %2783 = vmatprep.subr.bf16.mxu0 0
    %2784 = vmatpush2.bf16.msra.mxu0 %v2721
    %2785 = vmatprep.subr.bf16.mxu0 0
    %2786 = vmatpush2.bf16.msra.mxu0 %v2720
    %2787 = vmatprep.subr.bf16.mxu0 0
    %2788 = vmatpush2.bf16.msra.mxu0 %v2719
    %2789 = vmatprep.mubr.bf16.mxu0 %v2750
    %2790 = vmatmul.mubr.bf16.gmra.mxu0 %v2749
    %v2791 = vpop.f32.mrf.mxu0
    %v2792 = vadd.f32 %v2732, %v2791
    %v2793 = vpop.f32.mrf.mxu0
    %v2794 = vpop.f32.mrf.mxu0
    %v2795 = vadd.f32 %v2737, %v2794
    %v2796 = vpop.f32.mrf.mxu0
    %2797 = vdwg.mxu0
    %2798 = vmatprep.subr.bf16.mxu0 0
    %2799 = vmatpush1.bf16.msra.mxu0 0
    %2800 = vmatprep.subr.bf16.mxu0 0
    %2801 = vmatpush1.bf16.msra.mxu0 0
    %2802 = vmatprep.subr.bf16.mxu0 0
    %2803 = vmatpush1.bf16.msra.mxu0 0
    %2804 = vmatprep.subr.bf16.mxu0 0
    %2805 = vmatpush1.bf16.msra.mxu0 0
    %2806 = vmatprep.subr.bf16.mxu0 0
    %2807 = vmatpush1.bf16.msra.mxu0 0
    %2808 = vmatprep.subr.bf16.mxu0 0
    %2809 = vmatpush1.bf16.msra.mxu0 0
    %2810 = vmatprep.subr.bf16.mxu0 0
    %2811 = vmatpush1.bf16.msra.mxu0 %v2728
    %2812 = vmatprep.subr.bf16.mxu0 0
    %2813 = vmatpush1.bf16.msra.mxu0 %v2727
    %2814 = vmatprep.subr.bf16.mxu0 0
    %2815 = vmatpush2.bf16.msra.mxu0 0
    %2816 = vmatprep.subr.bf16.mxu0 0
    %2817 = vmatpush2.bf16.msra.mxu0 0
    %2818 = vmatprep.subr.bf16.mxu0 0
    %2819 = vmatpush2.bf16.msra.mxu0 0
    %2820 = vmatprep.subr.bf16.mxu0 0
    %2821 = vmatpush2.bf16.msra.mxu0 0
    %2822 = vmatprep.subr.bf16.mxu0 0
    %2823 = vmatpush2.bf16.msra.mxu0 0
    %2824 = vmatprep.subr.bf16.mxu0 0
    %2825 = vmatpush2.bf16.msra.mxu0 0
    %2826 = vmatprep.subr.bf16.mxu0 0
    %2827 = vmatpush2.bf16.msra.mxu0 0
    %2828 = vmatprep.subr.bf16.mxu0 0
    %2829 = vmatpush2.bf16.msra.mxu0 0
    %2830 = vmatprep.mubr.bf16.mxu0 0
    %2831 = vmatmul.mubr.bf16.gmra.mxu0 %v2755
    %v2832 = vpop.f32.mrf.mxu0
    %v2833 = vadd.f32 %v2792, %v2832
    %v2834 = vpop.f32.mrf.mxu0
    %v2835 = vpop.f32.mrf.mxu0
    %v2836 = vadd.f32 %v2795, %v2835
    %v2837 = vpop.f32.mrf.mxu0
    %2838 = vdwg.mxu0
    %v2839 = vmax.f32 %v2833, 0.0
    %v2840 = vmax.f32 %v2836, 0.0
    %2841 = vadd.xlane.f32.xlu0 %v2839
    %v2842 = vpop.xlane.xlu0 %2841
    %2843 = vadd.xlane.f32.xlu0 %v2840
    %v2844 = vpop.xlane.xlu0 %2843
    %v2845 = vmul.f32 %v2842, 0.0078125
    %v2846 = vmul.f32 %v2844, 0.0078125
    %v2847 = vmul.f32 %v2839, %v2839
    %v2848 = vmul.f32 %v2840, %v2840
    %2849 = vadd.xlane.f32.xlu0 %v2847
    %v2850 = vpop.xlane.xlu0 %2849
    %2851 = vadd.xlane.f32.xlu0 %v2848
    %v2852 = vpop.xlane.xlu0 %2851
    %v2853 = vmul.f32 %v2850, 0.0078125
    %v2854 = vmul.f32 %v2852, 0.0078125
    %v2855 = vmul.f32 %v2845, %v2845
    %v2856 = vmul.f32 %v2846, %v2846
    %v2857 = vsub.f32 %v2853, %v2855
    %v2858 = vsub.f32 %v2854, %v2856
    %v2859 = vmax.f32 %v2857, 0.0
    %v2860 = vmax.f32 %v2858, 0.0
    %v2861 = vsub.f32 %v2839, %v2845
    %v2862 = vsub.f32 %v2840, %v2846
    %v2863 = vadd.f32 %v2859, 1e-05
    %v2864 = vadd.f32 %v2860, 1e-05
    %v2865 = vrsqrt.pop %v2863
    %v2866 = vrsqrt.pop %v2864
    %v2867 = vmul.f32 %v2861, %v2865
    %v2868 = vmul.f32 %v2862, %v2866
    %v2869 = vld [vmem:[#allocation19] sm:$0xff]
    %v2870 = vld [vmem:[#allocation19 + $0x8] sm:$0xff]
    %v2871 = vld [vmem:[#allocation19 + $0x10] sm:$0xff]
    %v2872 = vld [vmem:[#allocation19 + $0x18] sm:$0xff]
    %v2873 = vld [vmem:[%s23] sm:$0xff]
    %2876 = vrot.lane.b32.xlu0 %v2867, 9
    %v2877 = vpop.permute.xlu0 %2876
    %2878 = vrot.lane.b32.xlu0 %v2868, 9
    %v2879 = vpop.permute.xlu0 %2878
    %v2882 = vsel %vm723, 0.0, %v2877
    %v2883 = vsel %vm723, 0.0, %v2879
    %v2884 = vmul.f32 %v2882, %v1257
    %v2885 = vmul.f32 %v2883, %v1257
    %2886 = vrot.lane.b32.xlu0 %v2867, 8
    %v2887 = vpop.permute.xlu0 %2886
    %2888 = vrot.lane.b32.xlu0 %v2868, 8
    %v2889 = vpop.permute.xlu0 %2888
    %v2892 = vsel %vm1263, 0.0, %v2887
    %v2893 = vsel %vm1263, 0.0, %v2889
    %v2894 = vmul.f32 %v2892, %v1269
    %v2895 = vmul.f32 %v2893, %v1269
    %2896 = vrot.lane.b32.xlu0 %v2867, 7
    %v2897 = vpop.permute.xlu0 %2896
    %2898 = vrot.lane.b32.xlu0 %v2868, 7
    %v2899 = vpop.permute.xlu0 %2898
    %v2902 = vsel %vm1275, 0.0, %v2897
    %v2903 = vsel %vm1275, 0.0, %v2899
    %v2904 = vmul.f32 %v2902, %v1281
    %v2905 = vmul.f32 %v2903, %v1281
    %2906 = vrot.lane.b32.xlu0 %v2867, 1
    %v2907 = vpop.permute.xlu0 %2906
    %2908 = vrot.lane.b32.xlu0 %v2868, 1
    %v2909 = vpop.permute.xlu0 %2908
    %v2912 = vsel %vm401, 0.0, %v2907
    %v2913 = vsel %vm401, 0.0, %v2909
    %v2914 = vmul.f32 %v2912, %v1292
    %v2915 = vmul.f32 %v2913, %v1292
    %2916 = vrot.lane.b32.xlu0 %v2867, 127
    %v2917 = vpop.permute.xlu0 %2916
    %2918 = vrot.lane.b32.xlu0 %v2868, 127
    %v2919 = vpop.permute.xlu0 %2918
    %v2922 = vsel %vm443, %v2917, 0.0
    %v2923 = vsel %vm443, %v2919, 0.0
    %v2924 = vmul.f32 %v2922, %v1303
    %v2925 = vmul.f32 %v2923, %v1303
    %2926 = vrot.lane.b32.xlu0 %v2867, 121
    %v2927 = vpop.permute.xlu0 %2926
    %2928 = vrot.lane.b32.xlu0 %v2868, 121
    %v2929 = vpop.permute.xlu0 %2928
    %v2932 = vsel %vm1309, %v2927, 0.0
    %v2933 = vsel %vm1309, %v2929, 0.0
    %v2934 = vmul.f32 %v2932, %v1315
    %v2935 = vmul.f32 %v2933, %v1315
    %2936 = vrot.lane.b32.xlu0 %v2867, 120
    %v2937 = vpop.permute.xlu0 %2936
    %2938 = vrot.lane.b32.xlu0 %v2868, 120
    %v2939 = vpop.permute.xlu0 %2938
    %v2942 = vsel %vm1321, %v2937, 0.0
    %v2943 = vsel %vm1321, %v2939, 0.0
    %v2944 = vmul.f32 %v2942, %v1327
    %v2945 = vmul.f32 %v2943, %v1327
    %2946 = vrot.lane.b32.xlu0 %v2867, 119
    %v2947 = vpop.permute.xlu0 %2946
    %2948 = vrot.lane.b32.xlu0 %v2868, 119
    %v2949 = vpop.permute.xlu0 %2948
    %v2952 = vsel %vm1333, %v2947, 0.0
    %v2953 = vsel %vm1333, %v2949, 0.0
    %v2954 = vmul.f32 %v2952, %v1339
    %v2955 = vmul.f32 %v2953, %v1339
    %v2956 = vpack.c.bf16 %v2885, %v2884
    %v2957 = vpack.c.bf16 %v2895, %v2894
    %v2958 = vpack.c.bf16 %v2905, %v2904
    %v2959 = vpack.c.bf16 %v2915, %v2914
    %v2960 = vpack.c.bf16 %v2868, %v2867
    %v2961 = vpack.c.bf16 %v2925, %v2924
    %v2962 = vpack.c.bf16 %v2935, %v2934
    %v2963 = vpack.c.bf16 %v2945, %v2944
    %v2964 = vpack.c.bf16 %v2955, %v2954
    %v2969 = vunpack.c.l.b16 %v2869
    %v2970 = vunpack.c.h.b16 %v2869
    %v2971 = vunpack.c.l.b16 %v2870
    %v2972 = vunpack.c.h.b16 %v2870
    %v2973 = vunpack.c.l.b16 %v2871
    %v2974 = vunpack.c.h.b16 %v2871
    %v2975 = vunpack.c.l.b16 %v2872
    %v2976 = vunpack.c.h.b16 %v2872
    %v2977 = vpack.c.b16 %v2971, %v2969
    %v2978 = vpack.c.b16 %v2972, %v2970
    %v2979 = vpack.c.b16 %v2975, %v2973
    %v2980 = vpack.c.b16 %v2976, %v2974
    %v2984 = vsel %vm317, %v2978, 0
    %v2987 = vsel %vm317, %v2980, 0
    %2989 = vmatprep.subr.bf16.mxu0 0
    %2990 = vmatpush1.bf16.msra.mxu0 %v2963
    %2991 = vmatprep.subr.bf16.mxu0 0
    %2992 = vmatpush1.bf16.msra.mxu0 %v2962
    %2993 = vmatprep.subr.bf16.mxu0 0
    %2994 = vmatpush1.bf16.msra.mxu0 %v2961
    %2995 = vmatprep.subr.bf16.mxu0 0
    %2996 = vmatpush1.bf16.msra.mxu0 %v2960
    %2997 = vmatprep.subr.bf16.mxu0 0
    %2998 = vmatpush1.bf16.msra.mxu0 %v2959
    %2999 = vmatprep.subr.bf16.mxu0 0
    %3000 = vmatpush1.bf16.msra.mxu0 %v2958
    %3001 = vmatprep.subr.bf16.mxu0 0
    %3002 = vmatpush1.bf16.msra.mxu0 %v2957
    %3003 = vmatprep.subr.bf16.mxu0 0
    %3004 = vmatpush1.bf16.msra.mxu0 %v2956
    %3005 = vmatprep.subr.bf16.mxu0 0
    %3006 = vmatpush2.bf16.msra.mxu0 0
    %3007 = vmatprep.subr.bf16.mxu0 0
    %3008 = vmatpush2.bf16.msra.mxu0 0
    %3009 = vmatprep.subr.bf16.mxu0 0
    %3010 = vmatpush2.bf16.msra.mxu0 0
    %3011 = vmatprep.subr.bf16.mxu0 0
    %3012 = vmatpush2.bf16.msra.mxu0 0
    %3013 = vmatprep.subr.bf16.mxu0 0
    %3014 = vmatpush2.bf16.msra.mxu0 0
    %3015 = vmatprep.subr.bf16.mxu0 0
    %3016 = vmatpush2.bf16.msra.mxu0 0
    %3017 = vmatprep.subr.bf16.mxu0 0
    %3018 = vmatpush2.bf16.msra.mxu0 0
    %3019 = vmatprep.subr.bf16.mxu0 0
    %3020 = vmatpush2.bf16.msra.mxu0 %v2964
    %3021 = vmatprep.mubr.bf16.mxu0 %v2984
    %3022 = vmatmul.mubr.bf16.gmra.mxu0 %v2977
    %v3023 = vpop.f32.mrf.mxu0
    %v3024 = vadd.f32 0.0, %v3023
    %v3025 = vpop.f32.mrf.mxu0
    %v3026 = vpop.f32.mrf.mxu0
    %v3027 = vadd.f32 0.0, %v3026
    %v3028 = vpop.f32.mrf.mxu0
    %3029 = vmatprep.mubr.bf16.mxu0 %v2987
    %3030 = vmatmul.mubr.bf16.gmra.mxu0 %v2979
    %v3031 = vpop.f32.mrf.mxu0
    %v3032 = vadd.f32 0.0, %v3031
    %v3033 = vpop.f32.mrf.mxu0
    %v3034 = vpop.f32.mrf.mxu0
    %v3035 = vadd.f32 0.0, %v3034
    %v3036 = vpop.f32.mrf.mxu0
    %3037 = vdwg.mxu0
    %v3038 = vpack.c.bf16 %v3024, %v3024
    %v3039 = vld [vmem:[#allocation8] sm:$0xff]
    %v3040 = vld [vmem:[#allocation8 + $0x8] sm:$0xff]
    %v3041 = vld [vmem:[#allocation8 + $0x10] sm:$0xff]
    %v3042 = vld [vmem:[#allocation8 + $0x18] sm:$0xff]
    %v3043 = vld [vmem:[#allocation8 + $0x20] sm:$0xff]
    %v3044 = vld [vmem:[#allocation8 + $0x28] sm:$0xff]
    %v3045 = vld [vmem:[#allocation8 + $0x30] sm:$0xff]
    %v3046 = vld [vmem:[#allocation8 + $0x38] sm:$0xff]
    %v3047 = vld [vmem:[#allocation8 + $0x40] sm:$0xff]
    %v3048 = vld [vmem:[#allocation8 + $0x48] sm:$0xff]
    %v3049 = vld [vmem:[#allocation8 + $0x50] sm:$0xff]
    %v3050 = vld [vmem:[#allocation8 + $0x58] sm:$0xff]
    %v3051 = vld [vmem:[#allocation8 + $0x60] sm:$0xff]
    %v3052 = vld [vmem:[#allocation8 + $0x68] sm:$0xff]
    %v3053 = vld [vmem:[#allocation8 + $0x70] sm:$0xff]
    %v3054 = vld [vmem:[#allocation8 + $0x78] sm:$0xff]
    %v3055 = vld [vmem:[#allocation8 + $0x80] sm:$0xff]
    %v3056 = vld [vmem:[#allocation8 + $0x88] sm:$0xff]
    %v3057 = vld [vmem:[#allocation8 + $0x90] sm:$0xff]
    %v3058 = vld [vmem:[#allocation8 + $0x98] sm:$0xff]
    %v3059 = vld [vmem:[#allocation8 + $0xa0] sm:$0xff]
    %v3060 = vld [vmem:[#allocation8 + $0xa8] sm:$0xff]
    %v3061 = vld [vmem:[#allocation8 + $0xb0] sm:$0xff]
    %v3062 = vld [vmem:[#allocation8 + $0xb8] sm:$0xff]
    %v3063 = vld [vmem:[#allocation8 + $0xc0] sm:$0xff]
    %v3064 = vld [vmem:[#allocation8 + $0xc8] sm:$0xff]
    %v3065 = vld [vmem:[#allocation8 + $0xd0] sm:$0xff]
    %v3066 = vld [vmem:[#allocation8 + $0xd8] sm:$0xff]
    %v3067 = vld [vmem:[#allocation8 + $0xe0] sm:$0xff]
    %v3068 = vld [vmem:[#allocation8 + $0xe8] sm:$0xff]
    %v3069 = vld [vmem:[#allocation8 + $0xf0] sm:$0xff]
    %v3070 = vld [vmem:[#allocation8 + $0xf8] sm:$0xff]
    %v3071 = vpack.c.bf16 %v3027, %v3027
    %s3072 = scalar_lea.vmem [#allocation8], 256
    %v3073 = vld [vmem:[%s3072] sm:$0xff]
    %v3074 = vld [vmem:[%s3072 + $0x8] sm:$0xff]
    %v3075 = vld [vmem:[%s3072 + $0x10] sm:$0xff]
    %v3076 = vld [vmem:[%s3072 + $0x18] sm:$0xff]
    %v3077 = vld [vmem:[%s3072 + $0x20] sm:$0xff]
    %v3078 = vld [vmem:[%s3072 + $0x28] sm:$0xff]
    %v3079 = vld [vmem:[%s3072 + $0x30] sm:$0xff]
    %v3080 = vld [vmem:[%s3072 + $0x38] sm:$0xff]
    %v3081 = vld [vmem:[%s3072 + $0x40] sm:$0xff]
    %v3082 = vld [vmem:[%s3072 + $0x48] sm:$0xff]
    %v3083 = vld [vmem:[%s3072 + $0x50] sm:$0xff]
    %v3084 = vld [vmem:[%s3072 + $0x58] sm:$0xff]
    %v3085 = vld [vmem:[%s3072 + $0x60] sm:$0xff]
    %v3086 = vld [vmem:[%s3072 + $0x68] sm:$0xff]
    %v3087 = vld [vmem:[%s3072 + $0x70] sm:$0xff]
    %v3088 = vld [vmem:[%s3072 + $0x78] sm:$0xff]
    %v3089 = vld [vmem:[%s3072 + $0x80] sm:$0xff]
    %v3090 = vld [vmem:[%s3072 + $0x88] sm:$0xff]
    %v3091 = vld [vmem:[%s3072 + $0x90] sm:$0xff]
    %v3092 = vld [vmem:[%s3072 + $0x98] sm:$0xff]
    %v3093 = vld [vmem:[%s3072 + $0xa0] sm:$0xff]
    %v3094 = vld [vmem:[%s3072 + $0xa8] sm:$0xff]
    %v3095 = vld [vmem:[%s3072 + $0xb0] sm:$0xff]
    %v3096 = vld [vmem:[%s3072 + $0xb8] sm:$0xff]
    %v3097 = vld [vmem:[%s3072 + $0xc0] sm:$0xff]
    %v3098 = vld [vmem:[%s3072 + $0xc8] sm:$0xff]
    %v3099 = vld [vmem:[%s3072 + $0xd0] sm:$0xff]
    %v3100 = vld [vmem:[%s3072 + $0xd8] sm:$0xff]
    %v3101 = vld [vmem:[%s3072 + $0xe0] sm:$0xff]
    %v3102 = vld [vmem:[%s3072 + $0xe8] sm:$0xff]
    %v3103 = vld [vmem:[%s3072 + $0xf0] sm:$0xff]
    %v3104 = vld [vmem:[%s3072 + $0xf8] sm:$0xff]
    %v3137 = vunpack.c.l.b16 %v3073
    %v3138 = vunpack.c.h.b16 %v3073
    %v3139 = vunpack.c.l.b16 %v3074
    %v3140 = vunpack.c.h.b16 %v3074
    %v3141 = vunpack.c.l.b16 %v3075
    %v3142 = vunpack.c.h.b16 %v3075
    %v3143 = vunpack.c.l.b16 %v3076
    %v3144 = vunpack.c.h.b16 %v3076
    %v3145 = vunpack.c.l.b16 %v3077
    %v3146 = vunpack.c.h.b16 %v3077
    %v3147 = vunpack.c.l.b16 %v3078
    %v3148 = vunpack.c.h.b16 %v3078
    %v3149 = vunpack.c.l.b16 %v3079
    %v3150 = vunpack.c.h.b16 %v3079
    %v3151 = vunpack.c.l.b16 %v3080
    %v3152 = vunpack.c.h.b16 %v3080
    %v3153 = vunpack.c.l.b16 %v3081
    %v3154 = vunpack.c.h.b16 %v3081
    %v3155 = vunpack.c.l.b16 %v3082
    %v3156 = vunpack.c.h.b16 %v3082
    %v3157 = vunpack.c.l.b16 %v3083
    %v3158 = vunpack.c.h.b16 %v3083
    %v3159 = vunpack.c.l.b16 %v3084
    %v3160 = vunpack.c.h.b16 %v3084
    %v3161 = vunpack.c.l.b16 %v3085
    %v3162 = vunpack.c.h.b16 %v3085
    %v3163 = vunpack.c.l.b16 %v3086
    %v3164 = vunpack.c.h.b16 %v3086
    %v3165 = vunpack.c.l.b16 %v3087
    %v3166 = vunpack.c.h.b16 %v3087
    %v3167 = vunpack.c.l.b16 %v3088
    %v3168 = vunpack.c.h.b16 %v3088
    %v3169 = vunpack.c.l.b16 %v3089
    %v3170 = vunpack.c.h.b16 %v3089
    %v3171 = vunpack.c.l.b16 %v3090
    %v3172 = vunpack.c.h.b16 %v3090
    %v3173 = vunpack.c.l.b16 %v3091
    %v3174 = vunpack.c.h.b16 %v3091
    %v3175 = vunpack.c.l.b16 %v3092
    %v3176 = vunpack.c.h.b16 %v3092
    %v3177 = vunpack.c.l.b16 %v3093
    %v3178 = vunpack.c.h.b16 %v3093
    %v3179 = vunpack.c.l.b16 %v3094
    %v3180 = vunpack.c.h.b16 %v3094
    %v3181 = vunpack.c.l.b16 %v3095
    %v3182 = vunpack.c.h.b16 %v3095
    %v3183 = vunpack.c.l.b16 %v3096
    %v3184 = vunpack.c.h.b16 %v3096
    %v3185 = vunpack.c.l.b16 %v3097
    %v3186 = vunpack.c.h.b16 %v3097
    %v3187 = vunpack.c.l.b16 %v3098
    %v3188 = vunpack.c.h.b16 %v3098
    %v3189 = vunpack.c.l.b16 %v3099
    %v3190 = vunpack.c.h.b16 %v3099
    %v3191 = vunpack.c.l.b16 %v3100
    %v3192 = vunpack.c.h.b16 %v3100
    %v3193 = vunpack.c.l.b16 %v3101
    %v3194 = vunpack.c.h.b16 %v3101
    %v3195 = vunpack.c.l.b16 %v3102
    %v3196 = vunpack.c.h.b16 %v3102
    %v3197 = vunpack.c.l.b16 %v3103
    %v3198 = vunpack.c.h.b16 %v3103
    %v3199 = vunpack.c.l.b16 %v3104
    %v3200 = vunpack.c.h.b16 %v3104
    %v3201 = vpack.c.b16 %v3141, %v3137
    %v3202 = vpack.c.b16 %v3142, %v3138
    %v3203 = vpack.c.b16 %v3143, %v3139
    %v3204 = vpack.c.b16 %v3144, %v3140
    %v3205 = vpack.c.b16 %v3149, %v3145
    %v3206 = vpack.c.b16 %v3150, %v3146
    %v3207 = vpack.c.b16 %v3151, %v3147
    %v3208 = vpack.c.b16 %v3152, %v3148
    %v3209 = vpack.c.b16 %v3157, %v3153
    %v3210 = vpack.c.b16 %v3158, %v3154
    %v3211 = vpack.c.b16 %v3159, %v3155
    %v3212 = vpack.c.b16 %v3160, %v3156
    %v3213 = vpack.c.b16 %v3165, %v3161
    %v3214 = vpack.c.b16 %v3166, %v3162
    %v3215 = vpack.c.b16 %v3167, %v3163
    %v3216 = vpack.c.b16 %v3168, %v3164
    %v3217 = vpack.c.b16 %v3173, %v3169
    %v3218 = vpack.c.b16 %v3174, %v3170
    %v3219 = vpack.c.b16 %v3175, %v3171
    %v3220 = vpack.c.b16 %v3176, %v3172
    %v3221 = vpack.c.b16 %v3181, %v3177
    %v3222 = vpack.c.b16 %v3182, %v3178
    %v3223 = vpack.c.b16 %v3183, %v3179
    %v3224 = vpack.c.b16 %v3184, %v3180
    %v3225 = vpack.c.b16 %v3189, %v3185
    %v3226 = vpack.c.b16 %v3190, %v3186
    %v3227 = vpack.c.b16 %v3191, %v3187
    %v3228 = vpack.c.b16 %v3192, %v3188
    %v3229 = vpack.c.b16 %v3197, %v3193
    %v3230 = vpack.c.b16 %v3198, %v3194
    %v3231 = vpack.c.b16 %v3199, %v3195
    %v3232 = vpack.c.b16 %v3200, %v3196
    %3265 = vmatprep.subr.bf16.mxu0 %v3230
    %3266 = vmatpush1.bf16.msra.mxu0 %v3229
    %3267 = vmatprep.subr.bf16.mxu0 %v3226
    %3268 = vmatpush1.bf16.msra.mxu0 %v3225
    %3269 = vmatprep.subr.bf16.mxu0 %v3222
    %3270 = vmatpush1.bf16.msra.mxu0 %v3221
    %3271 = vmatprep.subr.bf16.mxu0 %v3218
    %3272 = vmatpush1.bf16.msra.mxu0 %v3217
    %3273 = vmatprep.subr.bf16.mxu0 %v3214
    %3274 = vmatpush1.bf16.msra.mxu0 %v3213
    %3275 = vmatprep.subr.bf16.mxu0 %v3210
    %3276 = vmatpush1.bf16.msra.mxu0 %v3209
    %3277 = vmatprep.subr.bf16.mxu0 %v3206
    %3278 = vmatpush1.bf16.msra.mxu0 %v3205
    %3279 = vmatprep.subr.bf16.mxu0 %v3202
    %3280 = vmatpush1.bf16.msra.mxu0 %v3201
    %3281 = vmatprep.subr.bf16.mxu0 0
    %3282 = vmatpush2.bf16.msra.mxu0 0
    %3283 = vmatprep.subr.bf16.mxu0 0
    %3284 = vmatpush2.bf16.msra.mxu0 0
    %3285 = vmatprep.subr.bf16.mxu0 0
    %3286 = vmatpush2.bf16.msra.mxu0 0
    %3287 = vmatprep.subr.bf16.mxu0 0
    %3288 = vmatpush2.bf16.msra.mxu0 0
    %3289 = vmatprep.subr.bf16.mxu0 0
    %3290 = vmatpush2.bf16.msra.mxu0 0
    %3291 = vmatprep.subr.bf16.mxu0 0
    %3292 = vmatpush2.bf16.msra.mxu0 0
    %3293 = vmatprep.subr.bf16.mxu0 0
    %3294 = vmatpush2.bf16.msra.mxu0 0
    %3295 = vmatprep.subr.bf16.mxu0 0
    %3296 = vmatpush2.bf16.msra.mxu0 0
    %3297 = vmatprep.mubr.bf16.mxu0 0
    %3298 = vmatmul.mubr.bf16.gmra.mxu0 %v3071
    %v3299 = vpop.f32.mrf.mxu0
    %v3300 = vadd.f32 0.0, %v3299
    %v3301 = vpop.f32.mrf.mxu0
    %v3302 = vadd.f32 0.0, %v3301
    %v3303 = vpop.f32.mrf.mxu0
    %v3304 = vpop.f32.mrf.mxu0
    %3305 = vdwg.mxu0
    %3306 = vmatprep.subr.bf16.mxu0 %v3232
    %3307 = vmatpush1.bf16.msra.mxu0 %v3231
    %3308 = vmatprep.subr.bf16.mxu0 %v3228
    %3309 = vmatpush1.bf16.msra.mxu0 %v3227
    %3310 = vmatprep.subr.bf16.mxu0 %v3224
    %3311 = vmatpush1.bf16.msra.mxu0 %v3223
    %3312 = vmatprep.subr.bf16.mxu0 %v3220
    %3313 = vmatpush1.bf16.msra.mxu0 %v3219
    %3314 = vmatprep.subr.bf16.mxu0 %v3216
    %3315 = vmatpush1.bf16.msra.mxu0 %v3215
    %3316 = vmatprep.subr.bf16.mxu0 %v3212
    %3317 = vmatpush1.bf16.msra.mxu0 %v3211
    %3318 = vmatprep.subr.bf16.mxu0 %v3208
    %3319 = vmatpush1.bf16.msra.mxu0 %v3207
    %3320 = vmatprep.subr.bf16.mxu0 %v3204
    %3321 = vmatpush1.bf16.msra.mxu0 %v3203
    %3322 = vmatprep.subr.bf16.mxu0 0
    %3323 = vmatpush2.bf16.msra.mxu0 0
    %3324 = vmatprep.subr.bf16.mxu0 0
    %3325 = vmatpush2.bf16.msra.mxu0 0
    %3326 = vmatprep.subr.bf16.mxu0 0
    %3327 = vmatpush2.bf16.msra.mxu0 0
    %3328 = vmatprep.subr.bf16.mxu0 0
    %3329 = vmatpush2.bf16.msra.mxu0 0
    %3330 = vmatprep.subr.bf16.mxu0 0
    %3331 = vmatpush2.bf16.msra.mxu0 0
    %3332 = vmatprep.subr.bf16.mxu0 0
    %3333 = vmatpush2.bf16.msra.mxu0 0
    %3334 = vmatprep.subr.bf16.mxu0 0
    %3335 = vmatpush2.bf16.msra.mxu0 0
    %3336 = vmatprep.subr.bf16.mxu0 0
    %3337 = vmatpush2.bf16.msra.mxu0 0
    %3338 = vmatprep.mubr.bf16.mxu0 0
    %3339 = vmatmul.mubr.bf16.gmra.mxu0 %v3071
    %v3340 = vpop.f32.mrf.mxu0
    %v3341 = vadd.f32 0.0, %v3340
    %v3342 = vpop.f32.mrf.mxu0
    %v3343 = vadd.f32 0.0, %v3342
    %v3344 = vpop.f32.mrf.mxu0
    %v3345 = vpop.f32.mrf.mxu0
    %3346 = vdwg.mxu0
    %v3379 = vunpack.c.l.b16 %v3039
    %v3380 = vunpack.c.h.b16 %v3039
    %v3381 = vunpack.c.l.b16 %v3040
    %v3382 = vunpack.c.h.b16 %v3040
    %v3383 = vunpack.c.l.b16 %v3041
    %v3384 = vunpack.c.h.b16 %v3041
    %v3385 = vunpack.c.l.b16 %v3042
    %v3386 = vunpack.c.h.b16 %v3042
    %v3387 = vunpack.c.l.b16 %v3043
    %v3388 = vunpack.c.h.b16 %v3043
    %v3389 = vunpack.c.l.b16 %v3044
    %v3390 = vunpack.c.h.b16 %v3044
    %v3391 = vunpack.c.l.b16 %v3045
    %v3392 = vunpack.c.h.b16 %v3045
    %v3393 = vunpack.c.l.b16 %v3046
    %v3394 = vunpack.c.h.b16 %v3046
    %v3395 = vunpack.c.l.b16 %v3047
    %v3396 = vunpack.c.h.b16 %v3047
    %v3397 = vunpack.c.l.b16 %v3048
    %v3398 = vunpack.c.h.b16 %v3048
    %v3399 = vunpack.c.l.b16 %v3049
    %v3400 = vunpack.c.h.b16 %v3049
    %v3401 = vunpack.c.l.b16 %v3050
    %v3402 = vunpack.c.h.b16 %v3050
    %v3403 = vunpack.c.l.b16 %v3051
    %v3404 = vunpack.c.h.b16 %v3051
    %v3405 = vunpack.c.l.b16 %v3052
    %v3406 = vunpack.c.h.b16 %v3052
    %v3407 = vunpack.c.l.b16 %v3053
    %v3408 = vunpack.c.h.b16 %v3053
    %v3409 = vunpack.c.l.b16 %v3054
    %v3410 = vunpack.c.h.b16 %v3054
    %v3411 = vunpack.c.l.b16 %v3055
    %v3412 = vunpack.c.h.b16 %v3055
    %v3413 = vunpack.c.l.b16 %v3056
    %v3414 = vunpack.c.h.b16 %v3056
    %v3415 = vunpack.c.l.b16 %v3057
    %v3416 = vunpack.c.h.b16 %v3057
    %v3417 = vunpack.c.l.b16 %v3058
    %v3418 = vunpack.c.h.b16 %v3058
    %v3419 = vunpack.c.l.b16 %v3059
    %v3420 = vunpack.c.h.b16 %v3059
    %v3421 = vunpack.c.l.b16 %v3060
    %v3422 = vunpack.c.h.b16 %v3060
    %v3423 = vunpack.c.l.b16 %v3061
    %v3424 = vunpack.c.h.b16 %v3061
    %v3425 = vunpack.c.l.b16 %v3062
    %v3426 = vunpack.c.h.b16 %v3062
    %v3427 = vunpack.c.l.b16 %v3063
    %v3428 = vunpack.c.h.b16 %v3063
    %v3429 = vunpack.c.l.b16 %v3064
    %v3430 = vunpack.c.h.b16 %v3064
    %v3431 = vunpack.c.l.b16 %v3065
    %v3432 = vunpack.c.h.b16 %v3065
    %v3433 = vunpack.c.l.b16 %v3066
    %v3434 = vunpack.c.h.b16 %v3066
    %v3435 = vunpack.c.l.b16 %v3067
    %v3436 = vunpack.c.h.b16 %v3067
    %v3437 = vunpack.c.l.b16 %v3068
    %v3438 = vunpack.c.h.b16 %v3068
    %v3439 = vunpack.c.l.b16 %v3069
    %v3440 = vunpack.c.h.b16 %v3069
    %v3441 = vunpack.c.l.b16 %v3070
    %v3442 = vunpack.c.h.b16 %v3070
    %v3443 = vpack.c.b16 %v3383, %v3379
    %v3444 = vpack.c.b16 %v3384, %v3380
    %v3445 = vpack.c.b16 %v3385, %v3381
    %v3446 = vpack.c.b16 %v3386, %v3382
    %v3447 = vpack.c.b16 %v3391, %v3387
    %v3448 = vpack.c.b16 %v3392, %v3388
    %v3449 = vpack.c.b16 %v3393, %v3389
    %v3450 = vpack.c.b16 %v3394, %v3390
    %v3451 = vpack.c.b16 %v3399, %v3395
    %v3452 = vpack.c.b16 %v3400, %v3396
    %v3453 = vpack.c.b16 %v3401, %v3397
    %v3454 = vpack.c.b16 %v3402, %v3398
    %v3455 = vpack.c.b16 %v3407, %v3403
    %v3456 = vpack.c.b16 %v3408, %v3404
    %v3457 = vpack.c.b16 %v3409, %v3405
    %v3458 = vpack.c.b16 %v3410, %v3406
    %v3459 = vpack.c.b16 %v3415, %v3411
    %v3460 = vpack.c.b16 %v3416, %v3412
    %v3461 = vpack.c.b16 %v3417, %v3413
    %v3462 = vpack.c.b16 %v3418, %v3414
    %v3463 = vpack.c.b16 %v3423, %v3419
    %v3464 = vpack.c.b16 %v3424, %v3420
    %v3465 = vpack.c.b16 %v3425, %v3421
    %v3466 = vpack.c.b16 %v3426, %v3422
    %v3467 = vpack.c.b16 %v3431, %v3427
    %v3468 = vpack.c.b16 %v3432, %v3428
    %v3469 = vpack.c.b16 %v3433, %v3429
    %v3470 = vpack.c.b16 %v3434, %v3430
    %v3471 = vpack.c.b16 %v3439, %v3435
    %v3472 = vpack.c.b16 %v3440, %v3436
    %v3473 = vpack.c.b16 %v3441, %v3437
    %v3474 = vpack.c.b16 %v3442, %v3438
    %3507 = vmatprep.subr.bf16.mxu0 %v3472
    %3508 = vmatpush1.bf16.msra.mxu0 %v3471
    %3509 = vmatprep.subr.bf16.mxu0 %v3468
    %3510 = vmatpush1.bf16.msra.mxu0 %v3467
    %3511 = vmatprep.subr.bf16.mxu0 %v3464
    %3512 = vmatpush1.bf16.msra.mxu0 %v3463
    %3513 = vmatprep.subr.bf16.mxu0 %v3460
    %3514 = vmatpush1.bf16.msra.mxu0 %v3459
    %3515 = vmatprep.subr.bf16.mxu0 %v3456
    %3516 = vmatpush1.bf16.msra.mxu0 %v3455
    %3517 = vmatprep.subr.bf16.mxu0 %v3452
    %3518 = vmatpush1.bf16.msra.mxu0 %v3451
    %3519 = vmatprep.subr.bf16.mxu0 %v3448
    %3520 = vmatpush1.bf16.msra.mxu0 %v3447
    %3521 = vmatprep.subr.bf16.mxu0 %v3444
    %3522 = vmatpush1.bf16.msra.mxu0 %v3443
    %3523 = vmatprep.subr.bf16.mxu0 0
    %3524 = vmatpush2.bf16.msra.mxu0 0
    %3525 = vmatprep.subr.bf16.mxu0 0
    %3526 = vmatpush2.bf16.msra.mxu0 0
    %3527 = vmatprep.subr.bf16.mxu0 0
    %3528 = vmatpush2.bf16.msra.mxu0 0
    %3529 = vmatprep.subr.bf16.mxu0 0
    %3530 = vmatpush2.bf16.msra.mxu0 0
    %3531 = vmatprep.subr.bf16.mxu0 0
    %3532 = vmatpush2.bf16.msra.mxu0 0
    %3533 = vmatprep.subr.bf16.mxu0 0
    %3534 = vmatpush2.bf16.msra.mxu0 0
    %3535 = vmatprep.subr.bf16.mxu0 0
    %3536 = vmatpush2.bf16.msra.mxu0 0
    %3537 = vmatprep.subr.bf16.mxu0 0
    %3538 = vmatpush2.bf16.msra.mxu0 0
    %3539 = vmatprep.mubr.bf16.mxu0 0
    %3540 = vmatmul.mubr.bf16.gmra.mxu0 %v3038
    %v3541 = vpop.f32.mrf.mxu0
    %v3542 = vadd.f32 %v3300, %v3541
    %v3543 = vpop.f32.mrf.mxu0
    %v3544 = vadd.f32 %v3302, %v3543
    %v3545 = vpop.f32.mrf.mxu0
    %v3546 = vpop.f32.mrf.mxu0
    %3547 = vdwg.mxu0
    %3548 = vmatprep.subr.bf16.mxu0 %v3474
    %3549 = vmatpush1.bf16.msra.mxu0 %v3473
    %3550 = vmatprep.subr.bf16.mxu0 %v3470
    %3551 = vmatpush1.bf16.msra.mxu0 %v3469
    %3552 = vmatprep.subr.bf16.mxu0 %v3466
    %3553 = vmatpush1.bf16.msra.mxu0 %v3465
    %3554 = vmatprep.subr.bf16.mxu0 %v3462
    %3555 = vmatpush1.bf16.msra.mxu0 %v3461
    %3556 = vmatprep.subr.bf16.mxu0 %v3458
    %3557 = vmatpush1.bf16.msra.mxu0 %v3457
    %3558 = vmatprep.subr.bf16.mxu0 %v3454
    %3559 = vmatpush1.bf16.msra.mxu0 %v3453
    %3560 = vmatprep.subr.bf16.mxu0 %v3450
    %3561 = vmatpush1.bf16.msra.mxu0 %v3449
    %3562 = vmatprep.subr.bf16.mxu0 %v3446
    %3563 = vmatpush1.bf16.msra.mxu0 %v3445
    %3564 = vmatprep.subr.bf16.mxu0 0
    %3565 = vmatpush2.bf16.msra.mxu0 0
    %3566 = vmatprep.subr.bf16.mxu0 0
    %3567 = vmatpush2.bf16.msra.mxu0 0
    %3568 = vmatprep.subr.bf16.mxu0 0
    %3569 = vmatpush2.bf16.msra.mxu0 0
    %3570 = vmatprep.subr.bf16.mxu0 0
    %3571 = vmatpush2.bf16.msra.mxu0 0
    %3572 = vmatprep.subr.bf16.mxu0 0
    %3573 = vmatpush2.bf16.msra.mxu0 0
    %3574 = vmatprep.subr.bf16.mxu0 0
    %3575 = vmatpush2.bf16.msra.mxu0 0
    %3576 = vmatprep.subr.bf16.mxu0 0
    %3577 = vmatpush2.bf16.msra.mxu0 0
    %3578 = vmatprep.subr.bf16.mxu0 0
    %3579 = vmatpush2.bf16.msra.mxu0 0
    %3580 = vmatprep.mubr.bf16.mxu0 0
    %3581 = vmatmul.mubr.bf16.gmra.mxu0 %v3038
    %v3582 = vpop.f32.mrf.mxu0
    %v3583 = vadd.f32 %v3341, %v3582
    %v3584 = vpop.f32.mrf.mxu0
    %v3585 = vadd.f32 %v3343, %v3584
    %v3586 = vpop.f32.mrf.mxu0
    %v3587 = vpop.f32.mrf.mxu0
    %3588 = vdwg.mxu0
    %v3589 = vpack.c.bf16 %v3032, %v3032
    %s3590 = scalar_lea.vmem [#allocation8], 512
    %v3591 = vld [vmem:[%s3590] sm:$0xff]
    %v3592 = vld [vmem:[%s3590 + $0x8] sm:$0xff]
    %v3593 = vld [vmem:[%s3590 + $0x10] sm:$0xff]
    %v3594 = vld [vmem:[%s3590 + $0x18] sm:$0xff]
    %v3595 = vld [vmem:[%s3590 + $0x20] sm:$0xff]
    %v3596 = vld [vmem:[%s3590 + $0x28] sm:$0xff]
    %v3597 = vld [vmem:[%s3590 + $0x30] sm:$0xff]
    %v3598 = vld [vmem:[%s3590 + $0x38] sm:$0xff]
    %v3599 = vld [vmem:[%s3590 + $0x40] sm:$0xff]
    %v3600 = vld [vmem:[%s3590 + $0x48] sm:$0xff]
    %v3601 = vld [vmem:[%s3590 + $0x50] sm:$0xff]
    %v3602 = vld [vmem:[%s3590 + $0x58] sm:$0xff]
    %v3603 = vld [vmem:[%s3590 + $0x60] sm:$0xff]
    %v3604 = vld [vmem:[%s3590 + $0x68] sm:$0xff]
    %v3605 = vld [vmem:[%s3590 + $0x70] sm:$0xff]
    %v3606 = vld [vmem:[%s3590 + $0x78] sm:$0xff]
    %v3607 = vld [vmem:[%s3590 + $0x80] sm:$0xff]
    %v3608 = vld [vmem:[%s3590 + $0x88] sm:$0xff]
    %v3609 = vld [vmem:[%s3590 + $0x90] sm:$0xff]
    %v3610 = vld [vmem:[%s3590 + $0x98] sm:$0xff]
    %v3611 = vld [vmem:[%s3590 + $0xa0] sm:$0xff]
    %v3612 = vld [vmem:[%s3590 + $0xa8] sm:$0xff]
    %v3613 = vld [vmem:[%s3590 + $0xb0] sm:$0xff]
    %v3614 = vld [vmem:[%s3590 + $0xb8] sm:$0xff]
    %v3615 = vld [vmem:[%s3590 + $0xc0] sm:$0xff]
    %v3616 = vld [vmem:[%s3590 + $0xc8] sm:$0xff]
    %v3617 = vld [vmem:[%s3590 + $0xd0] sm:$0xff]
    %v3618 = vld [vmem:[%s3590 + $0xd8] sm:$0xff]
    %v3619 = vld [vmem:[%s3590 + $0xe0] sm:$0xff]
    %v3620 = vld [vmem:[%s3590 + $0xe8] sm:$0xff]
    %v3621 = vld [vmem:[%s3590 + $0xf0] sm:$0xff]
    %v3622 = vld [vmem:[%s3590 + $0xf8] sm:$0xff]
    %v3655 = vunpack.c.l.b16 %v3591
    %v3656 = vunpack.c.h.b16 %v3591
    %v3657 = vunpack.c.l.b16 %v3592
    %v3658 = vunpack.c.h.b16 %v3592
    %v3659 = vunpack.c.l.b16 %v3593
    %v3660 = vunpack.c.h.b16 %v3593
    %v3661 = vunpack.c.l.b16 %v3594
    %v3662 = vunpack.c.h.b16 %v3594
    %v3663 = vunpack.c.l.b16 %v3595
    %v3664 = vunpack.c.h.b16 %v3595
    %v3665 = vunpack.c.l.b16 %v3596
    %v3666 = vunpack.c.h.b16 %v3596
    %v3667 = vunpack.c.l.b16 %v3597
    %v3668 = vunpack.c.h.b16 %v3597
    %v3669 = vunpack.c.l.b16 %v3598
    %v3670 = vunpack.c.h.b16 %v3598
    %v3671 = vunpack.c.l.b16 %v3599
    %v3672 = vunpack.c.h.b16 %v3599
    %v3673 = vunpack.c.l.b16 %v3600
    %v3674 = vunpack.c.h.b16 %v3600
    %v3675 = vunpack.c.l.b16 %v3601
    %v3676 = vunpack.c.h.b16 %v3601
    %v3677 = vunpack.c.l.b16 %v3602
    %v3678 = vunpack.c.h.b16 %v3602
    %v3679 = vunpack.c.l.b16 %v3603
    %v3680 = vunpack.c.h.b16 %v3603
    %v3681 = vunpack.c.l.b16 %v3604
    %v3682 = vunpack.c.h.b16 %v3604
    %v3683 = vunpack.c.l.b16 %v3605
    %v3684 = vunpack.c.h.b16 %v3605
    %v3685 = vunpack.c.l.b16 %v3606
    %v3686 = vunpack.c.h.b16 %v3606
    %v3687 = vunpack.c.l.b16 %v3607
    %v3688 = vunpack.c.h.b16 %v3607
    %v3689 = vunpack.c.l.b16 %v3608
    %v3690 = vunpack.c.h.b16 %v3608
    %v3691 = vunpack.c.l.b16 %v3609
    %v3692 = vunpack.c.h.b16 %v3609
    %v3693 = vunpack.c.l.b16 %v3610
    %v3694 = vunpack.c.h.b16 %v3610
    %v3695 = vunpack.c.l.b16 %v3611
    %v3696 = vunpack.c.h.b16 %v3611
    %v3697 = vunpack.c.l.b16 %v3612
    %v3698 = vunpack.c.h.b16 %v3612
    %v3699 = vunpack.c.l.b16 %v3613
    %v3700 = vunpack.c.h.b16 %v3613
    %v3701 = vunpack.c.l.b16 %v3614
    %v3702 = vunpack.c.h.b16 %v3614
    %v3703 = vunpack.c.l.b16 %v3615
    %v3704 = vunpack.c.h.b16 %v3615
    %v3705 = vunpack.c.l.b16 %v3616
    %v3706 = vunpack.c.h.b16 %v3616
    %v3707 = vunpack.c.l.b16 %v3617
    %v3708 = vunpack.c.h.b16 %v3617
    %v3709 = vunpack.c.l.b16 %v3618
    %v3710 = vunpack.c.h.b16 %v3618
    %v3711 = vunpack.c.l.b16 %v3619
    %v3712 = vunpack.c.h.b16 %v3619
    %v3713 = vunpack.c.l.b16 %v3620
    %v3714 = vunpack.c.h.b16 %v3620
    %v3715 = vunpack.c.l.b16 %v3621
    %v3716 = vunpack.c.h.b16 %v3621
    %v3717 = vunpack.c.l.b16 %v3622
    %v3718 = vunpack.c.h.b16 %v3622
    %v3719 = vpack.c.b16 %v3659, %v3655
    %v3720 = vpack.c.b16 %v3660, %v3656
    %v3721 = vpack.c.b16 %v3661, %v3657
    %v3722 = vpack.c.b16 %v3662, %v3658
    %v3723 = vpack.c.b16 %v3667, %v3663
    %v3724 = vpack.c.b16 %v3668, %v3664
    %v3725 = vpack.c.b16 %v3669, %v3665
    %v3726 = vpack.c.b16 %v3670, %v3666
    %v3727 = vpack.c.b16 %v3675, %v3671
    %v3728 = vpack.c.b16 %v3676, %v3672
    %v3729 = vpack.c.b16 %v3677, %v3673
    %v3730 = vpack.c.b16 %v3678, %v3674
    %v3731 = vpack.c.b16 %v3683, %v3679
    %v3732 = vpack.c.b16 %v3684, %v3680
    %v3733 = vpack.c.b16 %v3685, %v3681
    %v3734 = vpack.c.b16 %v3686, %v3682
    %v3735 = vpack.c.b16 %v3691, %v3687
    %v3736 = vpack.c.b16 %v3692, %v3688
    %v3737 = vpack.c.b16 %v3693, %v3689
    %v3738 = vpack.c.b16 %v3694, %v3690
    %v3739 = vpack.c.b16 %v3699, %v3695
    %v3740 = vpack.c.b16 %v3700, %v3696
    %v3741 = vpack.c.b16 %v3701, %v3697
    %v3742 = vpack.c.b16 %v3702, %v3698
    %v3743 = vpack.c.b16 %v3707, %v3703
    %v3744 = vpack.c.b16 %v3708, %v3704
    %v3745 = vpack.c.b16 %v3709, %v3705
    %v3746 = vpack.c.b16 %v3710, %v3706
    %v3747 = vpack.c.b16 %v3715, %v3711
    %v3748 = vpack.c.b16 %v3716, %v3712
    %v3749 = vpack.c.b16 %v3717, %v3713
    %v3750 = vpack.c.b16 %v3718, %v3714
    %3783 = vmatprep.subr.bf16.mxu0 %v3748
    %3784 = vmatpush1.bf16.msra.mxu0 %v3747
    %3785 = vmatprep.subr.bf16.mxu0 %v3744
    %3786 = vmatpush1.bf16.msra.mxu0 %v3743
    %3787 = vmatprep.subr.bf16.mxu0 %v3740
    %3788 = vmatpush1.bf16.msra.mxu0 %v3739
    %3789 = vmatprep.subr.bf16.mxu0 %v3736
    %3790 = vmatpush1.bf16.msra.mxu0 %v3735
    %3791 = vmatprep.subr.bf16.mxu0 %v3732
    %3792 = vmatpush1.bf16.msra.mxu0 %v3731
    %3793 = vmatprep.subr.bf16.mxu0 %v3728
    %3794 = vmatpush1.bf16.msra.mxu0 %v3727
    %3795 = vmatprep.subr.bf16.mxu0 %v3724
    %3796 = vmatpush1.bf16.msra.mxu0 %v3723
    %3797 = vmatprep.subr.bf16.mxu0 %v3720
    %3798 = vmatpush1.bf16.msra.mxu0 %v3719
    %3799 = vmatprep.subr.bf16.mxu0 0
    %3800 = vmatpush2.bf16.msra.mxu0 0
    %3801 = vmatprep.subr.bf16.mxu0 0
    %3802 = vmatpush2.bf16.msra.mxu0 0
    %3803 = vmatprep.subr.bf16.mxu0 0
    %3804 = vmatpush2.bf16.msra.mxu0 0
    %3805 = vmatprep.subr.bf16.mxu0 0
    %3806 = vmatpush2.bf16.msra.mxu0 0
    %3807 = vmatprep.subr.bf16.mxu0 0
    %3808 = vmatpush2.bf16.msra.mxu0 0
    %3809 = vmatprep.subr.bf16.mxu0 0
    %3810 = vmatpush2.bf16.msra.mxu0 0
    %3811 = vmatprep.subr.bf16.mxu0 0
    %3812 = vmatpush2.bf16.msra.mxu0 0
    %3813 = vmatprep.subr.bf16.mxu0 0
    %3814 = vmatpush2.bf16.msra.mxu0 0
    %3815 = vmatprep.mubr.bf16.mxu0 0
    %3816 = vmatmul.mubr.bf16.gmra.mxu0 %v3589
    %v3817 = vpop.f32.mrf.mxu0
    %v3818 = vadd.f32 0.0, %v3817
    %v3819 = vpop.f32.mrf.mxu0
    %v3820 = vadd.f32 0.0, %v3819
    %v3821 = vpop.f32.mrf.mxu0
    %v3822 = vpop.f32.mrf.mxu0
    %3823 = vdwg.mxu0
    %3824 = vmatprep.subr.bf16.mxu0 %v3750
    %3825 = vmatpush1.bf16.msra.mxu0 %v3749
    %3826 = vmatprep.subr.bf16.mxu0 %v3746
    %3827 = vmatpush1.bf16.msra.mxu0 %v3745
    %3828 = vmatprep.subr.bf16.mxu0 %v3742
    %3829 = vmatpush1.bf16.msra.mxu0 %v3741
    %3830 = vmatprep.subr.bf16.mxu0 %v3738
    %3831 = vmatpush1.bf16.msra.mxu0 %v3737
    %3832 = vmatprep.subr.bf16.mxu0 %v3734
    %3833 = vmatpush1.bf16.msra.mxu0 %v3733
    %3834 = vmatprep.subr.bf16.mxu0 %v3730
    %3835 = vmatpush1.bf16.msra.mxu0 %v3729
    %3836 = vmatprep.subr.bf16.mxu0 %v3726
    %3837 = vmatpush1.bf16.msra.mxu0 %v3725
    %3838 = vmatprep.subr.bf16.mxu0 %v3722
    %3839 = vmatpush1.bf16.msra.mxu0 %v3721
    %3840 = vmatprep.subr.bf16.mxu0 0
    %3841 = vmatpush2.bf16.msra.mxu0 0
    %3842 = vmatprep.subr.bf16.mxu0 0
    %3843 = vmatpush2.bf16.msra.mxu0 0
    %3844 = vmatprep.subr.bf16.mxu0 0
    %3845 = vmatpush2.bf16.msra.mxu0 0
    %3846 = vmatprep.subr.bf16.mxu0 0
    %3847 = vmatpush2.bf16.msra.mxu0 0
    %3848 = vmatprep.subr.bf16.mxu0 0
    %3849 = vmatpush2.bf16.msra.mxu0 0
    %3850 = vmatprep.subr.bf16.mxu0 0
    %3851 = vmatpush2.bf16.msra.mxu0 0
    %3852 = vmatprep.subr.bf16.mxu0 0
    %3853 = vmatpush2.bf16.msra.mxu0 0
    %3854 = vmatprep.subr.bf16.mxu0 0
    %3855 = vmatpush2.bf16.msra.mxu0 0
    %3856 = vmatprep.mubr.bf16.mxu0 0
    %3857 = vmatmul.mubr.bf16.gmra.mxu0 %v3589
    %v3858 = vpop.f32.mrf.mxu0
    %v3859 = vadd.f32 0.0, %v3858
    %v3860 = vpop.f32.mrf.mxu0
    %v3861 = vadd.f32 0.0, %v3860
    %v3862 = vpop.f32.mrf.mxu0
    %v3863 = vpop.f32.mrf.mxu0
    %3864 = vdwg.mxu0
    %v3865 = vadd.f32 %v3542, %v3818
    %v3866 = vadd.f32 %v3544, %v3820
    %v3867 = vadd.f32 %v3583, %v3859
    %v3868 = vadd.f32 %v3585, %v3861
    %v3869 = vpack.c.bf16 %v3035, %v3035
    %s3870 = scalar_lea.vmem [#allocation8], 768
    %v3871 = vld [vmem:[%s3870] sm:$0xff]
    %v3872 = vld [vmem:[%s3870 + $0x8] sm:$0xff]
    %v3873 = vld [vmem:[%s3870 + $0x10] sm:$0xff]
    %v3874 = vld [vmem:[%s3870 + $0x18] sm:$0xff]
    %v3875 = vld [vmem:[%s3870 + $0x20] sm:$0xff]
    %v3876 = vld [vmem:[%s3870 + $0x28] sm:$0xff]
    %v3877 = vld [vmem:[%s3870 + $0x30] sm:$0xff]
    %v3878 = vld [vmem:[%s3870 + $0x38] sm:$0xff]
    %v3879 = vld [vmem:[%s3870 + $0x40] sm:$0xff]
    %v3880 = vld [vmem:[%s3870 + $0x48] sm:$0xff]
    %v3881 = vld [vmem:[%s3870 + $0x50] sm:$0xff]
    %v3882 = vld [vmem:[%s3870 + $0x58] sm:$0xff]
    %v3883 = vld [vmem:[%s3870 + $0x60] sm:$0xff]
    %v3884 = vld [vmem:[%s3870 + $0x68] sm:$0xff]
    %v3885 = vld [vmem:[%s3870 + $0x70] sm:$0xff]
    %v3886 = vld [vmem:[%s3870 + $0x78] sm:$0xff]
    %v3887 = vld [vmem:[%s3870 + $0x80] sm:$0xff]
    %v3888 = vld [vmem:[%s3870 + $0x88] sm:$0xff]
    %v3889 = vld [vmem:[%s3870 + $0x90] sm:$0xff]
    %v3890 = vld [vmem:[%s3870 + $0x98] sm:$0xff]
    %v3891 = vld [vmem:[%s3870 + $0xa0] sm:$0xff]
    %v3892 = vld [vmem:[%s3870 + $0xa8] sm:$0xff]
    %v3893 = vld [vmem:[%s3870 + $0xb0] sm:$0xff]
    %v3894 = vld [vmem:[%s3870 + $0xb8] sm:$0xff]
    %v3895 = vld [vmem:[%s3870 + $0xc0] sm:$0xff]
    %v3896 = vld [vmem:[%s3870 + $0xc8] sm:$0xff]
    %v3897 = vld [vmem:[%s3870 + $0xd0] sm:$0xff]
    %v3898 = vld [vmem:[%s3870 + $0xd8] sm:$0xff]
    %v3899 = vld [vmem:[%s3870 + $0xe0] sm:$0xff]
    %v3900 = vld [vmem:[%s3870 + $0xe8] sm:$0xff]
    %v3901 = vld [vmem:[%s3870 + $0xf0] sm:$0xff]
    %v3902 = vld [vmem:[%s3870 + $0xf8] sm:$0xff]
    %v3935 = vunpack.c.l.b16 %v3871
    %v3936 = vunpack.c.h.b16 %v3871
    %v3937 = vunpack.c.l.b16 %v3872
    %v3938 = vunpack.c.h.b16 %v3872
    %v3939 = vunpack.c.l.b16 %v3873
    %v3940 = vunpack.c.h.b16 %v3873
    %v3941 = vunpack.c.l.b16 %v3874
    %v3942 = vunpack.c.h.b16 %v3874
    %v3943 = vunpack.c.l.b16 %v3875
    %v3944 = vunpack.c.h.b16 %v3875
    %v3945 = vunpack.c.l.b16 %v3876
    %v3946 = vunpack.c.h.b16 %v3876
    %v3947 = vunpack.c.l.b16 %v3877
    %v3948 = vunpack.c.h.b16 %v3877
    %v3949 = vunpack.c.l.b16 %v3878
    %v3950 = vunpack.c.h.b16 %v3878
    %v3951 = vunpack.c.l.b16 %v3879
    %v3952 = vunpack.c.h.b16 %v3879
    %v3953 = vunpack.c.l.b16 %v3880
    %v3954 = vunpack.c.h.b16 %v3880
    %v3955 = vunpack.c.l.b16 %v3881
    %v3956 = vunpack.c.h.b16 %v3881
    %v3957 = vunpack.c.l.b16 %v3882
    %v3958 = vunpack.c.h.b16 %v3882
    %v3959 = vunpack.c.l.b16 %v3883
    %v3960 = vunpack.c.h.b16 %v3883
    %v3961 = vunpack.c.l.b16 %v3884
    %v3962 = vunpack.c.h.b16 %v3884
    %v3963 = vunpack.c.l.b16 %v3885
    %v3964 = vunpack.c.h.b16 %v3885
    %v3965 = vunpack.c.l.b16 %v3886
    %v3966 = vunpack.c.h.b16 %v3886
    %v3967 = vunpack.c.l.b16 %v3887
    %v3968 = vunpack.c.h.b16 %v3887
    %v3969 = vunpack.c.l.b16 %v3888
    %v3970 = vunpack.c.h.b16 %v3888
    %v3971 = vunpack.c.l.b16 %v3889
    %v3972 = vunpack.c.h.b16 %v3889
    %v3973 = vunpack.c.l.b16 %v3890
    %v3974 = vunpack.c.h.b16 %v3890
    %v3975 = vunpack.c.l.b16 %v3891
    %v3976 = vunpack.c.h.b16 %v3891
    %v3977 = vunpack.c.l.b16 %v3892
    %v3978 = vunpack.c.h.b16 %v3892
    %v3979 = vunpack.c.l.b16 %v3893
    %v3980 = vunpack.c.h.b16 %v3893
    %v3981 = vunpack.c.l.b16 %v3894
    %v3982 = vunpack.c.h.b16 %v3894
    %v3983 = vunpack.c.l.b16 %v3895
    %v3984 = vunpack.c.h.b16 %v3895
    %v3985 = vunpack.c.l.b16 %v3896
    %v3986 = vunpack.c.h.b16 %v3896
    %v3987 = vunpack.c.l.b16 %v3897
    %v3988 = vunpack.c.h.b16 %v3897
    %v3989 = vunpack.c.l.b16 %v3898
    %v3990 = vunpack.c.h.b16 %v3898
    %v3991 = vunpack.c.l.b16 %v3899
    %v3992 = vunpack.c.h.b16 %v3899
    %v3993 = vunpack.c.l.b16 %v3900
    %v3994 = vunpack.c.h.b16 %v3900
    %v3995 = vunpack.c.l.b16 %v3901
    %v3996 = vunpack.c.h.b16 %v3901
    %v3997 = vunpack.c.l.b16 %v3902
    %v3998 = vunpack.c.h.b16 %v3902
    %v3999 = vpack.c.b16 %v3939, %v3935
    %v4000 = vpack.c.b16 %v3940, %v3936
    %v4001 = vpack.c.b16 %v3941, %v3937
    %v4002 = vpack.c.b16 %v3942, %v3938
    %v4003 = vpack.c.b16 %v3947, %v3943
    %v4004 = vpack.c.b16 %v3948, %v3944
    %v4005 = vpack.c.b16 %v3949, %v3945
    %v4006 = vpack.c.b16 %v3950, %v3946
    %v4007 = vpack.c.b16 %v3955, %v3951
    %v4008 = vpack.c.b16 %v3956, %v3952
    %v4009 = vpack.c.b16 %v3957, %v3953
    %v4010 = vpack.c.b16 %v3958, %v3954
    %v4011 = vpack.c.b16 %v3963, %v3959
    %v4012 = vpack.c.b16 %v3964, %v3960
    %v4013 = vpack.c.b16 %v3965, %v3961
    %v4014 = vpack.c.b16 %v3966, %v3962
    %v4015 = vpack.c.b16 %v3971, %v3967
    %v4016 = vpack.c.b16 %v3972, %v3968
    %v4017 = vpack.c.b16 %v3973, %v3969
    %v4018 = vpack.c.b16 %v3974, %v3970
    %v4019 = vpack.c.b16 %v3979, %v3975
    %v4020 = vpack.c.b16 %v3980, %v3976
    %v4021 = vpack.c.b16 %v3981, %v3977
    %v4022 = vpack.c.b16 %v3982, %v3978
    %v4023 = vpack.c.b16 %v3987, %v3983
    %v4024 = vpack.c.b16 %v3988, %v3984
    %v4025 = vpack.c.b16 %v3989, %v3985
    %v4026 = vpack.c.b16 %v3990, %v3986
    %v4027 = vpack.c.b16 %v3995, %v3991
    %v4028 = vpack.c.b16 %v3996, %v3992
    %v4029 = vpack.c.b16 %v3997, %v3993
    %v4030 = vpack.c.b16 %v3998, %v3994
    %4063 = vmatprep.subr.bf16.mxu0 %v4028
    %4064 = vmatpush1.bf16.msra.mxu0 %v4027
    %4065 = vmatprep.subr.bf16.mxu0 %v4024
    %4066 = vmatpush1.bf16.msra.mxu0 %v4023
    %4067 = vmatprep.subr.bf16.mxu0 %v4020
    %4068 = vmatpush1.bf16.msra.mxu0 %v4019
    %4069 = vmatprep.subr.bf16.mxu0 %v4016
    %4070 = vmatpush1.bf16.msra.mxu0 %v4015
    %4071 = vmatprep.subr.bf16.mxu0 %v4012
    %4072 = vmatpush1.bf16.msra.mxu0 %v4011
    %4073 = vmatprep.subr.bf16.mxu0 %v4008
    %4074 = vmatpush1.bf16.msra.mxu0 %v4007
    %4075 = vmatprep.subr.bf16.mxu0 %v4004
    %4076 = vmatpush1.bf16.msra.mxu0 %v4003
    %4077 = vmatprep.subr.bf16.mxu0 %v4000
    %4078 = vmatpush1.bf16.msra.mxu0 %v3999
    %4079 = vmatprep.subr.bf16.mxu0 0
    %4080 = vmatpush2.bf16.msra.mxu0 0
    %4081 = vmatprep.subr.bf16.mxu0 0
    %4082 = vmatpush2.bf16.msra.mxu0 0
    %4083 = vmatprep.subr.bf16.mxu0 0
    %4084 = vmatpush2.bf16.msra.mxu0 0
    %4085 = vmatprep.subr.bf16.mxu0 0
    %4086 = vmatpush2.bf16.msra.mxu0 0
    %4087 = vmatprep.subr.bf16.mxu0 0
    %4088 = vmatpush2.bf16.msra.mxu0 0
    %4089 = vmatprep.subr.bf16.mxu0 0
    %4090 = vmatpush2.bf16.msra.mxu0 0
    %4091 = vmatprep.subr.bf16.mxu0 0
    %4092 = vmatpush2.bf16.msra.mxu0 0
    %4093 = vmatprep.subr.bf16.mxu0 0
    %4094 = vmatpush2.bf16.msra.mxu0 0
    %4095 = vmatprep.mubr.bf16.mxu0 0
    %4096 = vmatmul.mubr.bf16.gmra.mxu0 %v3869
    %v4097 = vpop.f32.mrf.mxu0
    %v4098 = vadd.f32 0.0, %v4097
    %v4099 = vpop.f32.mrf.mxu0
    %v4100 = vadd.f32 0.0, %v4099
    %v4101 = vpop.f32.mrf.mxu0
    %v4102 = vpop.f32.mrf.mxu0
    %4103 = vdwg.mxu0
    %4104 = vmatprep.subr.bf16.mxu0 %v4030
    %4105 = vmatpush1.bf16.msra.mxu0 %v4029
    %4106 = vmatprep.subr.bf16.mxu0 %v4026
    %4107 = vmatpush1.bf16.msra.mxu0 %v4025
    %4108 = vmatprep.subr.bf16.mxu0 %v4022
    %4109 = vmatpush1.bf16.msra.mxu0 %v4021
    %4110 = vmatprep.subr.bf16.mxu0 %v4018
    %4111 = vmatpush1.bf16.msra.mxu0 %v4017
    %4112 = vmatprep.subr.bf16.mxu0 %v4014
    %4113 = vmatpush1.bf16.msra.mxu0 %v4013
    %4114 = vmatprep.subr.bf16.mxu0 %v4010
    %4115 = vmatpush1.bf16.msra.mxu0 %v4009
    %4116 = vmatprep.subr.bf16.mxu0 %v4006
    %4117 = vmatpush1.bf16.msra.mxu0 %v4005
    %4118 = vmatprep.subr.bf16.mxu0 %v4002
    %4119 = vmatpush1.bf16.msra.mxu0 %v4001
    %4120 = vmatprep.subr.bf16.mxu0 0
    %4121 = vmatpush2.bf16.msra.mxu0 0
    %4122 = vmatprep.subr.bf16.mxu0 0
    %4123 = vmatpush2.bf16.msra.mxu0 0
    %4124 = vmatprep.subr.bf16.mxu0 0
    %4125 = vmatpush2.bf16.msra.mxu0 0
    %4126 = vmatprep.subr.bf16.mxu0 0
    %4127 = vmatpush2.bf16.msra.mxu0 0
    %4128 = vmatprep.subr.bf16.mxu0 0
    %4129 = vmatpush2.bf16.msra.mxu0 0
    %4130 = vmatprep.subr.bf16.mxu0 0
    %4131 = vmatpush2.bf16.msra.mxu0 0
    %4132 = vmatprep.subr.bf16.mxu0 0
    %4133 = vmatpush2.bf16.msra.mxu0 0
    %4134 = vmatprep.subr.bf16.mxu0 0
    %4135 = vmatpush2.bf16.msra.mxu0 0
    %4136 = vmatprep.mubr.bf16.mxu0 0
    %4137 = vmatmul.mubr.bf16.gmra.mxu0 %v3869
    %v4138 = vpop.f32.mrf.mxu0
    %v4139 = vadd.f32 0.0, %v4138
    %v4140 = vpop.f32.mrf.mxu0
    %v4141 = vadd.f32 0.0, %v4140
    %v4142 = vpop.f32.mrf.mxu0
    %v4143 = vpop.f32.mrf.mxu0
    %4144 = vdwg.mxu0
    %v4145 = vadd.f32 %v3865, %v4098
    %v4146 = vadd.f32 %v3866, %v4100
    %v4147 = vadd.f32 %v3867, %v4139
    %v4148 = vadd.f32 %v3868, %v4141
    %4150 = vset.pattern.permute.xlu0 0
    %4151 = vperm.xlu0 %4150, %v2873
    %v4152 = vpop.permute.xlu0 %4151
    %v4154 = vadd.f32 %v4145, %v4152
    %v4155 = vadd.f32 %v4146, %v4152
    %v4156 = vadd.f32 %v4147, %v4152
    %v4157 = vadd.f32 %v4148, %v4152
    %v4158 = vld [vmem:[#allocation16] sm:$0xff]
    %v4159 = vld [vmem:[%s17] sm:$0xff]
    %4164 = vrot.lane.b32.xlu0 %v4154, 17
    %v4165 = vpop.permute.xlu0 %4164
    %4166 = vrot.lane.b32.xlu0 %v4155, 17
    %v4167 = vpop.permute.xlu0 %4166
    %4168 = vrot.lane.b32.xlu0 %v4156, 17
    %v4169 = vpop.permute.xlu0 %4168
    %4170 = vrot.lane.b32.xlu0 %v4157, 17
    %v4171 = vpop.permute.xlu0 %4170
    %4172 = vrot.lane.b32.xlu0 %v852, 17
    %v4173 = vpop.permute.xlu0 %4172
    %4174 = vrot.lane.b32.xlu0 %v853, 17
    %v4175 = vpop.permute.xlu0 %4174
    %4176 = vrot.lane.b32.xlu0 %v854, 17
    %v4177 = vpop.permute.xlu0 %4176
    %4178 = vrot.lane.b32.xlu0 %v855, 17
    %v4179 = vpop.permute.xlu0 %4178
    %v4180 = vsel %vm275, %v4165, %v4167
    %v4181 = vsel %vm275, %v4167, %v4169
    %v4182 = vsel %vm275, %v4169, %v4171
    %v4183 = vsel %vm275, %v4173, %v4175
    %v4184 = vsel %vm275, %v4175, %v4177
    %v4185 = vsel %vm275, %v4177, %v4179
    %v4194 = vsel %vm275, 0.0, %v4165
    %v4195 = vsel %vm275, 0.0, %v4173
    %v4196 = vmul.f32 %v4194, %v288
    %v4197 = vmul.f32 %v4180, %v292
    %v4198 = vmul.f32 %v4181, %v296
    %v4199 = vmul.f32 %v4182, %v300
    %v4200 = vmul.f32 %v4195, %v288
    %v4201 = vmul.f32 %v4183, %v292
    %v4202 = vmul.f32 %v4184, %v296
    %v4203 = vmul.f32 %v4185, %v300
    %4204 = vrot.lane.b32.xlu0 %v4154, 16
    %v4205 = vpop.permute.xlu0 %4204
    %4206 = vrot.lane.b32.xlu0 %v4155, 16
    %v4207 = vpop.permute.xlu0 %4206
    %4208 = vrot.lane.b32.xlu0 %v4156, 16
    %v4209 = vpop.permute.xlu0 %4208
    %4210 = vrot.lane.b32.xlu0 %v4157, 16
    %v4211 = vpop.permute.xlu0 %4210
    %4212 = vrot.lane.b32.xlu0 %v852, 16
    %v4213 = vpop.permute.xlu0 %4212
    %4214 = vrot.lane.b32.xlu0 %v853, 16
    %v4215 = vpop.permute.xlu0 %4214
    %4216 = vrot.lane.b32.xlu0 %v854, 16
    %v4217 = vpop.permute.xlu0 %4216
    %4218 = vrot.lane.b32.xlu0 %v855, 16
    %v4219 = vpop.permute.xlu0 %4218
    %v4220 = vsel %vm317, %v4205, %v4207
    %v4221 = vsel %vm317, %v4207, %v4209
    %v4222 = vsel %vm317, %v4209, %v4211
    %v4223 = vsel %vm317, %v4213, %v4215
    %v4224 = vsel %vm317, %v4215, %v4217
    %v4225 = vsel %vm317, %v4217, %v4219
    %v4234 = vsel %vm317, 0.0, %v4205
    %v4235 = vsel %vm317, 0.0, %v4213
    %v4236 = vmul.f32 %v4234, %v330
    %v4237 = vmul.f32 %v4220, %v334
    %v4238 = vmul.f32 %v4221, %v338
    %v4239 = vmul.f32 %v4222, %v342
    %v4240 = vmul.f32 %v4235, %v330
    %v4241 = vmul.f32 %v4223, %v334
    %v4242 = vmul.f32 %v4224, %v338
    %v4243 = vmul.f32 %v4225, %v342
    %4244 = vrot.lane.b32.xlu0 %v4154, 15
    %v4245 = vpop.permute.xlu0 %4244
    %4246 = vrot.lane.b32.xlu0 %v4155, 15
    %v4247 = vpop.permute.xlu0 %4246
    %4248 = vrot.lane.b32.xlu0 %v4156, 15
    %v4249 = vpop.permute.xlu0 %4248
    %4250 = vrot.lane.b32.xlu0 %v4157, 15
    %v4251 = vpop.permute.xlu0 %4250
    %4252 = vrot.lane.b32.xlu0 %v852, 15
    %v4253 = vpop.permute.xlu0 %4252
    %4254 = vrot.lane.b32.xlu0 %v853, 15
    %v4255 = vpop.permute.xlu0 %4254
    %4256 = vrot.lane.b32.xlu0 %v854, 15
    %v4257 = vpop.permute.xlu0 %4256
    %4258 = vrot.lane.b32.xlu0 %v855, 15
    %v4259 = vpop.permute.xlu0 %4258
    %v4260 = vsel %vm359, %v4245, %v4247
    %v4261 = vsel %vm359, %v4247, %v4249
    %v4262 = vsel %vm359, %v4249, %v4251
    %v4263 = vsel %vm359, %v4253, %v4255
    %v4264 = vsel %vm359, %v4255, %v4257
    %v4265 = vsel %vm359, %v4257, %v4259
    %v4274 = vsel %vm359, 0.0, %v4245
    %v4275 = vsel %vm359, 0.0, %v4253
    %v4276 = vmul.f32 %v4274, %v372
    %v4277 = vmul.f32 %v4260, %v376
    %v4278 = vmul.f32 %v4261, %v380
    %v4279 = vmul.f32 %v4262, %v384
    %v4280 = vmul.f32 %v4275, %v372
    %v4281 = vmul.f32 %v4263, %v376
    %v4282 = vmul.f32 %v4264, %v380
    %v4283 = vmul.f32 %v4265, %v384
    %4284 = vrot.lane.b32.xlu0 %v4154, 1
    %v4285 = vpop.permute.xlu0 %4284
    %4286 = vrot.lane.b32.xlu0 %v4155, 1
    %v4287 = vpop.permute.xlu0 %4286
    %4288 = vrot.lane.b32.xlu0 %v4156, 1
    %v4289 = vpop.permute.xlu0 %4288
    %4290 = vrot.lane.b32.xlu0 %v4157, 1
    %v4291 = vpop.permute.xlu0 %4290
    %4292 = vrot.lane.b32.xlu0 %v852, 1
    %v4293 = vpop.permute.xlu0 %4292
    %4294 = vrot.lane.b32.xlu0 %v853, 1
    %v4295 = vpop.permute.xlu0 %4294
    %4296 = vrot.lane.b32.xlu0 %v854, 1
    %v4297 = vpop.permute.xlu0 %4296
    %4298 = vrot.lane.b32.xlu0 %v855, 1
    %v4299 = vpop.permute.xlu0 %4298
    %v4300 = vsel %vm401, %v4285, %v4287
    %v4301 = vsel %vm401, %v4287, %v4289
    %v4302 = vsel %vm401, %v4289, %v4291
    %v4303 = vsel %vm401, %v4293, %v4295
    %v4304 = vsel %vm401, %v4295, %v4297
    %v4305 = vsel %vm401, %v4297, %v4299
    %v4314 = vsel %vm401, 0.0, %v4285
    %v4315 = vsel %vm401, 0.0, %v4293
    %v4316 = vmul.f32 %v4314, %v414
    %v4317 = vmul.f32 %v4300, %v418
    %v4318 = vmul.f32 %v4301, %v422
    %v4319 = vmul.f32 %v4302, %v426
    %v4320 = vmul.f32 %v4315, %v414
    %v4321 = vmul.f32 %v4303, %v418
    %v4322 = vmul.f32 %v4304, %v422
    %v4323 = vmul.f32 %v4305, %v426
    %4324 = vrot.lane.b32.xlu0 %v4154, 127
    %v4325 = vpop.permute.xlu0 %4324
    %4326 = vrot.lane.b32.xlu0 %v4155, 127
    %v4327 = vpop.permute.xlu0 %4326
    %4328 = vrot.lane.b32.xlu0 %v4156, 127
    %v4329 = vpop.permute.xlu0 %4328
    %4330 = vrot.lane.b32.xlu0 %v4157, 127
    %v4331 = vpop.permute.xlu0 %4330
    %v4332 = vsel %vm443, %v4325, %v4327
    %v4333 = vsel %vm443, %v4327, %v4329
    %v4334 = vsel %vm443, %v4329, %v4331
    %v4339 = vsel %vm443, %v4331, 0.0
    %v4340 = vmul.f32 %v4332, %v456
    %v4341 = vmul.f32 %v4333, %v460
    %v4342 = vmul.f32 %v4334, %v464
    %v4343 = vmul.f32 %v4339, %v468
    %v4344 = vmul.f32 %v932, %v456
    %v4345 = vmul.f32 %v933, %v460
    %v4346 = vmul.f32 %v934, %v464
    %v4347 = vmul.f32 %v939, %v468
    %4348 = vrot.lane.b32.xlu0 %v4154, 113
    %v4349 = vpop.permute.xlu0 %4348
    %4350 = vrot.lane.b32.xlu0 %v4155, 113
    %v4351 = vpop.permute.xlu0 %4350
    %4352 = vrot.lane.b32.xlu0 %v4156, 113
    %v4353 = vpop.permute.xlu0 %4352
    %4354 = vrot.lane.b32.xlu0 %v4157, 113
    %v4355 = vpop.permute.xlu0 %4354
    %4356 = vrot.lane.b32.xlu0 %v852, 113
    %v4357 = vpop.permute.xlu0 %4356
    %4358 = vrot.lane.b32.xlu0 %v853, 113
    %v4359 = vpop.permute.xlu0 %4358
    %4360 = vrot.lane.b32.xlu0 %v854, 113
    %v4361 = vpop.permute.xlu0 %4360
    %4362 = vrot.lane.b32.xlu0 %v855, 113
    %v4363 = vpop.permute.xlu0 %4362
    %v4364 = vsel %vm485, %v4349, %v4351
    %v4365 = vsel %vm485, %v4351, %v4353
    %v4366 = vsel %vm485, %v4353, %v4355
    %v4367 = vsel %vm485, %v4357, %v4359
    %v4368 = vsel %vm485, %v4359, %v4361
    %v4369 = vsel %vm485, %v4361, %v4363
    %v4378 = vsel %vm485, %v4355, 0.0
    %v4379 = vsel %vm485, %v4363, 0.0
    %v4380 = vmul.f32 %v4364, %v498
    %v4381 = vmul.f32 %v4365, %v502
    %v4382 = vmul.f32 %v4366, %v506
    %v4383 = vmul.f32 %v4378, %v510
    %v4384 = vmul.f32 %v4367, %v498
    %v4385 = vmul.f32 %v4368, %v502
    %v4386 = vmul.f32 %v4369, %v506
    %v4387 = vmul.f32 %v4379, %v510
    %4388 = vrot.lane.b32.xlu0 %v4154, 112
    %v4389 = vpop.permute.xlu0 %4388
    %4390 = vrot.lane.b32.xlu0 %v4155, 112
    %v4391 = vpop.permute.xlu0 %4390
    %4392 = vrot.lane.b32.xlu0 %v4156, 112
    %v4393 = vpop.permute.xlu0 %4392
    %4394 = vrot.lane.b32.xlu0 %v4157, 112
    %v4395 = vpop.permute.xlu0 %4394
    %4396 = vrot.lane.b32.xlu0 %v852, 112
    %v4397 = vpop.permute.xlu0 %4396
    %4398 = vrot.lane.b32.xlu0 %v853, 112
    %v4399 = vpop.permute.xlu0 %4398
    %4400 = vrot.lane.b32.xlu0 %v854, 112
    %v4401 = vpop.permute.xlu0 %4400
    %4402 = vrot.lane.b32.xlu0 %v855, 112
    %v4403 = vpop.permute.xlu0 %4402
    %v4404 = vsel %vm527, %v4389, %v4391
    %v4405 = vsel %vm527, %v4391, %v4393
    %v4406 = vsel %vm527, %v4393, %v4395
    %v4407 = vsel %vm527, %v4397, %v4399
    %v4408 = vsel %vm527, %v4399, %v4401
    %v4409 = vsel %vm527, %v4401, %v4403
    %v4418 = vsel %vm527, %v4395, 0.0
    %v4419 = vsel %vm527, %v4403, 0.0
    %v4420 = vmul.f32 %v4404, %v540
    %v4421 = vmul.f32 %v4405, %v544
    %v4422 = vmul.f32 %v4406, %v548
    %v4423 = vmul.f32 %v4418, %v552
    %v4424 = vmul.f32 %v4407, %v540
    %v4425 = vmul.f32 %v4408, %v544
    %v4426 = vmul.f32 %v4409, %v548
    %v4427 = vmul.f32 %v4419, %v552
    %4428 = vrot.lane.b32.xlu0 %v4154, 111
    %v4429 = vpop.permute.xlu0 %4428
    %4430 = vrot.lane.b32.xlu0 %v4155, 111
    %v4431 = vpop.permute.xlu0 %4430
    %4432 = vrot.lane.b32.xlu0 %v4156, 111
    %v4433 = vpop.permute.xlu0 %4432
    %4434 = vrot.lane.b32.xlu0 %v4157, 111
    %v4435 = vpop.permute.xlu0 %4434
    %4436 = vrot.lane.b32.xlu0 %v852, 111
    %v4437 = vpop.permute.xlu0 %4436
    %4438 = vrot.lane.b32.xlu0 %v853, 111
    %v4439 = vpop.permute.xlu0 %4438
    %4440 = vrot.lane.b32.xlu0 %v854, 111
    %v4441 = vpop.permute.xlu0 %4440
    %4442 = vrot.lane.b32.xlu0 %v855, 111
    %v4443 = vpop.permute.xlu0 %4442
    %v4444 = vsel %vm569, %v4429, %v4431
    %v4445 = vsel %vm569, %v4431, %v4433
    %v4446 = vsel %vm569, %v4433, %v4435
    %v4447 = vsel %vm569, %v4437, %v4439
    %v4448 = vsel %vm569, %v4439, %v4441
    %v4449 = vsel %vm569, %v4441, %v4443
    %v4458 = vsel %vm569, %v4435, 0.0
    %v4459 = vsel %vm569, %v4443, 0.0
    %v4460 = vmul.f32 %v4444, %v582
    %v4461 = vmul.f32 %v4445, %v586
    %v4462 = vmul.f32 %v4446, %v590
    %v4463 = vmul.f32 %v4458, %v594
    %v4464 = vmul.f32 %v4447, %v582
    %v4465 = vmul.f32 %v4448, %v586
    %v4466 = vmul.f32 %v4449, %v590
    %v4467 = vmul.f32 %v4459, %v594
    %v4468 = vpack.c.bf16 %v4200, %v4196
    %v4469 = vpack.c.bf16 %v4201, %v4197
    %v4470 = vpack.c.bf16 %v4202, %v4198
    %v4471 = vpack.c.bf16 %v4203, %v4199
    %v4472 = vpack.c.bf16 %v4240, %v4236
    %v4473 = vpack.c.bf16 %v4241, %v4237
    %v4474 = vpack.c.bf16 %v4242, %v4238
    %v4475 = vpack.c.bf16 %v4243, %v4239
    %v4476 = vpack.c.bf16 %v4280, %v4276
    %v4477 = vpack.c.bf16 %v4281, %v4277
    %v4478 = vpack.c.bf16 %v4282, %v4278
    %v4479 = vpack.c.bf16 %v4283, %v4279
    %v4480 = vpack.c.bf16 %v4320, %v4316
    %v4481 = vpack.c.bf16 %v4321, %v4317
    %v4482 = vpack.c.bf16 %v4322, %v4318
    %v4483 = vpack.c.bf16 %v4323, %v4319
    %v4484 = vpack.c.bf16 %v852, %v4154
    %v4485 = vpack.c.bf16 %v853, %v4155
    %v4486 = vpack.c.bf16 %v854, %v4156
    %v4487 = vpack.c.bf16 %v855, %v4157
    %v4488 = vpack.c.bf16 %v4344, %v4340
    %v4489 = vpack.c.bf16 %v4345, %v4341
    %v4490 = vpack.c.bf16 %v4346, %v4342
    %v4491 = vpack.c.bf16 %v4347, %v4343
    %v4492 = vpack.c.bf16 %v4384, %v4380
    %v4493 = vpack.c.bf16 %v4385, %v4381
    %v4494 = vpack.c.bf16 %v4386, %v4382
    %v4495 = vpack.c.bf16 %v4387, %v4383
    %v4496 = vpack.c.bf16 %v4424, %v4420
    %v4497 = vpack.c.bf16 %v4425, %v4421
    %v4498 = vpack.c.bf16 %v4426, %v4422
    %v4499 = vpack.c.bf16 %v4427, %v4423
    %v4500 = vpack.c.bf16 %v4464, %v4460
    %v4501 = vpack.c.bf16 %v4465, %v4461
    %v4502 = vpack.c.bf16 %v4466, %v4462
    %v4503 = vpack.c.bf16 %v4467, %v4463
    %4505 = vset.pattern.permute.xlu0 0
    %4506 = vperm.xlu0 %4505, %v4159
    %v4507 = vpop.permute.xlu0 %4506
    %v4510 = vunpack.c.l.b16 %v4158
    %v4511 = vunpack.c.h.b16 %v4158
    %v4512 = vpack.c.b16 %v4510, %v4510
    %v4513 = vpack.c.b16 %v4511, %v4511
    %v4516 = vsel %vm317, %v4513, 0
    %4518 = vmatprep.subr.bf16.mxu0 %v4497
    %4519 = vmatpush1.bf16.msra.mxu0 %v4496
    %4520 = vmatprep.subr.bf16.mxu0 %v4493
    %4521 = vmatpush1.bf16.msra.mxu0 %v4492
    %4522 = vmatprep.subr.bf16.mxu0 %v4489
    %4523 = vmatpush1.bf16.msra.mxu0 %v4488
    %4524 = vmatprep.subr.bf16.mxu0 %v4485
    %4525 = vmatpush1.bf16.msra.mxu0 %v4484
    %4526 = vmatprep.subr.bf16.mxu0 %v4481
    %4527 = vmatpush1.bf16.msra.mxu0 %v4480
    %4528 = vmatprep.subr.bf16.mxu0 %v4477
    %4529 = vmatpush1.bf16.msra.mxu0 %v4476
    %4530 = vmatprep.subr.bf16.mxu0 %v4473
    %4531 = vmatpush1.bf16.msra.mxu0 %v4472
    %4532 = vmatprep.subr.bf16.mxu0 %v4469
    %4533 = vmatpush1.bf16.msra.mxu0 %v4468
    %4534 = vmatprep.subr.bf16.mxu0 0
    %4535 = vmatpush2.bf16.msra.mxu0 0
    %4536 = vmatprep.subr.bf16.mxu0 0
    %4537 = vmatpush2.bf16.msra.mxu0 0
    %4538 = vmatprep.subr.bf16.mxu0 0
    %4539 = vmatpush2.bf16.msra.mxu0 0
    %4540 = vmatprep.subr.bf16.mxu0 0
    %4541 = vmatpush2.bf16.msra.mxu0 0
    %4542 = vmatprep.subr.bf16.mxu0 0
    %4543 = vmatpush2.bf16.msra.mxu0 0
    %4544 = vmatprep.subr.bf16.mxu0 0
    %4545 = vmatpush2.bf16.msra.mxu0 0
    %4546 = vmatprep.subr.bf16.mxu0 0
    %4547 = vmatpush2.bf16.msra.mxu0 0
    %4548 = vmatprep.subr.bf16.mxu0 %v4501
    %4549 = vmatpush2.bf16.msra.mxu0 %v4500
    %4550 = vmatprep.mubr.bf16.mxu0 %v4516
    %4551 = vmatmul.mubr.bf16.gmra.mxu0 %v4512
    %v4552 = vpop.f32.mrf.mxu0
    %v4553 = vadd.f32 %v4507, %v4552
    %v4554 = vpop.f32.mrf.mxu0
    %v4555 = vadd.f32 %v4507, %v4554
    %v4556 = vpop.f32.mrf.mxu0
    %v4557 = vpop.f32.mrf.mxu0
    %4558 = vdwg.mxu0
    %4559 = vmatprep.subr.bf16.mxu0 %v4499
    %4560 = vmatpush1.bf16.msra.mxu0 %v4498
    %4561 = vmatprep.subr.bf16.mxu0 %v4495
    %4562 = vmatpush1.bf16.msra.mxu0 %v4494
    %4563 = vmatprep.subr.bf16.mxu0 %v4491
    %4564 = vmatpush1.bf16.msra.mxu0 %v4490
    %4565 = vmatprep.subr.bf16.mxu0 %v4487
    %4566 = vmatpush1.bf16.msra.mxu0 %v4486
    %4567 = vmatprep.subr.bf16.mxu0 %v4483
    %4568 = vmatpush1.bf16.msra.mxu0 %v4482
    %4569 = vmatprep.subr.bf16.mxu0 %v4479
    %4570 = vmatpush1.bf16.msra.mxu0 %v4478
    %4571 = vmatprep.subr.bf16.mxu0 %v4475
    %4572 = vmatpush1.bf16.msra.mxu0 %v4474
    %4573 = vmatprep.subr.bf16.mxu0 %v4471
    %4574 = vmatpush1.bf16.msra.mxu0 %v4470
    %4575 = vmatprep.subr.bf16.mxu0 0
    %4576 = vmatpush2.bf16.msra.mxu0 0
    %4577 = vmatprep.subr.bf16.mxu0 0
    %4578 = vmatpush2.bf16.msra.mxu0 0
    %4579 = vmatprep.subr.bf16.mxu0 0
    %4580 = vmatpush2.bf16.msra.mxu0 0
    %4581 = vmatprep.subr.bf16.mxu0 0
    %4582 = vmatpush2.bf16.msra.mxu0 0
    %4583 = vmatprep.subr.bf16.mxu0 0
    %4584 = vmatpush2.bf16.msra.mxu0 0
    %4585 = vmatprep.subr.bf16.mxu0 0
    %4586 = vmatpush2.bf16.msra.mxu0 0
    %4587 = vmatprep.subr.bf16.mxu0 0
    %4588 = vmatpush2.bf16.msra.mxu0 0
    %4589 = vmatprep.subr.bf16.mxu0 %v4503
    %4590 = vmatpush2.bf16.msra.mxu0 %v4502
    %4591 = vmatprep.mubr.bf16.mxu0 %v4516
    %4592 = vmatmul.mubr.bf16.gmra.mxu0 %v4512
    %v4593 = vpop.f32.mrf.mxu0
    %v4594 = vadd.f32 %v4507, %v4593
    %v4595 = vpop.f32.mrf.mxu0
    %v4596 = vadd.f32 %v4507, %v4595
    %v4597 = vpop.f32.mrf.mxu0
    %v4598 = vpop.f32.mrf.mxu0
    %4599 = vdwg.mxu0
    %v4600 = vmax.f32 %v4553, 0.0
    %v4601 = vmax.f32 %v4555, 0.0
    %v4602 = vmax.f32 %v4594, 0.0
    %v4603 = vmax.f32 %v4596, 0.0
    %v4604 = vadd.f32 %v4600, %v4601
    %v4605 = vadd.f32 %v4604, %v4602
    %v4606 = vadd.f32 %v4605, %v4603
    %4607 = vadd.xlane.f32.xlu0 %v4606
    %v4608 = vpop.xlane.xlu0 %4607
    %v4609 = vmul.f32 %v4608, 0.001953125
    %v4610 = vmul.f32 %v4600, %v4600
    %v4611 = vmul.f32 %v4601, %v4601
    %v4612 = vmul.f32 %v4602, %v4602
    %v4613 = vmul.f32 %v4603, %v4603
    %v4614 = vadd.f32 %v4610, %v4611
    %v4615 = vadd.f32 %v4614, %v4612
    %v4616 = vadd.f32 %v4615, %v4613
    %4617 = vadd.xlane.f32.xlu0 %v4616
    %v4618 = vpop.xlane.xlu0 %4617
    %v4619 = vmul.f32 %v4618, 0.001953125
    %v4620 = vmul.f32 %v4609, %v4609
    %v4621 = vsub.f32 %v4619, %v4620
    %v4622 = vmax.f32 %v4621, 0.0
    %v4623 = vsub.f32 %v4600, %v4609
    %v4624 = vsub.f32 %v4601, %v4609
    %v4625 = vsub.f32 %v4602, %v4609
    %v4626 = vsub.f32 %v4603, %v4609
    %v4627 = vadd.f32 %v4622, 1e-05
    %v4628 = vrsqrt.pop %v4627
    %v4629 = vmul.f32 %v4623, %v4628
    %v4630 = vmul.f32 %v4624, %v4628
    %v4631 = vmul.f32 %v4625, %v4628
    %v4632 = vmul.f32 %v4626, %v4628
    %v4633 = vld [vmem:[#allocation17] sm:$0x1]
    %v4634 = vld [vmem:[#allocation2] sm:$0x1]
    %4639 = vrot.lane.b32.xlu0 %v4629, 17
    %v4640 = vpop.permute.xlu0 %4639
    %4641 = vrot.lane.b32.xlu0 %v4630, 17
    %v4642 = vpop.permute.xlu0 %4641
    %4643 = vrot.lane.b32.xlu0 %v4631, 17
    %v4644 = vpop.permute.xlu0 %4643
    %4645 = vrot.lane.b32.xlu0 %v4632, 17
    %v4646 = vpop.permute.xlu0 %4645
    %v4647 = vsel %vm275, %v4640, %v4642
    %v4648 = vsel %vm275, %v4642, %v4644
    %v4649 = vsel %vm275, %v4644, %v4646
    %v4654 = vsel %vm275, 0.0, %v4640
    %v4655 = vmul.f32 %v4654, %v288
    %v4656 = vmul.f32 %v4647, %v292
    %v4657 = vmul.f32 %v4648, %v296
    %v4658 = vmul.f32 %v4649, %v300
    %4659 = vrot.lane.b32.xlu0 %v4629, 16
    %v4660 = vpop.permute.xlu0 %4659
    %4661 = vrot.lane.b32.xlu0 %v4630, 16
    %v4662 = vpop.permute.xlu0 %4661
    %4663 = vrot.lane.b32.xlu0 %v4631, 16
    %v4664 = vpop.permute.xlu0 %4663
    %4665 = vrot.lane.b32.xlu0 %v4632, 16
    %v4666 = vpop.permute.xlu0 %4665
    %v4667 = vsel %vm317, %v4660, %v4662
    %v4668 = vsel %vm317, %v4662, %v4664
    %v4669 = vsel %vm317, %v4664, %v4666
    %v4674 = vsel %vm317, 0.0, %v4660
    %v4675 = vmul.f32 %v4674, %v330
    %v4676 = vmul.f32 %v4667, %v334
    %v4677 = vmul.f32 %v4668, %v338
    %v4678 = vmul.f32 %v4669, %v342
    %4679 = vrot.lane.b32.xlu0 %v4629, 15
    %v4680 = vpop.permute.xlu0 %4679
    %4681 = vrot.lane.b32.xlu0 %v4630, 15
    %v4682 = vpop.permute.xlu0 %4681
    %4683 = vrot.lane.b32.xlu0 %v4631, 15
    %v4684 = vpop.permute.xlu0 %4683
    %4685 = vrot.lane.b32.xlu0 %v4632, 15
    %v4686 = vpop.permute.xlu0 %4685
    %v4687 = vsel %vm359, %v4680, %v4682
    %v4688 = vsel %vm359, %v4682, %v4684
    %v4689 = vsel %vm359, %v4684, %v4686
    %v4694 = vsel %vm359, 0.0, %v4680
    %v4695 = vmul.f32 %v4694, %v372
    %v4696 = vmul.f32 %v4687, %v376
    %v4697 = vmul.f32 %v4688, %v380
    %v4698 = vmul.f32 %v4689, %v384
    %4699 = vrot.lane.b32.xlu0 %v4629, 1
    %v4700 = vpop.permute.xlu0 %4699
    %4701 = vrot.lane.b32.xlu0 %v4630, 1
    %v4702 = vpop.permute.xlu0 %4701
    %4703 = vrot.lane.b32.xlu0 %v4631, 1
    %v4704 = vpop.permute.xlu0 %4703
    %4705 = vrot.lane.b32.xlu0 %v4632, 1
    %v4706 = vpop.permute.xlu0 %4705
    %v4707 = vsel %vm401, %v4700, %v4702
    %v4708 = vsel %vm401, %v4702, %v4704
    %v4709 = vsel %vm401, %v4704, %v4706
    %v4714 = vsel %vm401, 0.0, %v4700
    %v4715 = vmul.f32 %v4714, %v414
    %v4716 = vmul.f32 %v4707, %v418
    %v4717 = vmul.f32 %v4708, %v422
    %v4718 = vmul.f32 %v4709, %v426
    %4719 = vrot.lane.b32.xlu0 %v4629, 127
    %v4720 = vpop.permute.xlu0 %4719
    %4721 = vrot.lane.b32.xlu0 %v4630, 127
    %v4722 = vpop.permute.xlu0 %4721
    %4723 = vrot.lane.b32.xlu0 %v4631, 127
    %v4724 = vpop.permute.xlu0 %4723
    %4725 = vrot.lane.b32.xlu0 %v4632, 127
    %v4726 = vpop.permute.xlu0 %4725
    %v4727 = vsel %vm443, %v4720, %v4722
    %v4728 = vsel %vm443, %v4722, %v4724
    %v4729 = vsel %vm443, %v4724, %v4726
    %v4734 = vsel %vm443, %v4726, 0.0
    %v4735 = vmul.f32 %v4727, %v456
    %v4736 = vmul.f32 %v4728, %v460
    %v4737 = vmul.f32 %v4729, %v464
    %v4738 = vmul.f32 %v4734, %v468
    %4739 = vrot.lane.b32.xlu0 %v4629, 113
    %v4740 = vpop.permute.xlu0 %4739
    %4741 = vrot.lane.b32.xlu0 %v4630, 113
    %v4742 = vpop.permute.xlu0 %4741
    %4743 = vrot.lane.b32.xlu0 %v4631, 113
    %v4744 = vpop.permute.xlu0 %4743
    %4745 = vrot.lane.b32.xlu0 %v4632, 113
    %v4746 = vpop.permute.xlu0 %4745
    %v4747 = vsel %vm485, %v4740, %v4742
    %v4748 = vsel %vm485, %v4742, %v4744
    %v4749 = vsel %vm485, %v4744, %v4746
    %v4754 = vsel %vm485, %v4746, 0.0
    %v4755 = vmul.f32 %v4747, %v498
    %v4756 = vmul.f32 %v4748, %v502
    %v4757 = vmul.f32 %v4749, %v506
    %v4758 = vmul.f32 %v4754, %v510
    %4759 = vrot.lane.b32.xlu0 %v4629, 112
    %v4760 = vpop.permute.xlu0 %4759
    %4761 = vrot.lane.b32.xlu0 %v4630, 112
    %v4762 = vpop.permute.xlu0 %4761
    %4763 = vrot.lane.b32.xlu0 %v4631, 112
    %v4764 = vpop.permute.xlu0 %4763
    %4765 = vrot.lane.b32.xlu0 %v4632, 112
    %v4766 = vpop.permute.xlu0 %4765
    %v4767 = vsel %vm527, %v4760, %v4762
    %v4768 = vsel %vm527, %v4762, %v4764
    %v4769 = vsel %vm527, %v4764, %v4766
    %v4774 = vsel %vm527, %v4766, 0.0
    %v4775 = vmul.f32 %v4767, %v540
    %v4776 = vmul.f32 %v4768, %v544
    %v4777 = vmul.f32 %v4769, %v548
    %v4778 = vmul.f32 %v4774, %v552
    %4779 = vrot.lane.b32.xlu0 %v4629, 111
    %v4780 = vpop.permute.xlu0 %4779
    %4781 = vrot.lane.b32.xlu0 %v4630, 111
    %v4782 = vpop.permute.xlu0 %4781
    %4783 = vrot.lane.b32.xlu0 %v4631, 111
    %v4784 = vpop.permute.xlu0 %4783
    %4785 = vrot.lane.b32.xlu0 %v4632, 111
    %v4786 = vpop.permute.xlu0 %4785
    %v4787 = vsel %vm569, %v4780, %v4782
    %v4788 = vsel %vm569, %v4782, %v4784
    %v4789 = vsel %vm569, %v4784, %v4786
    %v4794 = vsel %vm569, %v4786, 0.0
    %v4795 = vmul.f32 %v4787, %v582
    %v4796 = vmul.f32 %v4788, %v586
    %v4797 = vmul.f32 %v4789, %v590
    %v4798 = vmul.f32 %v4794, %v594
    %v4799 = vpack.c.bf16 %v4675, %v4655
    %v4800 = vpack.c.bf16 %v4676, %v4656
    %v4801 = vpack.c.bf16 %v4677, %v4657
    %v4802 = vpack.c.bf16 %v4678, %v4658
    %v4803 = vpack.c.bf16 %v4715, %v4695
    %v4804 = vpack.c.bf16 %v4716, %v4696
    %v4805 = vpack.c.bf16 %v4717, %v4697
    %v4806 = vpack.c.bf16 %v4718, %v4698
    %v4807 = vpack.c.bf16 %v4735, %v4629
    %v4808 = vpack.c.bf16 %v4736, %v4630
    %v4809 = vpack.c.bf16 %v4737, %v4631
    %v4810 = vpack.c.bf16 %v4738, %v4632
    %v4811 = vpack.c.bf16 %v4775, %v4755
    %v4812 = vpack.c.bf16 %v4776, %v4756
    %v4813 = vpack.c.bf16 %v4777, %v4757
    %v4814 = vpack.c.bf16 %v4778, %v4758
    %v4815 = vpack.c.bf16 %v4795, %v4795
    %v4816 = vpack.c.bf16 %v4796, %v4796
    %v4817 = vpack.c.bf16 %v4797, %v4797
    %v4818 = vpack.c.bf16 %v4798, %v4798
    %4820 = vset.pattern.permute.xlu0 0
    %4821 = vperm.xlu0 %4820, %v4634
    %v4822 = vpop.permute.xlu0 %4821
    %v4824 = vlaneseq
    %v4825 = vshrl.u32 %v4824, 7
    %v4826 = vsub.s32 0, %v4825
    %v4827 = vrot.slane %v4822, %v4826
    %v4829 = vsel %vm1362, %v4633, 0
    %v4832 = vsel %vm694, %v4815, 0
    %v4835 = vsel %vm694, %v4816, 0
    %v4838 = vsel %vm694, %v4817, 0
    %v4841 = vsel %vm694, %v4818, 0
    %4843 = vmatprep.subr.bf16.mxu0 0
    %4844 = vmatpush1.bf16.msra.mxu0 0
    %4845 = vmatprep.subr.bf16.mxu0 0
    %4846 = vmatpush1.bf16.msra.mxu0 0
    %4847 = vmatprep.subr.bf16.mxu0 0
    %4848 = vmatpush1.bf16.msra.mxu0 0
    %4849 = vmatprep.subr.bf16.mxu0 %v4835
    %4850 = vmatpush1.bf16.msra.mxu0 %v4832
    %4851 = vmatprep.subr.bf16.mxu0 %v4812
    %4852 = vmatpush1.bf16.msra.mxu0 %v4811
    %4853 = vmatprep.subr.bf16.mxu0 %v4808
    %4854 = vmatpush1.bf16.msra.mxu0 %v4807
    %4855 = vmatprep.subr.bf16.mxu0 %v4804
    %4856 = vmatpush1.bf16.msra.mxu0 %v4803
    %4857 = vmatprep.subr.bf16.mxu0 %v4800
    %4858 = vmatpush1.bf16.msra.mxu0 %v4799
    %4859 = vmatprep.subr.bf16.mxu0 0
    %4860 = vmatpush2.bf16.msra.mxu0 0
    %4861 = vmatprep.subr.bf16.mxu0 0
    %4862 = vmatpush2.bf16.msra.mxu0 0
    %4863 = vmatprep.subr.bf16.mxu0 0
    %4864 = vmatpush2.bf16.msra.mxu0 0
    %4865 = vmatprep.subr.bf16.mxu0 0
    %4866 = vmatpush2.bf16.msra.mxu0 0
    %4867 = vmatprep.subr.bf16.mxu0 0
    %4868 = vmatpush2.bf16.msra.mxu0 0
    %4869 = vmatprep.subr.bf16.mxu0 0
    %4870 = vmatpush2.bf16.msra.mxu0 0
    %4871 = vmatprep.subr.bf16.mxu0 0
    %4872 = vmatpush2.bf16.msra.mxu0 0
    %4873 = vmatprep.subr.bf16.mxu0 0
    %4874 = vmatpush2.bf16.msra.mxu0 0
    %4875 = vmatprep.mubr.bf16.mxu0 0
    %4876 = vmatmul.mubr.bf16.gmra.mxu0 %v4829
    %v4877 = vpop.f32.mrf.mxu0
    %v4878 = vadd.f32 %v4827, %v4877
    %v4879 = vpop.f32.mrf.mxu0
    %v4880 = vadd.f32 %v4827, %v4879
    %v4881 = vpop.f32.mrf.mxu0
    %v4882 = vpop.f32.mrf.mxu0
    %4883 = vdwg.mxu0
    %4884 = vmatprep.subr.bf16.mxu0 0
    %4885 = vmatpush1.bf16.msra.mxu0 0
    %4886 = vmatprep.subr.bf16.mxu0 0
    %4887 = vmatpush1.bf16.msra.mxu0 0
    %4888 = vmatprep.subr.bf16.mxu0 0
    %4889 = vmatpush1.bf16.msra.mxu0 0
    %4890 = vmatprep.subr.bf16.mxu0 %v4841
    %4891 = vmatpush1.bf16.msra.mxu0 %v4838
    %4892 = vmatprep.subr.bf16.mxu0 %v4814
    %4893 = vmatpush1.bf16.msra.mxu0 %v4813
    %4894 = vmatprep.subr.bf16.mxu0 %v4810
    %4895 = vmatpush1.bf16.msra.mxu0 %v4809
    %4896 = vmatprep.subr.bf16.mxu0 %v4806
    %4897 = vmatpush1.bf16.msra.mxu0 %v4805
    %4898 = vmatprep.subr.bf16.mxu0 %v4802
    %4899 = vmatpush1.bf16.msra.mxu0 %v4801
    %4900 = vmatprep.subr.bf16.mxu0 0
    %4901 = vmatpush2.bf16.msra.mxu0 0
    %4902 = vmatprep.subr.bf16.mxu0 0
    %4903 = vmatpush2.bf16.msra.mxu0 0
    %4904 = vmatprep.subr.bf16.mxu0 0
    %4905 = vmatpush2.bf16.msra.mxu0 0
    %4906 = vmatprep.subr.bf16.mxu0 0
    %4907 = vmatpush2.bf16.msra.mxu0 0
    %4908 = vmatprep.subr.bf16.mxu0 0
    %4909 = vmatpush2.bf16.msra.mxu0 0
    %4910 = vmatprep.subr.bf16.mxu0 0
    %4911 = vmatpush2.bf16.msra.mxu0 0
    %4912 = vmatprep.subr.bf16.mxu0 0
    %4913 = vmatpush2.bf16.msra.mxu0 0
    %4914 = vmatprep.subr.bf16.mxu0 0
    %4915 = vmatpush2.bf16.msra.mxu0 0
    %4916 = vmatprep.mubr.bf16.mxu0 0
    %4917 = vmatmul.mubr.bf16.gmra.mxu0 %v4829
    %v4918 = vpop.f32.mrf.mxu0
    %v4919 = vadd.f32 %v4827, %v4918
    %v4920 = vpop.f32.mrf.mxu0
    %v4921 = vadd.f32 %v4827, %v4920
    %v4922 = vpop.f32.mrf.mxu0
    %v4923 = vpop.f32.mrf.mxu0
    %4924 = vdwg.mxu0
    %v4925 = vsel %vm679, %v4878, 0.0
    %v4926 = vsel %vm679, %v4880, 0.0
    %v4927 = vadd.f32 %v4925, %v4926
    %v4928 = vsel %vm679, %v4919, 0.0
    %v4929 = vadd.f32 %v4927, %v4928
    %v4930 = vsel %vm679, %v4921, 0.0
    %v4931 = vadd.f32 %v4929, %v4930
    %4932 = vadd.xlane.f32.xlu0 %v4931
    %v4933 = vpop.xlane.xlu0 %4932
    %v4934 = vmul.f32 %v4933, 0.001953125
    %v4935 = vmul.f32 %v4878, %v4878
    %v4936 = vmul.f32 %v4880, %v4880
    %v4937 = vmul.f32 %v4919, %v4919
    %v4938 = vmul.f32 %v4921, %v4921
    %v4939 = vsel %vm679, %v4935, 0.0
    %v4940 = vsel %vm679, %v4936, 0.0
    %v4941 = vadd.f32 %v4939, %v4940
    %v4942 = vsel %vm679, %v4937, 0.0
    %v4943 = vadd.f32 %v4941, %v4942
    %v4944 = vsel %vm679, %v4938, 0.0
    %v4945 = vadd.f32 %v4943, %v4944
    %4946 = vadd.xlane.f32.xlu0 %v4945
    %v4947 = vpop.xlane.xlu0 %4946
    %v4948 = vmul.f32 %v4947, 0.001953125
    %v4949 = vmul.f32 %v4934, %v4934
    %v4950 = vsub.f32 %v4948, %v4949
    %v4951 = vmax.f32 %v4950, 0.0
    %v4952 = vsub.f32 %v4878, %v4934
    %v4953 = vsub.f32 %v4880, %v4934
    %v4954 = vsub.f32 %v4919, %v4934
    %v4955 = vsub.f32 %v4921, %v4934
    %v4956 = vadd.f32 %v4951, 1e-05
    %v4957 = vrsqrt.pop %v4956
    %v4958 = vmul.f32 %v4952, %v4957
    %v4959 = vmul.f32 %v4953, %v4957
    %v4960 = vmul.f32 %v4954, %v4957
    %v4961 = vmul.f32 %v4955, %v4957
    %v4962 = vxor.u32 %v4958, 2147483648
    %v4963 = vxor.u32 %v4959, 2147483648
    %v4964 = vxor.u32 %v4960, 2147483648
    %v4965 = vxor.u32 %v4961, 2147483648
    %v4966 = vmul.f32 %v4962, 1.442695
    %v4967 = vpow.pop %v4966
    %v4968 = vmul.f32 %v4963, 1.442695
    %v4969 = vpow.pop %v4968
    %v4970 = vmul.f32 %v4964, 1.442695
    %v4971 = vpow.pop %v4970
    %v4972 = vmul.f32 %v4965, 1.442695
    %v4973 = vpow.pop %v4972
    %v4974 = vadd.f32 %v4967, 1.0
    %v4975 = vadd.f32 %v4969, 1.0
    %v4976 = vadd.f32 %v4971, 1.0
    %v4977 = vadd.f32 %v4973, 1.0
    %v4978 = vrcp.pop %v4974
    %v4979 = vmul.f32 1.0, %v4978
    %v4980 = vrcp.pop %v4975
    %v4981 = vmul.f32 1.0, %v4980
    %v4982 = vrcp.pop %v4976
    %v4983 = vmul.f32 1.0, %v4982
    %v4984 = vrcp.pop %v4977
    %v4985 = vmul.f32 1.0, %v4984
    %v4990 = vcombine.low %v4979, %v4981
    %v4991 = vcombine.low %v4983, %v4985
    %v4993 = vunpack.c.l.s4 1966171168
    %v4994 = vunpack.c.0.s8 %v4993
    %v4995 = vlaneseq
    %v4996 = vshrl.u32 %v4995, 7
    %v4997 = vsub.s32 %v4994, %v4996
    %v4998 = vrot.slane %v4990, %v4997
    %v5000 = vunpack.c.l.s4 1966171168
    %v5001 = vunpack.c.0.s8 %v5000
    %v5002 = vlaneseq
    %v5003 = vshrl.u32 %v5002, 7
    %v5004 = vsub.s32 %v5001, %v5003
    %v5005 = vrot.slane %v4991, %v5004
    %v5006 = vcombine.low %v4998, %v5005
    %v5008 = vunpack.c.l.s4 1966171168
    %v5009 = vunpack.c.0.s8 %v5008
    %v5010 = vlaneseq
    %v5011 = vshrl.u32 %v5010, 7
    %v5012 = vsub.s32 %v5009, %v5011
    %v5013 = vrot.slane %v5006, %v5012
    %v5015 = vlaneseq
    %vm5016 = vcmp.ge.s32.totalorder %v5015, 0
    %vm5017 = vcmp.lt.s32.totalorder %v5015, 512
    %vm5018 = vmand %vm5016, %vm5017
    %5019 = vst.msk [vmem:[%s24] sm:$0xf] %vm5018, %v5013
    // Predicated region
    $region142: #{unet_forward.1} parent=1 // pred_check
      _
    $region143: #{unet_forward.1} parent=1 // pred_check_branch
      %5021 = sbr.rel (0) target = $region145
    $region144: #{unet_forward.1} parent=1 // pred_region
      _
    $region145: #{unet_forward.1} parent=1 // pred_fallthru
      _
    // Predicated region
    $region146: #{unet_forward.1} parent=1 // pred_check
      _
    $region147: #{unet_forward.1} parent=1 // pred_check_branch
      %5023 = sbr.rel (0) target = $region149
    $region148: #{unet_forward.1} parent=1 // pred_region
      _
    $region149: #{unet_forward.1} parent=1 // pred_fallthru
      _
    %5024 = vsyncpa [#allocation4], 1
    %5025 = vsyncpa [#allocation6], 1
    %5026 = vsyncpa [#allocation9], 1
    %5027 = vsyncpa [#allocation12], 1
    %5028 = vsyncpa [#allocation15], 1
    %5029 = vsyncpa [#allocation18], 1

</llo_original>
